<compile_context>
chip_gen: v7x
topology: tpu7x:2x2x1
jax: 0.10.0
libtpu: 0.0.40
codegen_flags: <defaults>
</compile_context>

<pallas_src>
import functools

import jax
import jax.numpy as jnp
from jax.experimental import pallas as pl
from jax.experimental.pallas import tpu as pltpu

N_LAYERS = 6


# ---------------------------------------------------------------------------
# Kernel 1: everything VMEM-resident, single invocation (small / medium L).
# ---------------------------------------------------------------------------
def _hic_kernel_resident(n_mats,
                         x0_ref, mat_ref,
                         wlin_ref, blin_ref,
                         wlm_ref, blm_ref,
                         wm1_ref, bm1_ref,
                         wm2_ref, bm2_ref,
                         out_ref):
    x = x0_ref[...]                                    # (dim, L) f32
    for i in range(N_LAYERS):                          # static unroll
        xb = x.astype(jnp.bfloat16)                    # cast once, reuse
        # l(x): per-mat (dim,dim) conv; outputs placed lane-adjacent so the
        # contact-matrix contraction below is ONE K = n_mats*L matmul.
        ys = []
        for m in range(n_mats):
            ym = (jnp.dot(wlin_ref[i * n_mats + m], xb,
                          preferred_element_type=jnp.float32)
                  + blin_ref[i * n_mats + m])
            ys.append(ym.astype(jnp.bfloat16))
        y_cat = jnp.concatenate(ys, axis=1)            # (dim, n_mats*L) bf16
        # z = sum_m y_m @ mat_m  ==  y_cat @ mat_cat  (single fused dot).
        z = jnp.dot(y_cat, mat_ref[...], preferred_element_type=jnp.float32)
        t = x + z
        tb = t.astype(jnp.bfloat16)                    # cast once, reuse
        # lm (BN folded) and the lm-folded-into-m1 dot both consume t:
        # independent dots -> shorter serial MXU chain.
        x_new = (jnp.dot(wlm_ref[i], tb, preferred_element_type=jnp.float32)
                 + blm_ref[i])
        v = (jnp.dot(wm1_ref[i], tb, preferred_element_type=jnp.float32)
             + bm1_ref[i])
        v = jnp.maximum(v, 0.0)
        v = (jnp.dot(wm2_ref[i], v.astype(jnp.bfloat16),
                     preferred_element_type=jnp.float32)
             + bm2_ref[i])
        v = jnp.maximum(v, 0.0)
        x = x_new + v
    out_ref[...] = x.astype(out_ref.dtype)


# ---------------------------------------------------------------------------
# Kernel 2: mat column-tiles streamed by the Pallas pipeline (large L).
# Grid = (layer, column_tile); both axes are sequential ("arbitrary"):
#   layers depend on the previous layer's full x, tiles share carried scratch.
# ---------------------------------------------------------------------------
def _hic_kernel_tiled(n_mats, length, tile,
                      x0_ref, mat_ref,
                      wlin_ref, blin_ref,
                      wlm_ref, blm_ref,
                      wm1_ref, bm1_ref,
                      wm2_ref, bm2_ref,
                      out_ref,
                      x_scr, y_scr):
    i = pl.program_id(0)       # layer
    j = pl.program_id(1)       # column tile

    @pl.when((i == 0) & (j == 0))
    def _():
        x_scr[...] = x0_ref[...]

    # Once per layer: compute the fused-K l(x) operand from the full x.
    @pl.when(j == 0)
    def _():
        xb = x_scr[...].astype(jnp.bfloat16)
        for m in range(n_mats):
            ym = (jnp.dot(wlin_ref[i * n_mats + m], xb,
                          preferred_element_type=jnp.float32)
                  + blin_ref[i * n_mats + m])
            y_scr[:, m * length:(m + 1) * length] = ym.astype(jnp.bfloat16)

    col = pl.multiple_of(j * tile, tile)
    # z tile: (dim, n_mats*L) @ (n_mats*L, tile), f32 accumulation.
    z = jnp.dot(y_scr[...], mat_ref[...], preferred_element_type=jnp.float32)
    t = x_scr[:, pl.ds(col, tile)] + z
    tb = t.astype(jnp.bfloat16)
    x_new = (jnp.dot(wlm_ref[i], tb, preferred_element_type=jnp.float32)
             + blm_ref[i])
    v = (jnp.dot(wm1_ref[i], tb, preferred_element_type=jnp.float32)
         + bm1_ref[i])
    v = jnp.maximum(v, 0.0)
    v = (jnp.dot(wm2_ref[i], v.astype(jnp.bfloat16),
                 preferred_element_type=jnp.float32)
         + bm2_ref[i])
    v = jnp.maximum(v, 0.0)
    x_scr[:, pl.ds(col, tile)] = x_new + v

    @pl.when((i == pl.num_programs(0) - 1) & (j == pl.num_programs(1) - 1))
    def _():
        out_ref[...] = x_scr[...]


# ---------------------------------------------------------------------------
# Wrapper: BN folding, lm->m1 fusion, operand packing, path dispatch.
# ---------------------------------------------------------------------------
def _prepare(mat, params, *, dim, n_mats, length):
    """Fold eval-mode BN into the convs, fuse lm into m1, pack operands."""

    def fold(w, b, scale, shift):
        return scale * w, scale * b + shift

    w_lm, b_lm = fold(params["w_lm"], params["b_lm"],
                      params["lm_scale"], params["lm_shift"])
    w_m1, b_m1 = fold(params["w_m1"], params["b_m1"],
                      params["m1_scale"], params["m1_shift"])
    w_m2, b_m2 = fold(params["w_m2"], params["b_m2"],
                      params["m2_scale"], params["m2_shift"])

    # Fuse lm into m1 (eval mode, no nonlinearity between them):
    #   Wm1'(Wlm' t + blm') + bm1'  ==  (Wm1' Wlm') t + (Wm1' blm' + bm1')
    w_m1f = jnp.matmul(w_m1, w_lm)            # (N_LAYERS, dim, dim), f32
    b_m1f = jnp.matmul(w_m1, b_lm) + b_m1     # (N_LAYERS, dim, 1),  f32

    # Per-(layer, mat) lin conv weights, flattened for scalar leading-index.
    w_lin = params["w_lin"].reshape(N_LAYERS * n_mats, dim, dim)
    b_lin = params["b_lin"].reshape(N_LAYERS * n_mats, dim, 1)

    # Contact matrices concatenated along the contraction axis: (n_mats*L, L).
    mat_cat = mat.reshape(n_mats * length, length)

    bf16 = lambda a: a.astype(jnp.bfloat16)
    f32 = lambda a: a.astype(jnp.float32)
    return dict(
        x0=f32(params["initial_x"]),
        mat=bf16(mat_cat),
        w_lin=bf16(w_lin), b_lin=f32(b_lin),
        w_lm=bf16(w_lm), b_lm=f32(b_lm),
        w_m1=bf16(w_m1f), b_m1=f32(b_m1f),
        w_m2=bf16(w_m2), b_m2=f32(b_m2),
    )


def _operand_list(ops):
    return (ops["x0"], ops["mat"],
            ops["w_lin"], ops["b_lin"],
            ops["w_lm"], ops["b_lm"],
            ops["w_m1"], ops["b_m1"],
            ops["w_m2"], ops["b_m2"])


def _forward_resident(ops, *, dim, n_mats, length):
    vmem = pl.BlockSpec(memory_space=pltpu.MemorySpace.VMEM)
    mat_bytes = n_mats * length * length * 2
    return pl.pallas_call(
        functools.partial(_hic_kernel_resident, n_mats),
        out_shape=jax.ShapeDtypeStruct((dim, length), jnp.float32),
        in_specs=[vmem] * 10,
        out_specs=vmem,
        compiler_params=pltpu.CompilerParams(
            vmem_limit_bytes=int(max(16 << 20, mat_bytes + (8 << 20)))),
    )(*_operand_list(ops))


def _forward_tiled(ops, *, dim, n_mats, length, col_tile):
    assert length % col_tile == 0 and col_tile % 128 == 0
    n_tiles = length // col_tile
    vmem = pl.BlockSpec(memory_space=pltpu.MemorySpace.VMEM)
    mat_spec = pl.BlockSpec((n_mats * length, col_tile), lambda i, j: (0, j))
    tile_bytes = 2 * (n_mats * length) * col_tile * 2      # double-buffered bf16
    resident_bytes = (dim * length * 4) + (dim * n_mats * length * 2) + (2 << 20)
    return pl.pallas_call(
        functools.partial(_hic_kernel_tiled, n_mats, length, col_tile),
        out_shape=jax.ShapeDtypeStruct((dim, length), jnp.float32),
        grid=(N_LAYERS, n_tiles),
        in_specs=[vmem, mat_spec] + [vmem] * 8,
        out_specs=vmem,
        scratch_shapes=[
            pltpu.VMEM((dim, length), jnp.float32),          # carried x
            pltpu.VMEM((dim, n_mats * length), jnp.bfloat16),  # per-layer y
        ],
        compiler_params=pltpu.CompilerParams(
            dimension_semantics=("arbitrary", "arbitrary"),
            vmem_limit_bytes=int(max(16 << 20,
                                     tile_bytes + resident_bytes + (4 << 20)))),
    )(*_operand_list(ops))


def hic_encoder_forward(mat, params, *, dim, n_mats, length,
                        force_tiled=False, col_tile=None,
                        mat_vmem_budget_bytes=24 << 20):
    """Pallas forward. Returns (1, dim, length) matching the PyTorch module."""
    ops = _prepare(mat, params, dim=dim, n_mats=n_mats, length=length)
    mat_bytes = n_mats * length * length * 2
    if force_tiled or mat_bytes > mat_vmem_budget_bytes:
        if col_tile is None:
            col_tile = 512 if length % 512 == 0 else 128
        out = _forward_tiled(ops, dim=dim, n_mats=n_mats, length=length,
                             col_tile=col_tile)
    else:
        out = _forward_resident(ops, dim=dim, n_mats=n_mats, length=length)
    return out[None]  # add back the batch dim of 1


# ---------------------------------------------------------------------------
# Parameters and pure-JAX f32 reference (mirrors the PyTorch eval forward).
# ---------------------------------------------------------------------------
def init_params(key, dim, n_mats, length):
    keys = jax.random.split(key, 16)

    def randn(k, shape, scale=1.0):
        return (scale * jax.random.normal(k, shape)).astype(jnp.float32)

    fan = 1.0 / float(dim) ** 0.5
    return {
        "initial_x": randn(keys[0], (dim, length)),
        "w_lin": randn(keys[1], (N_LAYERS, n_mats * dim, dim), fan),
        "b_lin": randn(keys[2], (N_LAYERS, n_mats * dim, 1), 0.1),
        "w_lm": randn(keys[3], (N_LAYERS, dim, dim), fan),
        "b_lm": randn(keys[4], (N_LAYERS, dim, 1), 0.1),
        "lm_scale": 1.0 + randn(keys[5], (N_LAYERS, dim, 1), 0.1),
        "lm_shift": randn(keys[6], (N_LAYERS, dim, 1), 0.1),
        "w_m1": randn(keys[7], (N_LAYERS, dim, dim), fan),
        "b_m1": randn(keys[8], (N_LAYERS, dim, 1), 0.1),
        "m1_scale": 1.0 + randn(keys[9], (N_LAYERS, dim, 1), 0.1),
        "m1_shift": randn(keys[10], (N_LAYERS, dim, 1), 0.1),
        "w_m2": randn(keys[11], (N_LAYERS, dim, dim), fan),
        "b_m2": randn(keys[12], (N_LAYERS, dim, 1), 0.1),
        "m2_scale": 1.0 + randn(keys[13], (N_LAYERS, dim, 1), 0.1),
        "m2_shift": randn(keys[14], (N_LAYERS, dim, 1), 0.1),
    }


def ref_forward(mat, p, *, dim, n_mats, length):
    x = p["initial_x"]
    for i in range(N_LAYERS):
        y = p["w_lin"][i] @ x + p["b_lin"][i]
        y = y.reshape(n_mats, dim, length)
        z = jnp.einsum("mdl,mlk->dk", y, mat)
        t = x + z
        u = p["w_lm"][i] @ t + p["b_lm"][i]
        x = u * p["lm_scale"][i] + p["lm_shift"][i]
        v = p["w_m1"][i] @ x + p["b_m1"][i]
        v = jnp.maximum(v * p["m1_scale"][i] + p["m1_shift"][i], 0.0)
        v = p["w_m2"][i] @ v + p["b_m2"][i]
        v = jnp.maximum(v * p["m2_scale"][i] + p["m2_shift"][i], 0.0)
        x = x + v
    return x[None]


def _check(out, ref, shape):
    assert out.shape == shape
    assert bool(jnp.all(jnp.isfinite(out)))
    err = float(jnp.max(jnp.abs(out - ref)))
    scale = float(jnp.max(jnp.abs(ref))) + 1e-6
    # bf16 MXU operands with f32 accumulation across 6 layers -> loose,
    # scale-relative tolerance against the pure-f32 reference.
    assert err <= 0.08 * scale, (err, scale)


if __name__ == "__main__":
    keys = jax.random.split(jax.random.PRNGKey(0), 4)
    n_mats = 2

    # Path 1: small/medium L -> everything VMEM-resident, one invocation.
    dim, length = 32, 128
    params = init_params(keys[0], dim, n_mats, length)
    mat = (jax.random.normal(keys[1], (n_mats, length, length)) / length
           ).astype(jnp.float32)
    out = hic_encoder_forward(mat, params, dim=dim, n_mats=n_mats, length=length)
    out = jax.block_until_ready(out)
    _check(out, ref_forward(mat, params, dim=dim, n_mats=n_mats, length=length),
           (1, dim, length))

    # Path 2: mat-column-streaming grid (forced here at a small size to
    # exercise the code path used when mat exceeds the VMEM budget).
    dim2, length2 = 32, 256
    params2 = init_params(keys[2], dim2, n_mats, length2)
    mat2 = (jax.random.normal(keys[3], (n_mats, length2, length2)) / length2
            ).astype(jnp.float32)
    out2 = hic_encoder_forward(mat2, params2, dim=dim2, n_mats=n_mats,
                               length=length2, force_tiled=True, col_tile=128)
    out2 = jax.block_until_ready(out2)
    _check(out2, ref_forward(mat2, params2, dim=dim2, n_mats=n_mats,
                             length=length2),
           (1, dim2, length2))

    print("KERNEL_OK")
</pallas_src>

<mosaic_0001>
module attributes {stable_mosaic.version = 11 : i64} {
  func.func @_hic_kernel_resident(%arg0: memref<32x128xf32, #tpu.memory_space<vmem>>, %arg1: memref<256x128xbf16, #tpu.memory_space<vmem>>, %arg2: memref<12x32x32xbf16, #tpu.memory_space<vmem>>, %arg3: memref<12x32x1xf32, #tpu.memory_space<vmem>>, %arg4: memref<6x32x32xbf16, #tpu.memory_space<vmem>>, %arg5: memref<6x32x1xf32, #tpu.memory_space<vmem>>, %arg6: memref<6x32x32xbf16, #tpu.memory_space<vmem>>, %arg7: memref<6x32x1xf32, #tpu.memory_space<vmem>>, %arg8: memref<6x32x32xbf16, #tpu.memory_space<vmem>>, %arg9: memref<6x32x1xf32, #tpu.memory_space<vmem>>, %arg10: memref<32x128xf32, #tpu.memory_space<vmem>>) attributes {dimension_semantics = [], scalar_prefetch = 0 : i64, scratch_operands = 0 : i64, tpu.core_type = #tpu.core_type<tc>} {
    %c0 = arith.constant 0 : index
    %c0_0 = arith.constant 0 : index
    %0 = vector.load %arg0[%c0, %c0_0] : memref<32x128xf32, #tpu.memory_space<vmem>>, vector<32x128xf32>
    %1 = arith.truncf %0 : vector<32x128xf32> to vector<32x128xbf16>
    %c0_1 = arith.constant 0 : index
    %c0_2 = arith.constant 0 : index
    %c0_3 = arith.constant 0 : index
    %2 = vector.load %arg2[%c0_1, %c0_2, %c0_3] : memref<12x32x32xbf16, #tpu.memory_space<vmem>>, vector<1x32x32xbf16>
    %3 = vector.shape_cast %2 : vector<1x32x32xbf16> to vector<32x32xbf16>
    %cst = arith.constant dense<0.000000e+00> : vector<32x128xf32>
    %4 = tpu.matmul %3, %1, %cst {dimension_numbers = #tpu.dot_dimension_numbers<[1], [0], [0], [1], [0, 0, 1, 1], [], []>} : vector<32x32xbf16>, vector<32x128xbf16>, vector<32x128xf32> -> vector<32x128xf32>
    %c0_4 = arith.constant 0 : index
    %c0_5 = arith.constant 0 : index
    %c0_6 = arith.constant 0 : index
    %5 = vector.load %arg3[%c0_4, %c0_5, %c0_6] : memref<12x32x1xf32, #tpu.memory_space<vmem>>, vector<1x32x1xf32>
    %6 = vector.shape_cast %5 : vector<1x32x1xf32> to vector<32x1xf32>
    %7 = vector.broadcast %6 : vector<32x1xf32> to vector<32x128xf32>
    %8 = arith.addf %4, %7 : vector<32x128xf32>
    %9 = arith.truncf %8 : vector<32x128xf32> to vector<32x128xbf16>
    %c1 = arith.constant 1 : index
    %c0_7 = arith.constant 0 : index
    %c0_8 = arith.constant 0 : index
    %10 = vector.load %arg2[%c1, %c0_7, %c0_8] : memref<12x32x32xbf16, #tpu.memory_space<vmem>>, vector<1x32x32xbf16>
    %11 = vector.shape_cast %10 : vector<1x32x32xbf16> to vector<32x32xbf16>
    %cst_9 = arith.constant dense<0.000000e+00> : vector<32x128xf32>
    %12 = tpu.matmul %11, %1, %cst_9 {dimension_numbers = #tpu.dot_dimension_numbers<[1], [0], [0], [1], [0, 0, 1, 1], [], []>} : vector<32x32xbf16>, vector<32x128xbf16>, vector<32x128xf32> -> vector<32x128xf32>
    %c1_10 = arith.constant 1 : index
    %c0_11 = arith.constant 0 : index
    %c0_12 = arith.constant 0 : index
    %13 = vector.load %arg3[%c1_10, %c0_11, %c0_12] : memref<12x32x1xf32, #tpu.memory_space<vmem>>, vector<1x32x1xf32>
    %14 = vector.shape_cast %13 : vector<1x32x1xf32> to vector<32x1xf32>
    %15 = vector.broadcast %14 : vector<32x1xf32> to vector<32x128xf32>
    %16 = arith.addf %12, %15 : vector<32x128xf32>
    %17 = arith.truncf %16 : vector<32x128xf32> to vector<32x128xbf16>
    %18 = tpu.concatenate %9, %17 in 1 : vector<32x128xbf16>, vector<32x128xbf16> -> vector<32x256xbf16>
    %c0_13 = arith.constant 0 : index
    %c0_14 = arith.constant 0 : index
    %19 = vector.load %arg1[%c0_13, %c0_14] : memref<256x128xbf16, #tpu.memory_space<vmem>>, vector<256x128xbf16>
    %cst_15 = arith.constant dense<0.000000e+00> : vector<32x128xf32>
    %20 = tpu.matmul %18, %19, %cst_15 {dimension_numbers = #tpu.dot_dimension_numbers<[1], [0], [0], [1], [0, 0, 1, 1], [], []>} : vector<32x256xbf16>, vector<256x128xbf16>, vector<32x128xf32> -> vector<32x128xf32>
    %21 = arith.addf %0, %20 : vector<32x128xf32>
    %22 = arith.truncf %21 : vector<32x128xf32> to vector<32x128xbf16>
    %c0_16 = arith.constant 0 : index
    %c0_17 = arith.constant 0 : index
    %c0_18 = arith.constant 0 : index
    %23 = vector.load %arg4[%c0_16, %c0_17, %c0_18] : memref<6x32x32xbf16, #tpu.memory_space<vmem>>, vector<1x32x32xbf16>
    %24 = vector.shape_cast %23 : vector<1x32x32xbf16> to vector<32x32xbf16>
    %cst_19 = arith.constant dense<0.000000e+00> : vector<32x128xf32>
    %25 = tpu.matmul %24, %22, %cst_19 {dimension_numbers = #tpu.dot_dimension_numbers<[1], [0], [0], [1], [0, 0, 1, 1], [], []>} : vector<32x32xbf16>, vector<32x128xbf16>, vector<32x128xf32> -> vector<32x128xf32>
    %c0_20 = arith.constant 0 : index
    %c0_21 = arith.constant 0 : index
    %c0_22 = arith.constant 0 : index
    %26 = vector.load %arg5[%c0_20, %c0_21, %c0_22] : memref<6x32x1xf32, #tpu.memory_space<vmem>>, vector<1x32x1xf32>
    %27 = vector.shape_cast %26 : vector<1x32x1xf32> to vector<32x1xf32>
    %28 = vector.broadcast %27 : vector<32x1xf32> to vector<32x128xf32>
    %29 = arith.addf %25, %28 : vector<32x128xf32>
    %c0_23 = arith.constant 0 : index
    %c0_24 = arith.constant 0 : index
    %c0_25 = arith.constant 0 : index
    %30 = vector.load %arg6[%c0_23, %c0_24, %c0_25] : memref<6x32x32xbf16, #tpu.memory_space<vmem>>, vector<1x32x32xbf16>
    %31 = vector.shape_cast %30 : vector<1x32x32xbf16> to vector<32x32xbf16>
    %cst_26 = arith.constant dense<0.000000e+00> : vector<32x128xf32>
    %32 = tpu.matmul %31, %22, %cst_26 {dimension_numbers = #tpu.dot_dimension_numbers<[1], [0], [0], [1], [0, 0, 1, 1], [], []>} : vector<32x32xbf16>, vector<32x128xbf16>, vector<32x128xf32> -> vector<32x128xf32>
    %c0_27 = arith.constant 0 : index
    %c0_28 = arith.constant 0 : index
    %c0_29 = arith.constant 0 : index
    %33 = vector.load %arg7[%c0_27, %c0_28, %c0_29] : memref<6x32x1xf32, #tpu.memory_space<vmem>>, vector<1x32x1xf32>
    %34 = vector.shape_cast %33 : vector<1x32x1xf32> to vector<32x1xf32>
    %35 = vector.broadcast %34 : vector<32x1xf32> to vector<32x128xf32>
    %36 = arith.addf %32, %35 : vector<32x128xf32>
    %cst_30 = arith.constant 0.000000e+00 : f32
    %37 = vector.broadcast %cst_30 : f32 to vector<32x128xf32>
    %38 = arith.maximumf %36, %37 : vector<32x128xf32>
    %c0_31 = arith.constant 0 : index
    %c0_32 = arith.constant 0 : index
    %c0_33 = arith.constant 0 : index
    %39 = vector.load %arg8[%c0_31, %c0_32, %c0_33] : memref<6x32x32xbf16, #tpu.memory_space<vmem>>, vector<1x32x32xbf16>
    %40 = vector.shape_cast %39 : vector<1x32x32xbf16> to vector<32x32xbf16>
    %41 = arith.truncf %38 : vector<32x128xf32> to vector<32x128xbf16>
    %cst_34 = arith.constant dense<0.000000e+00> : vector<32x128xf32>
    %42 = tpu.matmul %40, %41, %cst_34 {dimension_numbers = #tpu.dot_dimension_numbers<[1], [0], [0], [1], [0, 0, 1, 1], [], []>} : vector<32x32xbf16>, vector<32x128xbf16>, vector<32x128xf32> -> vector<32x128xf32>
    %c0_35 = arith.constant 0 : index
    %c0_36 = arith.constant 0 : index
    %c0_37 = arith.constant 0 : index
    %43 = vector.load %arg9[%c0_35, %c0_36, %c0_37] : memref<6x32x1xf32, #tpu.memory_space<vmem>>, vector<1x32x1xf32>
    %44 = vector.shape_cast %43 : vector<1x32x1xf32> to vector<32x1xf32>
    %45 = vector.broadcast %44 : vector<32x1xf32> to vector<32x128xf32>
    %46 = arith.addf %42, %45 : vector<32x128xf32>
    %cst_38 = arith.constant 0.000000e+00 : f32
    %47 = vector.broadcast %cst_38 : f32 to vector<32x128xf32>
    %48 = arith.maximumf %46, %47 : vector<32x128xf32>
    %49 = arith.addf %29, %48 : vector<32x128xf32>
    %50 = arith.truncf %49 : vector<32x128xf32> to vector<32x128xbf16>
    %c2 = arith.constant 2 : index
    %c0_39 = arith.constant 0 : index
    %c0_40 = arith.constant 0 : index
    %51 = vector.load %arg2[%c2, %c0_39, %c0_40] : memref<12x32x32xbf16, #tpu.memory_space<vmem>>, vector<1x32x32xbf16>
    %52 = vector.shape_cast %51 : vector<1x32x32xbf16> to vector<32x32xbf16>
    %cst_41 = arith.constant dense<0.000000e+00> : vector<32x128xf32>
    %53 = tpu.matmul %52, %50, %cst_41 {dimension_numbers = #tpu.dot_dimension_numbers<[1], [0], [0], [1], [0, 0, 1, 1], [], []>} : vector<32x32xbf16>, vector<32x128xbf16>, vector<32x128xf32> -> vector<32x128xf32>
    %c2_42 = arith.constant 2 : index
    %c0_43 = arith.constant 0 : index
    %c0_44 = arith.constant 0 : index
    %54 = vector.load %arg3[%c2_42, %c0_43, %c0_44] : memref<12x32x1xf32, #tpu.memory_space<vmem>>, vector<1x32x1xf32>
    %55 = vector.shape_cast %54 : vector<1x32x1xf32> to vector<32x1xf32>
    %56 = vector.broadcast %55 : vector<32x1xf32> to vector<32x128xf32>
    %57 = arith.addf %53, %56 : vector<32x128xf32>
    %58 = arith.truncf %57 : vector<32x128xf32> to vector<32x128xbf16>
    %c3 = arith.constant 3 : index
    %c0_45 = arith.constant 0 : index
    %c0_46 = arith.constant 0 : index
    %59 = vector.load %arg2[%c3, %c0_45, %c0_46] : memref<12x32x32xbf16, #tpu.memory_space<vmem>>, vector<1x32x32xbf16>
    %60 = vector.shape_cast %59 : vector<1x32x32xbf16> to vector<32x32xbf16>
    %cst_47 = arith.constant dense<0.000000e+00> : vector<32x128xf32>
    %61 = tpu.matmul %60, %50, %cst_47 {dimension_numbers = #tpu.dot_dimension_numbers<[1], [0], [0], [1], [0, 0, 1, 1], [], []>} : vector<32x32xbf16>, vector<32x128xbf16>, vector<32x128xf32> -> vector<32x128xf32>
    %c3_48 = arith.constant 3 : index
    %c0_49 = arith.constant 0 : index
    %c0_50 = arith.constant 0 : index
    %62 = vector.load %arg3[%c3_48, %c0_49, %c0_50] : memref<12x32x1xf32, #tpu.memory_space<vmem>>, vector<1x32x1xf32>
    %63 = vector.shape_cast %62 : vector<1x32x1xf32> to vector<32x1xf32>
    %64 = vector.broadcast %63 : vector<32x1xf32> to vector<32x128xf32>
    %65 = arith.addf %61, %64 : vector<32x128xf32>
    %66 = arith.truncf %65 : vector<32x128xf32> to vector<32x128xbf16>
    %67 = tpu.concatenate %58, %66 in 1 : vector<32x128xbf16>, vector<32x128xbf16> -> vector<32x256xbf16>
    %c0_51 = arith.constant 0 : index
    %c0_52 = arith.constant 0 : index
    %68 = vector.load %arg1[%c0_51, %c0_52] : memref<256x128xbf16, #tpu.memory_space<vmem>>, vector<256x128xbf16>
    %cst_53 = arith.constant dense<0.000000e+00> : vector<32x128xf32>
    %69 = tpu.matmul %67, %68, %cst_53 {dimension_numbers = #tpu.dot_dimension_numbers<[1], [0], [0], [1], [0, 0, 1, 1], [], []>} : vector<32x256xbf16>, vector<256x128xbf16>, vector<32x128xf32> -> vector<32x128xf32>
    %70 = arith.addf %49, %69 : vector<32x128xf32>
    %71 = arith.truncf %70 : vector<32x128xf32> to vector<32x128xbf16>
    %c1_54 = arith.constant 1 : index
    %c0_55 = arith.constant 0 : index
    %c0_56 = arith.constant 0 : index
    %72 = vector.load %arg4[%c1_54, %c0_55, %c0_56] : memref<6x32x32xbf16, #tpu.memory_space<vmem>>, vector<1x32x32xbf16>
    %73 = vector.shape_cast %72 : vector<1x32x32xbf16> to vector<32x32xbf16>
    %cst_57 = arith.constant dense<0.000000e+00> : vector<32x128xf32>
    %74 = tpu.matmul %73, %71, %cst_57 {dimension_numbers = #tpu.dot_dimension_numbers<[1], [0], [0], [1], [0, 0, 1, 1], [], []>} : vector<32x32xbf16>, vector<32x128xbf16>, vector<32x128xf32> -> vector<32x128xf32>
    %c1_58 = arith.constant 1 : index
    %c0_59 = arith.constant 0 : index
    %c0_60 = arith.constant 0 : index
    %75 = vector.load %arg5[%c1_58, %c0_59, %c0_60] : memref<6x32x1xf32, #tpu.memory_space<vmem>>, vector<1x32x1xf32>
    %76 = vector.shape_cast %75 : vector<1x32x1xf32> to vector<32x1xf32>
    %77 = vector.broadcast %76 : vector<32x1xf32> to vector<32x128xf32>
    %78 = arith.addf %74, %77 : vector<32x128xf32>
    %c1_61 = arith.constant 1 : index
    %c0_62 = arith.constant 0 : index
    %c0_63 = arith.constant 0 : index
    %79 = vector.load %arg6[%c1_61, %c0_62, %c0_63] : memref<6x32x32xbf16, #tpu.memory_space<vmem>>, vector<1x32x32xbf16>
    %80 = vector.shape_cast %79 : vector<1x32x32xbf16> to vector<32x32xbf16>
    %cst_64 = arith.constant dense<0.000000e+00> : vector<32x128xf32>
    %81 = tpu.matmul %80, %71, %cst_64 {dimension_numbers = #tpu.dot_dimension_numbers<[1], [0], [0], [1], [0, 0, 1, 1], [], []>} : vector<32x32xbf16>, vector<32x128xbf16>, vector<32x128xf32> -> vector<32x128xf32>
    %c1_65 = arith.constant 1 : index
    %c0_66 = arith.constant 0 : index
    %c0_67 = arith.constant 0 : index
    %82 = vector.load %arg7[%c1_65, %c0_66, %c0_67] : memref<6x32x1xf32, #tpu.memory_space<vmem>>, vector<1x32x1xf32>
    %83 = vector.shape_cast %82 : vector<1x32x1xf32> to vector<32x1xf32>
    %84 = vector.broadcast %83 : vector<32x1xf32> to vector<32x128xf32>
    %85 = arith.addf %81, %84 : vector<32x128xf32>
    %cst_68 = arith.constant 0.000000e+00 : f32
    %86 = vector.broadcast %cst_68 : f32 to vector<32x128xf32>
    %87 = arith.maximumf %85, %86 : vector<32x128xf32>
    %c1_69 = arith.constant 1 : index
    %c0_70 = arith.constant 0 : index
    %c0_71 = arith.constant 0 : index
    %88 = vector.load %arg8[%c1_69, %c0_70, %c0_71] : memref<6x32x32xbf16, #tpu.memory_space<vmem>>, vector<1x32x32xbf16>
    %89 = vector.shape_cast %88 : vector<1x32x32xbf16> to vector<32x32xbf16>
    %90 = arith.truncf %87 : vector<32x128xf32> to vector<32x128xbf16>
    %cst_72 = arith.constant dense<0.000000e+00> : vector<32x128xf32>
    %91 = tpu.matmul %89, %90, %cst_72 {dimension_numbers = #tpu.dot_dimension_numbers<[1], [0], [0], [1], [0, 0, 1, 1], [], []>} : vector<32x32xbf16>, vector<32x128xbf16>, vector<32x128xf32> -> vector<32x128xf32>
    %c1_73 = arith.constant 1 : index
    %c0_74 = arith.constant 0 : index
    %c0_75 = arith.constant 0 : index
    %92 = vector.load %arg9[%c1_73, %c0_74, %c0_75] : memref<6x32x1xf32, #tpu.memory_space<vmem>>, vector<1x32x1xf32>
    %93 = vector.shape_cast %92 : vector<1x32x1xf32> to vector<32x1xf32>
    %94 = vector.broadcast %93 : vector<32x1xf32> to vector<32x128xf32>
    %95 = arith.addf %91, %94 : vector<32x128xf32>
    %cst_76 = arith.constant 0.000000e+00 : f32
    %96 = vector.broadcast %cst_76 : f32 to vector<32x128xf32>
    %97 = arith.maximumf %95, %96 : vector<32x128xf32>
    %98 = arith.addf %78, %97 : vector<32x128xf32>
    %99 = arith.truncf %98 : vector<32x128xf32> to vector<32x128xbf16>
    %c4 = arith.constant 4 : index
    %c0_77 = arith.constant 0 : index
    %c0_78 = arith.constant 0 : index
    %100 = vector.load %arg2[%c4, %c0_77, %c0_78] : memref<12x32x32xbf16, #tpu.memory_space<vmem>>, vector<1x32x32xbf16>
    %101 = vector.shape_cast %100 : vector<1x32x32xbf16> to vector<32x32xbf16>
    %cst_79 = arith.constant dense<0.000000e+00> : vector<32x128xf32>
    %102 = tpu.matmul %101, %99, %cst_79 {dimension_numbers = #tpu.dot_dimension_numbers<[1], [0], [0], [1], [0, 0, 1, 1], [], []>} : vector<32x32xbf16>, vector<32x128xbf16>, vector<32x128xf32> -> vector<32x128xf32>
    %c4_80 = arith.constant 4 : index
    %c0_81 = arith.constant 0 : index
    %c0_82 = arith.constant 0 : index
    %103 = vector.load %arg3[%c4_80, %c0_81, %c0_82] : memref<12x32x1xf32, #tpu.memory_space<vmem>>, vector<1x32x1xf32>
    %104 = vector.shape_cast %103 : vector<1x32x1xf32> to vector<32x1xf32>
    %105 = vector.broadcast %104 : vector<32x1xf32> to vector<32x128xf32>
    %106 = arith.addf %102, %105 : vector<32x128xf32>
    %107 = arith.truncf %106 : vector<32x128xf32> to vector<32x128xbf16>
    %c5 = arith.constant 5 : index
    %c0_83 = arith.constant 0 : index
    %c0_84 = arith.constant 0 : index
    %108 = vector.load %arg2[%c5, %c0_83, %c0_84] : memref<12x32x32xbf16, #tpu.memory_space<vmem>>, vector<1x32x32xbf16>
    %109 = vector.shape_cast %108 : vector<1x32x32xbf16> to vector<32x32xbf16>
    %cst_85 = arith.constant dense<0.000000e+00> : vector<32x128xf32>
    %110 = tpu.matmul %109, %99, %cst_85 {dimension_numbers = #tpu.dot_dimension_numbers<[1], [0], [0], [1], [0, 0, 1, 1], [], []>} : vector<32x32xbf16>, vector<32x128xbf16>, vector<32x128xf32> -> vector<32x128xf32>
    %c5_86 = arith.constant 5 : index
    %c0_87 = arith.constant 0 : index
    %c0_88 = arith.constant 0 : index
    %111 = vector.load %arg3[%c5_86, %c0_87, %c0_88] : memref<12x32x1xf32, #tpu.memory_space<vmem>>, vector<1x32x1xf32>
    %112 = vector.shape_cast %111 : vector<1x32x1xf32> to vector<32x1xf32>
    %113 = vector.broadcast %112 : vector<32x1xf32> to vector<32x128xf32>
    %114 = arith.addf %110, %113 : vector<32x128xf32>
    %115 = arith.truncf %114 : vector<32x128xf32> to vector<32x128xbf16>
    %116 = tpu.concatenate %107, %115 in 1 : vector<32x128xbf16>, vector<32x128xbf16> -> vector<32x256xbf16>
    %c0_89 = arith.constant 0 : index
    %c0_90 = arith.constant 0 : index
    %117 = vector.load %arg1[%c0_89, %c0_90] : memref<256x128xbf16, #tpu.memory_space<vmem>>, vector<256x128xbf16>
    %cst_91 = arith.constant dense<0.000000e+00> : vector<32x128xf32>
    %118 = tpu.matmul %116, %117, %cst_91 {dimension_numbers = #tpu.dot_dimension_numbers<[1], [0], [0], [1], [0, 0, 1, 1], [], []>} : vector<32x256xbf16>, vector<256x128xbf16>, vector<32x128xf32> -> vector<32x128xf32>
    %119 = arith.addf %98, %118 : vector<32x128xf32>
    %120 = arith.truncf %119 : vector<32x128xf32> to vector<32x128xbf16>
    %c2_92 = arith.constant 2 : index
    %c0_93 = arith.constant 0 : index
    %c0_94 = arith.constant 0 : index
    %121 = vector.load %arg4[%c2_92, %c0_93, %c0_94] : memref<6x32x32xbf16, #tpu.memory_space<vmem>>, vector<1x32x32xbf16>
    %122 = vector.shape_cast %121 : vector<1x32x32xbf16> to vector<32x32xbf16>
    %cst_95 = arith.constant dense<0.000000e+00> : vector<32x128xf32>
    %123 = tpu.matmul %122, %120, %cst_95 {dimension_numbers = #tpu.dot_dimension_numbers<[1], [0], [0], [1], [0, 0, 1, 1], [], []>} : vector<32x32xbf16>, vector<32x128xbf16>, vector<32x128xf32> -> vector<32x128xf32>
    %c2_96 = arith.constant 2 : index
    %c0_97 = arith.constant 0 : index
    %c0_98 = arith.constant 0 : index
    %124 = vector.load %arg5[%c2_96, %c0_97, %c0_98] : memref<6x32x1xf32, #tpu.memory_space<vmem>>, vector<1x32x1xf32>
    %125 = vector.shape_cast %124 : vector<1x32x1xf32> to vector<32x1xf32>
    %126 = vector.broadcast %125 : vector<32x1xf32> to vector<32x128xf32>
    %127 = arith.addf %123, %126 : vector<32x128xf32>
    %c2_99 = arith.constant 2 : index
    %c0_100 = arith.constant 0 : index
    %c0_101 = arith.constant 0 : index
    %128 = vector.load %arg6[%c2_99, %c0_100, %c0_101] : memref<6x32x32xbf16, #tpu.memory_space<vmem>>, vector<1x32x32xbf16>
    %129 = vector.shape_cast %128 : vector<1x32x32xbf16> to vector<32x32xbf16>
    %cst_102 = arith.constant dense<0.000000e+00> : vector<32x128xf32>
    %130 = tpu.matmul %129, %120, %cst_102 {dimension_numbers = #tpu.dot_dimension_numbers<[1], [0], [0], [1], [0, 0, 1, 1], [], []>} : vector<32x32xbf16>, vector<32x128xbf16>, vector<32x128xf32> -> vector<32x128xf32>
    %c2_103 = arith.constant 2 : index
    %c0_104 = arith.constant 0 : index
    %c0_105 = arith.constant 0 : index
    %131 = vector.load %arg7[%c2_103, %c0_104, %c0_105] : memref<6x32x1xf32, #tpu.memory_space<vmem>>, vector<1x32x1xf32>
    %132 = vector.shape_cast %131 : vector<1x32x1xf32> to vector<32x1xf32>
    %133 = vector.broadcast %132 : vector<32x1xf32> to vector<32x128xf32>
    %134 = arith.addf %130, %133 : vector<32x128xf32>
    %cst_106 = arith.constant 0.000000e+00 : f32
    %135 = vector.broadcast %cst_106 : f32 to vector<32x128xf32>
    %136 = arith.maximumf %134, %135 : vector<32x128xf32>
    %c2_107 = arith.constant 2 : index
    %c0_108 = arith.constant 0 : index
    %c0_109 = arith.constant 0 : index
    %137 = vector.load %arg8[%c2_107, %c0_108, %c0_109] : memref<6x32x32xbf16, #tpu.memory_space<vmem>>, vector<1x32x32xbf16>
    %138 = vector.shape_cast %137 : vector<1x32x32xbf16> to vector<32x32xbf16>
    %139 = arith.truncf %136 : vector<32x128xf32> to vector<32x128xbf16>
    %cst_110 = arith.constant dense<0.000000e+00> : vector<32x128xf32>
    %140 = tpu.matmul %138, %139, %cst_110 {dimension_numbers = #tpu.dot_dimension_numbers<[1], [0], [0], [1], [0, 0, 1, 1], [], []>} : vector<32x32xbf16>, vector<32x128xbf16>, vector<32x128xf32> -> vector<32x128xf32>
    %c2_111 = arith.constant 2 : index
    %c0_112 = arith.constant 0 : index
    %c0_113 = arith.constant 0 : index
    %141 = vector.load %arg9[%c2_111, %c0_112, %c0_113] : memref<6x32x1xf32, #tpu.memory_space<vmem>>, vector<1x32x1xf32>
    %142 = vector.shape_cast %141 : vector<1x32x1xf32> to vector<32x1xf32>
    %143 = vector.broadcast %142 : vector<32x1xf32> to vector<32x128xf32>
    %144 = arith.addf %140, %143 : vector<32x128xf32>
    %cst_114 = arith.constant 0.000000e+00 : f32
    %145 = vector.broadcast %cst_114 : f32 to vector<32x128xf32>
    %146 = arith.maximumf %144, %145 : vector<32x128xf32>
    %147 = arith.addf %127, %146 : vector<32x128xf32>
    %148 = arith.truncf %147 : vector<32x128xf32> to vector<32x128xbf16>
    %c6 = arith.constant 6 : index
    %c0_115 = arith.constant 0 : index
    %c0_116 = arith.constant 0 : index
    %149 = vector.load %arg2[%c6, %c0_115, %c0_116] : memref<12x32x32xbf16, #tpu.memory_space<vmem>>, vector<1x32x32xbf16>
    %150 = vector.shape_cast %149 : vector<1x32x32xbf16> to vector<32x32xbf16>
    %cst_117 = arith.constant dense<0.000000e+00> : vector<32x128xf32>
    %151 = tpu.matmul %150, %148, %cst_117 {dimension_numbers = #tpu.dot_dimension_numbers<[1], [0], [0], [1], [0, 0, 1, 1], [], []>} : vector<32x32xbf16>, vector<32x128xbf16>, vector<32x128xf32> -> vector<32x128xf32>
    %c6_118 = arith.constant 6 : index
    %c0_119 = arith.constant 0 : index
    %c0_120 = arith.constant 0 : index
    %152 = vector.load %arg3[%c6_118, %c0_119, %c0_120] : memref<12x32x1xf32, #tpu.memory_space<vmem>>, vector<1x32x1xf32>
    %153 = vector.shape_cast %152 : vector<1x32x1xf32> to vector<32x1xf32>
    %154 = vector.broadcast %153 : vector<32x1xf32> to vector<32x128xf32>
    %155 = arith.addf %151, %154 : vector<32x128xf32>
    %156 = arith.truncf %155 : vector<32x128xf32> to vector<32x128xbf16>
    %c7 = arith.constant 7 : index
    %c0_121 = arith.constant 0 : index
    %c0_122 = arith.constant 0 : index
    %157 = vector.load %arg2[%c7, %c0_121, %c0_122] : memref<12x32x32xbf16, #tpu.memory_space<vmem>>, vector<1x32x32xbf16>
    %158 = vector.shape_cast %157 : vector<1x32x32xbf16> to vector<32x32xbf16>
    %cst_123 = arith.constant dense<0.000000e+00> : vector<32x128xf32>
    %159 = tpu.matmul %158, %148, %cst_123 {dimension_numbers = #tpu.dot_dimension_numbers<[1], [0], [0], [1], [0, 0, 1, 1], [], []>} : vector<32x32xbf16>, vector<32x128xbf16>, vector<32x128xf32> -> vector<32x128xf32>
    %c7_124 = arith.constant 7 : index
    %c0_125 = arith.constant 0 : index
    %c0_126 = arith.constant 0 : index
    %160 = vector.load %arg3[%c7_124, %c0_125, %c0_126] : memref<12x32x1xf32, #tpu.memory_space<vmem>>, vector<1x32x1xf32>
    %161 = vector.shape_cast %160 : vector<1x32x1xf32> to vector<32x1xf32>
    %162 = vector.broadcast %161 : vector<32x1xf32> to vector<32x128xf32>
    %163 = arith.addf %159, %162 : vector<32x128xf32>
    %164 = arith.truncf %163 : vector<32x128xf32> to vector<32x128xbf16>
    %165 = tpu.concatenate %156, %164 in 1 : vector<32x128xbf16>, vector<32x128xbf16> -> vector<32x256xbf16>
    %c0_127 = arith.constant 0 : index
    %c0_128 = arith.constant 0 : index
    %166 = vector.load %arg1[%c0_127, %c0_128] : memref<256x128xbf16, #tpu.memory_space<vmem>>, vector<256x128xbf16>
    %cst_129 = arith.constant dense<0.000000e+00> : vector<32x128xf32>
    %167 = tpu.matmul %165, %166, %cst_129 {dimension_numbers = #tpu.dot_dimension_numbers<[1], [0], [0], [1], [0, 0, 1, 1], [], []>} : vector<32x256xbf16>, vector<256x128xbf16>, vector<32x128xf32> -> vector<32x128xf32>
    %168 = arith.addf %147, %167 : vector<32x128xf32>
    %169 = arith.truncf %168 : vector<32x128xf32> to vector<32x128xbf16>
    %c3_130 = arith.constant 3 : index
    %c0_131 = arith.constant 0 : index
    %c0_132 = arith.constant 0 : index
    %170 = vector.load %arg4[%c3_130, %c0_131, %c0_132] : memref<6x32x32xbf16, #tpu.memory_space<vmem>>, vector<1x32x32xbf16>
    %171 = vector.shape_cast %170 : vector<1x32x32xbf16> to vector<32x32xbf16>
    %cst_133 = arith.constant dense<0.000000e+00> : vector<32x128xf32>
    %172 = tpu.matmul %171, %169, %cst_133 {dimension_numbers = #tpu.dot_dimension_numbers<[1], [0], [0], [1], [0, 0, 1, 1], [], []>} : vector<32x32xbf16>, vector<32x128xbf16>, vector<32x128xf32> -> vector<32x128xf32>
    %c3_134 = arith.constant 3 : index
    %c0_135 = arith.constant 0 : index
    %c0_136 = arith.constant 0 : index
    %173 = vector.load %arg5[%c3_134, %c0_135, %c0_136] : memref<6x32x1xf32, #tpu.memory_space<vmem>>, vector<1x32x1xf32>
    %174 = vector.shape_cast %173 : vector<1x32x1xf32> to vector<32x1xf32>
    %175 = vector.broadcast %174 : vector<32x1xf32> to vector<32x128xf32>
    %176 = arith.addf %172, %175 : vector<32x128xf32>
    %c3_137 = arith.constant 3 : index
    %c0_138 = arith.constant 0 : index
    %c0_139 = arith.constant 0 : index
    %177 = vector.load %arg6[%c3_137, %c0_138, %c0_139] : memref<6x32x32xbf16, #tpu.memory_space<vmem>>, vector<1x32x32xbf16>
    %178 = vector.shape_cast %177 : vector<1x32x32xbf16> to vector<32x32xbf16>
    %cst_140 = arith.constant dense<0.000000e+00> : vector<32x128xf32>
    %179 = tpu.matmul %178, %169, %cst_140 {dimension_numbers = #tpu.dot_dimension_numbers<[1], [0], [0], [1], [0, 0, 1, 1], [], []>} : vector<32x32xbf16>, vector<32x128xbf16>, vector<32x128xf32> -> vector<32x128xf32>
    %c3_141 = arith.constant 3 : index
    %c0_142 = arith.constant 0 : index
    %c0_143 = arith.constant 0 : index
    %180 = vector.load %arg7[%c3_141, %c0_142, %c0_143] : memref<6x32x1xf32, #tpu.memory_space<vmem>>, vector<1x32x1xf32>
    %181 = vector.shape_cast %180 : vector<1x32x1xf32> to vector<32x1xf32>
    %182 = vector.broadcast %181 : vector<32x1xf32> to vector<32x128xf32>
    %183 = arith.addf %179, %182 : vector<32x128xf32>
    %cst_144 = arith.constant 0.000000e+00 : f32
    %184 = vector.broadcast %cst_144 : f32 to vector<32x128xf32>
    %185 = arith.maximumf %183, %184 : vector<32x128xf32>
    %c3_145 = arith.constant 3 : index
    %c0_146 = arith.constant 0 : index
    %c0_147 = arith.constant 0 : index
    %186 = vector.load %arg8[%c3_145, %c0_146, %c0_147] : memref<6x32x32xbf16, #tpu.memory_space<vmem>>, vector<1x32x32xbf16>
    %187 = vector.shape_cast %186 : vector<1x32x32xbf16> to vector<32x32xbf16>
    %188 = arith.truncf %185 : vector<32x128xf32> to vector<32x128xbf16>
    %cst_148 = arith.constant dense<0.000000e+00> : vector<32x128xf32>
    %189 = tpu.matmul %187, %188, %cst_148 {dimension_numbers = #tpu.dot_dimension_numbers<[1], [0], [0], [1], [0, 0, 1, 1], [], []>} : vector<32x32xbf16>, vector<32x128xbf16>, vector<32x128xf32> -> vector<32x128xf32>
    %c3_149 = arith.constant 3 : index
    %c0_150 = arith.constant 0 : index
    %c0_151 = arith.constant 0 : index
    %190 = vector.load %arg9[%c3_149, %c0_150, %c0_151] : memref<6x32x1xf32, #tpu.memory_space<vmem>>, vector<1x32x1xf32>
    %191 = vector.shape_cast %190 : vector<1x32x1xf32> to vector<32x1xf32>
    %192 = vector.broadcast %191 : vector<32x1xf32> to vector<32x128xf32>
    %193 = arith.addf %189, %192 : vector<32x128xf32>
    %cst_152 = arith.constant 0.000000e+00 : f32
    %194 = vector.broadcast %cst_152 : f32 to vector<32x128xf32>
    %195 = arith.maximumf %193, %194 : vector<32x128xf32>
    %196 = arith.addf %176, %195 : vector<32x128xf32>
    %197 = arith.truncf %196 : vector<32x128xf32> to vector<32x128xbf16>
    %c8 = arith.constant 8 : index
    %c0_153 = arith.constant 0 : index
    %c0_154 = arith.constant 0 : index
    %198 = vector.load %arg2[%c8, %c0_153, %c0_154] : memref<12x32x32xbf16, #tpu.memory_space<vmem>>, vector<1x32x32xbf16>
    %199 = vector.shape_cast %198 : vector<1x32x32xbf16> to vector<32x32xbf16>
    %cst_155 = arith.constant dense<0.000000e+00> : vector<32x128xf32>
    %200 = tpu.matmul %199, %197, %cst_155 {dimension_numbers = #tpu.dot_dimension_numbers<[1], [0], [0], [1], [0, 0, 1, 1], [], []>} : vector<32x32xbf16>, vector<32x128xbf16>, vector<32x128xf32> -> vector<32x128xf32>
    %c8_156 = arith.constant 8 : index
    %c0_157 = arith.constant 0 : index
    %c0_158 = arith.constant 0 : index
    %201 = vector.load %arg3[%c8_156, %c0_157, %c0_158] : memref<12x32x1xf32, #tpu.memory_space<vmem>>, vector<1x32x1xf32>
    %202 = vector.shape_cast %201 : vector<1x32x1xf32> to vector<32x1xf32>
    %203 = vector.broadcast %202 : vector<32x1xf32> to vector<32x128xf32>
    %204 = arith.addf %200, %203 : vector<32x128xf32>
    %205 = arith.truncf %204 : vector<32x128xf32> to vector<32x128xbf16>
    %c9 = arith.constant 9 : index
    %c0_159 = arith.constant 0 : index
    %c0_160 = arith.constant 0 : index
    %206 = vector.load %arg2[%c9, %c0_159, %c0_160] : memref<12x32x32xbf16, #tpu.memory_space<vmem>>, vector<1x32x32xbf16>
    %207 = vector.shape_cast %206 : vector<1x32x32xbf16> to vector<32x32xbf16>
    %cst_161 = arith.constant dense<0.000000e+00> : vector<32x128xf32>
    %208 = tpu.matmul %207, %197, %cst_161 {dimension_numbers = #tpu.dot_dimension_numbers<[1], [0], [0], [1], [0, 0, 1, 1], [], []>} : vector<32x32xbf16>, vector<32x128xbf16>, vector<32x128xf32> -> vector<32x128xf32>
    %c9_162 = arith.constant 9 : index
    %c0_163 = arith.constant 0 : index
    %c0_164 = arith.constant 0 : index
    %209 = vector.load %arg3[%c9_162, %c0_163, %c0_164] : memref<12x32x1xf32, #tpu.memory_space<vmem>>, vector<1x32x1xf32>
    %210 = vector.shape_cast %209 : vector<1x32x1xf32> to vector<32x1xf32>
    %211 = vector.broadcast %210 : vector<32x1xf32> to vector<32x128xf32>
    %212 = arith.addf %208, %211 : vector<32x128xf32>
    %213 = arith.truncf %212 : vector<32x128xf32> to vector<32x128xbf16>
    %214 = tpu.concatenate %205, %213 in 1 : vector<32x128xbf16>, vector<32x128xbf16> -> vector<32x256xbf16>
    %c0_165 = arith.constant 0 : index
    %c0_166 = arith.constant 0 : index
    %215 = vector.load %arg1[%c0_165, %c0_166] : memref<256x128xbf16, #tpu.memory_space<vmem>>, vector<256x128xbf16>
    %cst_167 = arith.constant dense<0.000000e+00> : vector<32x128xf32>
    %216 = tpu.matmul %214, %215, %cst_167 {dimension_numbers = #tpu.dot_dimension_numbers<[1], [0], [0], [1], [0, 0, 1, 1], [], []>} : vector<32x256xbf16>, vector<256x128xbf16>, vector<32x128xf32> -> vector<32x128xf32>
    %217 = arith.addf %196, %216 : vector<32x128xf32>
    %218 = arith.truncf %217 : vector<32x128xf32> to vector<32x128xbf16>
    %c4_168 = arith.constant 4 : index
    %c0_169 = arith.constant 0 : index
    %c0_170 = arith.constant 0 : index
    %219 = vector.load %arg4[%c4_168, %c0_169, %c0_170] : memref<6x32x32xbf16, #tpu.memory_space<vmem>>, vector<1x32x32xbf16>
    %220 = vector.shape_cast %219 : vector<1x32x32xbf16> to vector<32x32xbf16>
    %cst_171 = arith.constant dense<0.000000e+00> : vector<32x128xf32>
    %221 = tpu.matmul %220, %218, %cst_171 {dimension_numbers = #tpu.dot_dimension_numbers<[1], [0], [0], [1], [0, 0, 1, 1], [], []>} : vector<32x32xbf16>, vector<32x128xbf16>, vector<32x128xf32> -> vector<32x128xf32>
    %c4_172 = arith.constant 4 : index
    %c0_173 = arith.constant 0 : index
    %c0_174 = arith.constant 0 : index
    %222 = vector.load %arg5[%c4_172, %c0_173, %c0_174] : memref<6x32x1xf32, #tpu.memory_space<vmem>>, vector<1x32x1xf32>
    %223 = vector.shape_cast %222 : vector<1x32x1xf32> to vector<32x1xf32>
    %224 = vector.broadcast %223 : vector<32x1xf32> to vector<32x128xf32>
    %225 = arith.addf %221, %224 : vector<32x128xf32>
    %c4_175 = arith.constant 4 : index
    %c0_176 = arith.constant 0 : index
    %c0_177 = arith.constant 0 : index
    %226 = vector.load %arg6[%c4_175, %c0_176, %c0_177] : memref<6x32x32xbf16, #tpu.memory_space<vmem>>, vector<1x32x32xbf16>
    %227 = vector.shape_cast %226 : vector<1x32x32xbf16> to vector<32x32xbf16>
    %cst_178 = arith.constant dense<0.000000e+00> : vector<32x128xf32>
    %228 = tpu.matmul %227, %218, %cst_178 {dimension_numbers = #tpu.dot_dimension_numbers<[1], [0], [0], [1], [0, 0, 1, 1], [], []>} : vector<32x32xbf16>, vector<32x128xbf16>, vector<32x128xf32> -> vector<32x128xf32>
    %c4_179 = arith.constant 4 : index
    %c0_180 = arith.constant 0 : index
    %c0_181 = arith.constant 0 : index
    %229 = vector.load %arg7[%c4_179, %c0_180, %c0_181] : memref<6x32x1xf32, #tpu.memory_space<vmem>>, vector<1x32x1xf32>
    %230 = vector.shape_cast %229 : vector<1x32x1xf32> to vector<32x1xf32>
    %231 = vector.broadcast %230 : vector<32x1xf32> to vector<32x128xf32>
    %232 = arith.addf %228, %231 : vector<32x128xf32>
    %cst_182 = arith.constant 0.000000e+00 : f32
    %233 = vector.broadcast %cst_182 : f32 to vector<32x128xf32>
    %234 = arith.maximumf %232, %233 : vector<32x128xf32>
    %c4_183 = arith.constant 4 : index
    %c0_184 = arith.constant 0 : index
    %c0_185 = arith.constant 0 : index
    %235 = vector.load %arg8[%c4_183, %c0_184, %c0_185] : memref<6x32x32xbf16, #tpu.memory_space<vmem>>, vector<1x32x32xbf16>
    %236 = vector.shape_cast %235 : vector<1x32x32xbf16> to vector<32x32xbf16>
    %237 = arith.truncf %234 : vector<32x128xf32> to vector<32x128xbf16>
    %cst_186 = arith.constant dense<0.000000e+00> : vector<32x128xf32>
    %238 = tpu.matmul %236, %237, %cst_186 {dimension_numbers = #tpu.dot_dimension_numbers<[1], [0], [0], [1], [0, 0, 1, 1], [], []>} : vector<32x32xbf16>, vector<32x128xbf16>, vector<32x128xf32> -> vector<32x128xf32>
    %c4_187 = arith.constant 4 : index
    %c0_188 = arith.constant 0 : index
    %c0_189 = arith.constant 0 : index
    %239 = vector.load %arg9[%c4_187, %c0_188, %c0_189] : memref<6x32x1xf32, #tpu.memory_space<vmem>>, vector<1x32x1xf32>
    %240 = vector.shape_cast %239 : vector<1x32x1xf32> to vector<32x1xf32>
    %241 = vector.broadcast %240 : vector<32x1xf32> to vector<32x128xf32>
    %242 = arith.addf %238, %241 : vector<32x128xf32>
    %cst_190 = arith.constant 0.000000e+00 : f32
    %243 = vector.broadcast %cst_190 : f32 to vector<32x128xf32>
    %244 = arith.maximumf %242, %243 : vector<32x128xf32>
    %245 = arith.addf %225, %244 : vector<32x128xf32>
    %246 = arith.truncf %245 : vector<32x128xf32> to vector<32x128xbf16>
    %c10 = arith.constant 10 : index
    %c0_191 = arith.constant 0 : index
    %c0_192 = arith.constant 0 : index
    %247 = vector.load %arg2[%c10, %c0_191, %c0_192] : memref<12x32x32xbf16, #tpu.memory_space<vmem>>, vector<1x32x32xbf16>
    %248 = vector.shape_cast %247 : vector<1x32x32xbf16> to vector<32x32xbf16>
    %cst_193 = arith.constant dense<0.000000e+00> : vector<32x128xf32>
    %249 = tpu.matmul %248, %246, %cst_193 {dimension_numbers = #tpu.dot_dimension_numbers<[1], [0], [0], [1], [0, 0, 1, 1], [], []>} : vector<32x32xbf16>, vector<32x128xbf16>, vector<32x128xf32> -> vector<32x128xf32>
    %c10_194 = arith.constant 10 : index
    %c0_195 = arith.constant 0 : index
    %c0_196 = arith.constant 0 : index
    %250 = vector.load %arg3[%c10_194, %c0_195, %c0_196] : memref<12x32x1xf32, #tpu.memory_space<vmem>>, vector<1x32x1xf32>
    %251 = vector.shape_cast %250 : vector<1x32x1xf32> to vector<32x1xf32>
    %252 = vector.broadcast %251 : vector<32x1xf32> to vector<32x128xf32>
    %253 = arith.addf %249, %252 : vector<32x128xf32>
    %254 = arith.truncf %253 : vector<32x128xf32> to vector<32x128xbf16>
    %c11 = arith.constant 11 : index
    %c0_197 = arith.constant 0 : index
    %c0_198 = arith.constant 0 : index
    %255 = vector.load %arg2[%c11, %c0_197, %c0_198] : memref<12x32x32xbf16, #tpu.memory_space<vmem>>, vector<1x32x32xbf16>
    %256 = vector.shape_cast %255 : vector<1x32x32xbf16> to vector<32x32xbf16>
    %cst_199 = arith.constant dense<0.000000e+00> : vector<32x128xf32>
    %257 = tpu.matmul %256, %246, %cst_199 {dimension_numbers = #tpu.dot_dimension_numbers<[1], [0], [0], [1], [0, 0, 1, 1], [], []>} : vector<32x32xbf16>, vector<32x128xbf16>, vector<32x128xf32> -> vector<32x128xf32>
    %c11_200 = arith.constant 11 : index
    %c0_201 = arith.constant 0 : index
    %c0_202 = arith.constant 0 : index
    %258 = vector.load %arg3[%c11_200, %c0_201, %c0_202] : memref<12x32x1xf32, #tpu.memory_space<vmem>>, vector<1x32x1xf32>
    %259 = vector.shape_cast %258 : vector<1x32x1xf32> to vector<32x1xf32>
    %260 = vector.broadcast %259 : vector<32x1xf32> to vector<32x128xf32>
    %261 = arith.addf %257, %260 : vector<32x128xf32>
    %262 = arith.truncf %261 : vector<32x128xf32> to vector<32x128xbf16>
    %263 = tpu.concatenate %254, %262 in 1 : vector<32x128xbf16>, vector<32x128xbf16> -> vector<32x256xbf16>
    %c0_203 = arith.constant 0 : index
    %c0_204 = arith.constant 0 : index
    %264 = vector.load %arg1[%c0_203, %c0_204] : memref<256x128xbf16, #tpu.memory_space<vmem>>, vector<256x128xbf16>
    %cst_205 = arith.constant dense<0.000000e+00> : vector<32x128xf32>
    %265 = tpu.matmul %263, %264, %cst_205 {dimension_numbers = #tpu.dot_dimension_numbers<[1], [0], [0], [1], [0, 0, 1, 1], [], []>} : vector<32x256xbf16>, vector<256x128xbf16>, vector<32x128xf32> -> vector<32x128xf32>
    %266 = arith.addf %245, %265 : vector<32x128xf32>
    %267 = arith.truncf %266 : vector<32x128xf32> to vector<32x128xbf16>
    %c5_206 = arith.constant 5 : index
    %c0_207 = arith.constant 0 : index
    %c0_208 = arith.constant 0 : index
    %268 = vector.load %arg4[%c5_206, %c0_207, %c0_208] : memref<6x32x32xbf16, #tpu.memory_space<vmem>>, vector<1x32x32xbf16>
    %269 = vector.shape_cast %268 : vector<1x32x32xbf16> to vector<32x32xbf16>
    %cst_209 = arith.constant dense<0.000000e+00> : vector<32x128xf32>
    %270 = tpu.matmul %269, %267, %cst_209 {dimension_numbers = #tpu.dot_dimension_numbers<[1], [0], [0], [1], [0, 0, 1, 1], [], []>} : vector<32x32xbf16>, vector<32x128xbf16>, vector<32x128xf32> -> vector<32x128xf32>
    %c5_210 = arith.constant 5 : index
    %c0_211 = arith.constant 0 : index
    %c0_212 = arith.constant 0 : index
    %271 = vector.load %arg5[%c5_210, %c0_211, %c0_212] : memref<6x32x1xf32, #tpu.memory_space<vmem>>, vector<1x32x1xf32>
    %272 = vector.shape_cast %271 : vector<1x32x1xf32> to vector<32x1xf32>
    %273 = vector.broadcast %272 : vector<32x1xf32> to vector<32x128xf32>
    %274 = arith.addf %270, %273 : vector<32x128xf32>
    %c5_213 = arith.constant 5 : index
    %c0_214 = arith.constant 0 : index
    %c0_215 = arith.constant 0 : index
    %275 = vector.load %arg6[%c5_213, %c0_214, %c0_215] : memref<6x32x32xbf16, #tpu.memory_space<vmem>>, vector<1x32x32xbf16>
    %276 = vector.shape_cast %275 : vector<1x32x32xbf16> to vector<32x32xbf16>
    %cst_216 = arith.constant dense<0.000000e+00> : vector<32x128xf32>
    %277 = tpu.matmul %276, %267, %cst_216 {dimension_numbers = #tpu.dot_dimension_numbers<[1], [0], [0], [1], [0, 0, 1, 1], [], []>} : vector<32x32xbf16>, vector<32x128xbf16>, vector<32x128xf32> -> vector<32x128xf32>
    %c5_217 = arith.constant 5 : index
    %c0_218 = arith.constant 0 : index
    %c0_219 = arith.constant 0 : index
    %278 = vector.load %arg7[%c5_217, %c0_218, %c0_219] : memref<6x32x1xf32, #tpu.memory_space<vmem>>, vector<1x32x1xf32>
    %279 = vector.shape_cast %278 : vector<1x32x1xf32> to vector<32x1xf32>
    %280 = vector.broadcast %279 : vector<32x1xf32> to vector<32x128xf32>
    %281 = arith.addf %277, %280 : vector<32x128xf32>
    %cst_220 = arith.constant 0.000000e+00 : f32
    %282 = vector.broadcast %cst_220 : f32 to vector<32x128xf32>
    %283 = arith.maximumf %281, %282 : vector<32x128xf32>
    %c5_221 = arith.constant 5 : index
    %c0_222 = arith.constant 0 : index
    %c0_223 = arith.constant 0 : index
    %284 = vector.load %arg8[%c5_221, %c0_222, %c0_223] : memref<6x32x32xbf16, #tpu.memory_space<vmem>>, vector<1x32x32xbf16>
    %285 = vector.shape_cast %284 : vector<1x32x32xbf16> to vector<32x32xbf16>
    %286 = arith.truncf %283 : vector<32x128xf32> to vector<32x128xbf16>
    %cst_224 = arith.constant dense<0.000000e+00> : vector<32x128xf32>
    %287 = tpu.matmul %285, %286, %cst_224 {dimension_numbers = #tpu.dot_dimension_numbers<[1], [0], [0], [1], [0, 0, 1, 1], [], []>} : vector<32x32xbf16>, vector<32x128xbf16>, vector<32x128xf32> -> vector<32x128xf32>
    %c5_225 = arith.constant 5 : index
    %c0_226 = arith.constant 0 : index
    %c0_227 = arith.constant 0 : index
    %288 = vector.load %arg9[%c5_225, %c0_226, %c0_227] : memref<6x32x1xf32, #tpu.memory_space<vmem>>, vector<1x32x1xf32>
    %289 = vector.shape_cast %288 : vector<1x32x1xf32> to vector<32x1xf32>
    %290 = vector.broadcast %289 : vector<32x1xf32> to vector<32x128xf32>
    %291 = arith.addf %287, %290 : vector<32x128xf32>
    %cst_228 = arith.constant 0.000000e+00 : f32
    %292 = vector.broadcast %cst_228 : f32 to vector<32x128xf32>
    %293 = arith.maximumf %291, %292 : vector<32x128xf32>
    %294 = arith.addf %274, %293 : vector<32x128xf32>
    %c0_229 = arith.constant 0 : index
    %c0_230 = arith.constant 0 : index
    %295 = vector.load %arg10[%c0_229, %c0_230] : memref<32x128xf32, #tpu.memory_space<vmem>>, vector<32x128xf32>
    tpu.vector_store %arg10[%c0_229, %c0_230], %294 {strides = array<i32>} : memref<32x128xf32, #tpu.memory_space<vmem>>, vector<32x128xf32>,
    return
  }
}

</mosaic_0001>

<llo_original>
// kernel: tpu_custom_call.1
$region0: #{tpu_custom_call.1}
  #allocation0 [shape = 'u32[]', space=smem, size = 0x4, offset = 0x4, fixed_abs, tag = 'smem constant byte address 0x4 - core index']
  #allocation1 [shape = 'u32[144,128]{1,0:T(1,128)}', space=vmem, size = 0x12000, scoped, tag = 'internal scratch']
  %s0 = inlined_call_operand.vmem [shape: f32[32,128], index: 0, kind: input, shape index: {}]
  %s1 = inlined_call_operand.vmem [shape: bf16[256,128], index: 1, kind: input, shape index: {}]
  %s2 = inlined_call_operand.vmem [shape: bf16[12,32,32], index: 2, kind: input, shape index: {}]
  %s3 = inlined_call_operand.vmem [shape: f32[12,32,1], index: 3, kind: input, shape index: {}]
  %s4 = inlined_call_operand.vmem [shape: bf16[6,32,32], index: 4, kind: input, shape index: {}]
  %s5 = inlined_call_operand.vmem [shape: f32[6,32,1], index: 5, kind: input, shape index: {}]
  %s6 = inlined_call_operand.vmem [shape: bf16[6,32,32], index: 6, kind: input, shape index: {}]
  %s7 = inlined_call_operand.vmem [shape: f32[6,32,1], index: 7, kind: input, shape index: {}]
  %s8 = inlined_call_operand.vmem [shape: bf16[6,32,32], index: 8, kind: input, shape index: {}]
  %s9 = inlined_call_operand.vmem [shape: f32[6,32,1], index: 9, kind: input, shape index: {}]
  %s10 = inlined_call_operand.hbm [shape: f32[32,128], index: 10, kind: output, shape index: {}]
  %s11 = sld [smem:[#allocation0]]
  $region50: #{tpu_custom_call.1} parent=0
    _
  %s13 = ssub.s32 1, %s11
  %s14 = scalar_select 0, %s13, %s11
  $region1: #{tpu_custom_call.1} parent=0
    #allocation2 [shape = 'u8[16384]{0}', space=vmem, size = 0x4000, scoped, tag = 'output window, operand 0, single buffered']
    #allocation3 [shape = 's32[1]{0}', space=sflag, size = 0x4, scoped, tag = 'scoped memory for tpu_custom_call.1']
    %15 = vsyncpa [#allocation3], 0
    // Predicated region
    $region2: #{tpu_custom_call.1} parent=1 // pred_check
      _
    $region3: #{tpu_custom_call.1} parent=1 // pred_check_branch
      %17 = sbr.rel (0) target = $region5
    $region4: #{tpu_custom_call.1} parent=1 // pred_region
      _
    $region5: #{tpu_custom_call.1} parent=1 // pred_fallthru
      _
    // Predicated region
    $region6: #{tpu_custom_call.1} parent=1 // pred_check
      _
    $region7: #{tpu_custom_call.1} parent=1 // pred_check_branch
      %19 = sbr.rel (0) target = $region9
    $region8: #{tpu_custom_call.1} parent=1 // pred_region
      _
    $region9: #{tpu_custom_call.1} parent=1 // pred_fallthru
      _
    // Predicated region
    $region10: #{tpu_custom_call.1} parent=1 // pred_check
      _
    $region11: #{tpu_custom_call.1} parent=1 // pred_check_branch
      %21 = sbr.rel (0) target = $region13
    $region12: #{tpu_custom_call.1} parent=1 // pred_region
      _
    $region13: #{tpu_custom_call.1} parent=1 // pred_fallthru
      _
    // Predicated region
    $region14: #{tpu_custom_call.1} parent=1 // pred_check
      _
    $region15: #{tpu_custom_call.1} parent=1 // pred_check_branch
      %23 = sbr.rel (0) target = $region17
    $region16: #{tpu_custom_call.1} parent=1 // pred_region
      _
    $region17: #{tpu_custom_call.1} parent=1 // pred_fallthru
      _
    // Predicated region
    $region18: #{tpu_custom_call.1} parent=1 // pred_check
      _
    $region19: #{tpu_custom_call.1} parent=1 // pred_check_branch
      %25 = sbr.rel (0) target = $region21
    $region20: #{tpu_custom_call.1} parent=1 // pred_region
      _
    $region21: #{tpu_custom_call.1} parent=1 // pred_fallthru
      _
    // Predicated region
    $region22: #{tpu_custom_call.1} parent=1 // pred_check
      _
    $region23: #{tpu_custom_call.1} parent=1 // pred_check_branch
      %27 = sbr.rel (0) target = $region25
    $region24: #{tpu_custom_call.1} parent=1 // pred_region
      _
    $region25: #{tpu_custom_call.1} parent=1 // pred_fallthru
      _
    // Predicated region
    $region26: #{tpu_custom_call.1} parent=1 // pred_check
      _
    $region27: #{tpu_custom_call.1} parent=1 // pred_check_branch
      %29 = sbr.rel (0) target = $region29
    $region28: #{tpu_custom_call.1} parent=1 // pred_region
      _
    $region29: #{tpu_custom_call.1} parent=1 // pred_fallthru
      _
    // Predicated region
    $region30: #{tpu_custom_call.1} parent=1 // pred_check
      _
    $region31: #{tpu_custom_call.1} parent=1 // pred_check_branch
      %31 = sbr.rel (0) target = $region33
    $region32: #{tpu_custom_call.1} parent=1 // pred_region
      _
    $region33: #{tpu_custom_call.1} parent=1 // pred_fallthru
      _
    // Predicated region
    $region34: #{tpu_custom_call.1} parent=1 // pred_check
      _
    $region35: #{tpu_custom_call.1} parent=1 // pred_check_branch
      %33 = sbr.rel (0) target = $region37
    $region36: #{tpu_custom_call.1} parent=1 // pred_region
      _
    $region37: #{tpu_custom_call.1} parent=1 // pred_fallthru
      _
    // Predicated region
    $region38: #{tpu_custom_call.1} parent=1 // pred_check
      _
    $region39: #{tpu_custom_call.1} parent=1 // pred_check_branch
      %35 = sbr.rel (0) target = $region41
    $region40: #{tpu_custom_call.1} parent=1 // pred_region
      _
    $region41: #{tpu_custom_call.1} parent=1 // pred_fallthru
      _
    %v37 = vld [vmem:[%s0] sm:$0xff]
    %v38 = vld [vmem:[%s0 + $0x8] sm:$0xff]
    %v39 = vld [vmem:[%s0 + $0x10] sm:$0xff]
    %v40 = vld [vmem:[%s0 + $0x18] sm:$0xff]
    %v41 = vpack.c.bf16 %v38, %v37
    %v42 = vpack.c.bf16 %v40, %v39
    %v43 = vld [vmem:[%s2] sm:$0xf]
    %v44 = vld [vmem:[%s2 + $0x4] sm:$0xf]
    %v45 = vld [vmem:[%s2 + $0x8] sm:$0xf]
    %v46 = vld [vmem:[%s2 + $0xc] sm:$0xf]
    %v47 = vld [vmem:[%s3] sm:$0xff]
    %v48 = vld [vmem:[%s3 + $0x8] sm:$0xff]
    %v49 = vld [vmem:[%s3 + $0x10] sm:$0xff]
    %v50 = vld [vmem:[%s3 + $0x18] sm:$0xff]
    %52 = vset.pattern.permute.xlu0 0
    %53 = vperm.xlu0 %52, %v47
    %v54 = vpop.permute.xlu0 %53
    %57 = vset.pattern.permute.xlu0 0
    %58 = vperm.xlu0 %57, %v48
    %v59 = vpop.permute.xlu0 %58
    %62 = vset.pattern.permute.xlu0 0
    %63 = vperm.xlu0 %62, %v49
    %v64 = vpop.permute.xlu0 %63
    %67 = vset.pattern.permute.xlu0 0
    %68 = vperm.xlu0 %67, %v50
    %v69 = vpop.permute.xlu0 %68
    %v75 = vunpack.c.l.b16 %v43
    %v76 = vunpack.c.l.b16 %v44
    %v77 = vunpack.c.l.b16 %v45
    %v78 = vunpack.c.l.b16 %v46
    %v79 = vpack.c.b16 %v76, %v75
    %v80 = vpack.c.b16 %v78, %v77
    %vm81 = vcmask 261120
    %v83 = vsel %vm81, %v79, 0
    %v86 = vsel %vm81, %v80, 0
    %88 = vmatprep.subr.bf16.mxu0 0
    %89 = vmatpush1.bf16.msra.mxu0 %v41
    %90 = vmatprep.subr.bf16.mxu0 0
    %91 = vmatpush1.bf16.msra.mxu0 %v42
    %92 = vmatprep.subr.bf16.mxu0 0
    %93 = vmatpush1.bf16.msra.mxu0 0
    %94 = vmatprep.subr.bf16.mxu0 0
    %95 = vmatpush1.bf16.msra.mxu0 0
    %96 = vmatprep.subr.bf16.mxu0 0
    %97 = vmatpush1.bf16.msra.mxu0 0
    %98 = vmatprep.subr.bf16.mxu0 0
    %99 = vmatpush1.bf16.msra.mxu0 0
    %100 = vmatprep.subr.bf16.mxu0 0
    %101 = vmatpush1.bf16.msra.mxu0 0
    %102 = vmatprep.subr.bf16.mxu0 0
    %103 = vmatpush1.bf16.msra.mxu0 0
    %104 = vmatprep.subr.bf16.mxu0 0
    %105 = vmatpush1.bf16.msra.mxu0 0
    %106 = vmatprep.subr.bf16.mxu0 0
    %107 = vmatpush1.bf16.msra.mxu0 0
    %108 = vmatprep.subr.bf16.mxu0 0
    %109 = vmatpush1.bf16.msra.mxu0 0
    %110 = vmatprep.subr.bf16.mxu0 0
    %111 = vmatpush1.bf16.msra.mxu0 0
    %112 = vmatprep.subr.bf16.mxu0 0
    %113 = vmatpush1.bf16.msra.mxu0 0
    %114 = vmatprep.subr.bf16.mxu0 0
    %115 = vmatpush1.bf16.msra.mxu0 0
    %116 = vmatprep.subr.bf16.mxu0 0
    %117 = vmatpush1.bf16.msra.mxu0 0
    %118 = vmatprep.subr.bf16.mxu0 0
    %119 = vmatpush1.bf16.msra.mxu0 0
    %120 = vmatprep.mubr.bf16.mxu0 0
    %121 = vmatmul.mubr.bf16.gmra.mrb[0].mxu0 %v83
    %v122 = vpop.f32.mrb[0].mxu0
    %v123 = vadd.f32 %v54, %v122
    %v124 = vpop.f32.mrb[0].mxu0
    %v125 = vpop.f32.mrb[0].mxu0
    %v126 = vadd.f32 %v59, %v125
    %v127 = vpop.f32.mrb[0].mxu0
    %128 = vmatprep.mubr.bf16.mxu0 0
    %129 = vmatmul.mubr.bf16.gmra.mrb[0].mxu0 %v86
    %v130 = vpop.f32.mrb[0].mxu0
    %v131 = vadd.f32 %v64, %v130
    %v132 = vpop.f32.mrb[0].mxu0
    %v133 = vpop.f32.mrb[0].mxu0
    %v134 = vadd.f32 %v69, %v133
    %v135 = vpop.f32.mrb[0].mxu0
    %136 = vdwg.mxu0
    %v137 = vpack.c.bf16 %v126, %v123
    %v138 = vpack.c.bf16 %v134, %v131
    %s139 = scalar_lea.vmem %s2, 16
    %v140 = vld [vmem:[%s139] sm:$0xf]
    %v141 = vld [vmem:[%s139 + $0x4] sm:$0xf]
    %v142 = vld [vmem:[%s139 + $0x8] sm:$0xf]
    %v143 = vld [vmem:[%s139 + $0xc] sm:$0xf]
    %s144 = scalar_lea.vmem %s3, 32
    %v145 = vld [vmem:[%s144] sm:$0xff]
    %v146 = vld [vmem:[%s144 + $0x8] sm:$0xff]
    %v147 = vld [vmem:[%s144 + $0x10] sm:$0xff]
    %v148 = vld [vmem:[%s144 + $0x18] sm:$0xff]
    %150 = vset.pattern.permute.xlu0 0
    %151 = vperm.xlu0 %150, %v145
    %v152 = vpop.permute.xlu0 %151
    %155 = vset.pattern.permute.xlu0 0
    %156 = vperm.xlu0 %155, %v146
    %v157 = vpop.permute.xlu0 %156
    %160 = vset.pattern.permute.xlu0 0
    %161 = vperm.xlu0 %160, %v147
    %v162 = vpop.permute.xlu0 %161
    %165 = vset.pattern.permute.xlu0 0
    %166 = vperm.xlu0 %165, %v148
    %v167 = vpop.permute.xlu0 %166
    %v173 = vunpack.c.l.b16 %v140
    %v174 = vunpack.c.l.b16 %v141
    %v175 = vunpack.c.l.b16 %v142
    %v176 = vunpack.c.l.b16 %v143
    %v177 = vpack.c.b16 %v174, %v173
    %v178 = vpack.c.b16 %v176, %v175
    %v180 = vsel %vm81, %v177, 0
    %v183 = vsel %vm81, %v178, 0
    %185 = vmatprep.subr.bf16.mxu0 0
    %186 = vmatpush1.bf16.msra.mxu0 %v41
    %187 = vmatprep.subr.bf16.mxu0 0
    %188 = vmatpush1.bf16.msra.mxu0 %v42
    %189 = vmatprep.subr.bf16.mxu0 0
    %190 = vmatpush1.bf16.msra.mxu0 0
    %191 = vmatprep.subr.bf16.mxu0 0
    %192 = vmatpush1.bf16.msra.mxu0 0
    %193 = vmatprep.subr.bf16.mxu0 0
    %194 = vmatpush1.bf16.msra.mxu0 0
    %195 = vmatprep.subr.bf16.mxu0 0
    %196 = vmatpush1.bf16.msra.mxu0 0
    %197 = vmatprep.subr.bf16.mxu0 0
    %198 = vmatpush1.bf16.msra.mxu0 0
    %199 = vmatprep.subr.bf16.mxu0 0
    %200 = vmatpush1.bf16.msra.mxu0 0
    %201 = vmatprep.subr.bf16.mxu0 0
    %202 = vmatpush1.bf16.msra.mxu0 0
    %203 = vmatprep.subr.bf16.mxu0 0
    %204 = vmatpush1.bf16.msra.mxu0 0
    %205 = vmatprep.subr.bf16.mxu0 0
    %206 = vmatpush1.bf16.msra.mxu0 0
    %207 = vmatprep.subr.bf16.mxu0 0
    %208 = vmatpush1.bf16.msra.mxu0 0
    %209 = vmatprep.subr.bf16.mxu0 0
    %210 = vmatpush1.bf16.msra.mxu0 0
    %211 = vmatprep.subr.bf16.mxu0 0
    %212 = vmatpush1.bf16.msra.mxu0 0
    %213 = vmatprep.subr.bf16.mxu0 0
    %214 = vmatpush1.bf16.msra.mxu0 0
    %215 = vmatprep.subr.bf16.mxu0 0
    %216 = vmatpush1.bf16.msra.mxu0 0
    %217 = vmatprep.mubr.bf16.mxu0 0
    %218 = vmatmul.mubr.bf16.gmra.mrb[0].mxu0 %v180
    %v219 = vpop.f32.mrb[0].mxu0
    %v220 = vadd.f32 %v152, %v219
    %v221 = vpop.f32.mrb[0].mxu0
    %v222 = vpop.f32.mrb[0].mxu0
    %v223 = vadd.f32 %v157, %v222
    %v224 = vpop.f32.mrb[0].mxu0
    %225 = vmatprep.mubr.bf16.mxu0 0
    %226 = vmatmul.mubr.bf16.gmra.mrb[0].mxu0 %v183
    %v227 = vpop.f32.mrb[0].mxu0
    %v228 = vadd.f32 %v162, %v227
    %v229 = vpop.f32.mrb[0].mxu0
    %v230 = vpop.f32.mrb[0].mxu0
    %v231 = vadd.f32 %v167, %v230
    %v232 = vpop.f32.mrb[0].mxu0
    %233 = vdwg.mxu0
    %v234 = vpack.c.bf16 %v223, %v220
    %v235 = vpack.c.bf16 %v231, %v228
    %v236 = vld [vmem:[%s1] sm:$0xf]
    %v237 = vld [vmem:[%s1 + $0x4] sm:$0xf]
    %v238 = vld [vmem:[%s1 + $0x8] sm:$0xf]
    %v239 = vld [vmem:[%s1 + $0xc] sm:$0xf]
    %v240 = vld [vmem:[%s1 + $0x10] sm:$0xf]
    %v241 = vld [vmem:[%s1 + $0x14] sm:$0xf]
    %v242 = vld [vmem:[%s1 + $0x18] sm:$0xf]
    %v243 = vld [vmem:[%s1 + $0x1c] sm:$0xf]
    %v244 = vld [vmem:[%s1 + $0x20] sm:$0xf]
    %v245 = vld [vmem:[%s1 + $0x24] sm:$0xf]
    %v246 = vld [vmem:[%s1 + $0x28] sm:$0xf]
    %v247 = vld [vmem:[%s1 + $0x2c] sm:$0xf]
    %v248 = vld [vmem:[%s1 + $0x30] sm:$0xf]
    %v249 = vld [vmem:[%s1 + $0x34] sm:$0xf]
    %v250 = vld [vmem:[%s1 + $0x38] sm:$0xf]
    %v251 = vld [vmem:[%s1 + $0x3c] sm:$0xf]
    %v252 = vld [vmem:[%s1 + $0x40] sm:$0xf]
    %v253 = vld [vmem:[%s1 + $0x44] sm:$0xf]
    %v254 = vld [vmem:[%s1 + $0x48] sm:$0xf]
    %v255 = vld [vmem:[%s1 + $0x4c] sm:$0xf]
    %v256 = vld [vmem:[%s1 + $0x50] sm:$0xf]
    %v257 = vld [vmem:[%s1 + $0x54] sm:$0xf]
    %v258 = vld [vmem:[%s1 + $0x58] sm:$0xf]
    %v259 = vld [vmem:[%s1 + $0x5c] sm:$0xf]
    %v260 = vld [vmem:[%s1 + $0x60] sm:$0xf]
    %v261 = vld [vmem:[%s1 + $0x64] sm:$0xf]
    %v262 = vld [vmem:[%s1 + $0x68] sm:$0xf]
    %v263 = vld [vmem:[%s1 + $0x6c] sm:$0xf]
    %v264 = vld [vmem:[%s1 + $0x70] sm:$0xf]
    %v265 = vld [vmem:[%s1 + $0x74] sm:$0xf]
    %v266 = vld [vmem:[%s1 + $0x78] sm:$0xf]
    %v267 = vld [vmem:[%s1 + $0x7c] sm:$0xf]
    %v300 = vunpack.c.l.b16 %v236
    %v301 = vunpack.c.l.b16 %v237
    %v302 = vunpack.c.l.b16 %v238
    %v303 = vunpack.c.l.b16 %v239
    %v304 = vunpack.c.l.b16 %v240
    %v305 = vunpack.c.l.b16 %v241
    %v306 = vunpack.c.l.b16 %v242
    %v307 = vunpack.c.l.b16 %v243
    %v308 = vunpack.c.l.b16 %v244
    %v309 = vunpack.c.l.b16 %v245
    %v310 = vunpack.c.l.b16 %v246
    %v311 = vunpack.c.l.b16 %v247
    %v312 = vunpack.c.l.b16 %v248
    %v313 = vunpack.c.l.b16 %v249
    %v314 = vunpack.c.l.b16 %v250
    %v315 = vunpack.c.l.b16 %v251
    %v316 = vunpack.c.l.b16 %v252
    %v317 = vunpack.c.l.b16 %v253
    %v318 = vunpack.c.l.b16 %v254
    %v319 = vunpack.c.l.b16 %v255
    %v320 = vunpack.c.l.b16 %v256
    %v321 = vunpack.c.l.b16 %v257
    %v322 = vunpack.c.l.b16 %v258
    %v323 = vunpack.c.l.b16 %v259
    %v324 = vunpack.c.l.b16 %v260
    %v325 = vunpack.c.l.b16 %v261
    %v326 = vunpack.c.l.b16 %v262
    %v327 = vunpack.c.l.b16 %v263
    %v328 = vunpack.c.l.b16 %v264
    %v329 = vunpack.c.l.b16 %v265
    %v330 = vunpack.c.l.b16 %v266
    %v331 = vunpack.c.l.b16 %v267
    %v332 = vpack.c.b16 %v301, %v300
    %v333 = vpack.c.b16 %v303, %v302
    %v334 = vpack.c.b16 %v305, %v304
    %v335 = vpack.c.b16 %v307, %v306
    %v336 = vpack.c.b16 %v309, %v308
    %v337 = vpack.c.b16 %v311, %v310
    %v338 = vpack.c.b16 %v313, %v312
    %v339 = vpack.c.b16 %v315, %v314
    %v340 = vpack.c.b16 %v317, %v316
    %v341 = vpack.c.b16 %v319, %v318
    %v342 = vpack.c.b16 %v321, %v320
    %v343 = vpack.c.b16 %v323, %v322
    %v344 = vpack.c.b16 %v325, %v324
    %v345 = vpack.c.b16 %v327, %v326
    %v346 = vpack.c.b16 %v329, %v328
    %v347 = vpack.c.b16 %v331, %v330
    %364 = vmatprep.subr.bf16.mxu0 0
    %365 = vmatpush1.bf16.msra.mxu0 %v332
    %366 = vmatprep.subr.bf16.mxu0 0
    %367 = vmatpush1.bf16.msra.mxu0 %v333
    %368 = vmatprep.subr.bf16.mxu0 0
    %369 = vmatpush1.bf16.msra.mxu0 %v334
    %370 = vmatprep.subr.bf16.mxu0 0
    %371 = vmatpush1.bf16.msra.mxu0 %v335
    %372 = vmatprep.subr.bf16.mxu0 0
    %373 = vmatpush1.bf16.msra.mxu0 %v336
    %374 = vmatprep.subr.bf16.mxu0 0
    %375 = vmatpush1.bf16.msra.mxu0 %v337
    %376 = vmatprep.subr.bf16.mxu0 0
    %377 = vmatpush1.bf16.msra.mxu0 %v338
    %378 = vmatprep.subr.bf16.mxu0 0
    %379 = vmatpush1.bf16.msra.mxu0 %v339
    %380 = vmatprep.subr.bf16.mxu0 0
    %381 = vmatpush1.bf16.msra.mxu0 %v340
    %382 = vmatprep.subr.bf16.mxu0 0
    %383 = vmatpush1.bf16.msra.mxu0 %v341
    %384 = vmatprep.subr.bf16.mxu0 0
    %385 = vmatpush1.bf16.msra.mxu0 %v342
    %386 = vmatprep.subr.bf16.mxu0 0
    %387 = vmatpush1.bf16.msra.mxu0 %v343
    %388 = vmatprep.subr.bf16.mxu0 0
    %389 = vmatpush1.bf16.msra.mxu0 %v344
    %390 = vmatprep.subr.bf16.mxu0 0
    %391 = vmatpush1.bf16.msra.mxu0 %v345
    %392 = vmatprep.subr.bf16.mxu0 0
    %393 = vmatpush1.bf16.msra.mxu0 %v346
    %394 = vmatprep.subr.bf16.mxu0 0
    %395 = vmatpush1.bf16.msra.mxu0 %v347
    %396 = vmatprep.mubr.bf16.mxu0 %v234
    %397 = vmatmul.mubr.bf16.gmra.mrb[0].mxu0 %v137
    %v398 = vpop.f32.mrb[0].mxu0
    %v399 = vadd.f32 0.0, %v398
    %v400 = vpop.f32.mrb[0].mxu0
    %v401 = vpop.f32.mrb[0].mxu0
    %v402 = vadd.f32 0.0, %v401
    %v403 = vpop.f32.mrb[0].mxu0
    %404 = vmatprep.mubr.bf16.mxu0 %v235
    %405 = vmatmul.mubr.bf16.gmra.mrb[0].mxu0 %v138
    %v406 = vpop.f32.mrb[0].mxu0
    %v407 = vadd.f32 0.0, %v406
    %v408 = vpop.f32.mrb[0].mxu0
    %v409 = vpop.f32.mrb[0].mxu0
    %v410 = vadd.f32 0.0, %v409
    %v411 = vpop.f32.mrb[0].mxu0
    %412 = vdwg.mxu0
    %v413 = vadd.f32 %v37, %v399
    %v414 = vadd.f32 %v38, %v402
    %v415 = vadd.f32 %v39, %v407
    %v416 = vadd.f32 %v40, %v410
    %v417 = vpack.c.bf16 %v414, %v413
    %v418 = vpack.c.bf16 %v416, %v415
    %v419 = vld [vmem:[%s4] sm:$0xf]
    %v420 = vld [vmem:[%s4 + $0x4] sm:$0xf]
    %v421 = vld [vmem:[%s4 + $0x8] sm:$0xf]
    %v422 = vld [vmem:[%s4 + $0xc] sm:$0xf]
    %v423 = vld [vmem:[%s5] sm:$0xff]
    %v424 = vld [vmem:[%s5 + $0x8] sm:$0xff]
    %v425 = vld [vmem:[%s5 + $0x10] sm:$0xff]
    %v426 = vld [vmem:[%s5 + $0x18] sm:$0xff]
    %428 = vset.pattern.permute.xlu0 0
    %429 = vperm.xlu0 %428, %v423
    %v430 = vpop.permute.xlu0 %429
    %433 = vset.pattern.permute.xlu0 0
    %434 = vperm.xlu0 %433, %v424
    %v435 = vpop.permute.xlu0 %434
    %438 = vset.pattern.permute.xlu0 0
    %439 = vperm.xlu0 %438, %v425
    %v440 = vpop.permute.xlu0 %439
    %443 = vset.pattern.permute.xlu0 0
    %444 = vperm.xlu0 %443, %v426
    %v445 = vpop.permute.xlu0 %444
    %v451 = vunpack.c.l.b16 %v419
    %v452 = vunpack.c.l.b16 %v420
    %v453 = vunpack.c.l.b16 %v421
    %v454 = vunpack.c.l.b16 %v422
    %v455 = vpack.c.b16 %v452, %v451
    %v456 = vpack.c.b16 %v454, %v453
    %v458 = vsel %vm81, %v455, 0
    %v461 = vsel %vm81, %v456, 0
    %463 = vmatprep.subr.bf16.mxu0 0
    %464 = vmatpush1.bf16.msra.mxu0 %v417
    %465 = vmatprep.subr.bf16.mxu0 0
    %466 = vmatpush1.bf16.msra.mxu0 %v418
    %467 = vmatprep.subr.bf16.mxu0 0
    %468 = vmatpush1.bf16.msra.mxu0 0
    %469 = vmatprep.subr.bf16.mxu0 0
    %470 = vmatpush1.bf16.msra.mxu0 0
    %471 = vmatprep.subr.bf16.mxu0 0
    %472 = vmatpush1.bf16.msra.mxu0 0
    %473 = vmatprep.subr.bf16.mxu0 0
    %474 = vmatpush1.bf16.msra.mxu0 0
    %475 = vmatprep.subr.bf16.mxu0 0
    %476 = vmatpush1.bf16.msra.mxu0 0
    %477 = vmatprep.subr.bf16.mxu0 0
    %478 = vmatpush1.bf16.msra.mxu0 0
    %479 = vmatprep.subr.bf16.mxu0 0
    %480 = vmatpush1.bf16.msra.mxu0 0
    %481 = vmatprep.subr.bf16.mxu0 0
    %482 = vmatpush1.bf16.msra.mxu0 0
    %483 = vmatprep.subr.bf16.mxu0 0
    %484 = vmatpush1.bf16.msra.mxu0 0
    %485 = vmatprep.subr.bf16.mxu0 0
    %486 = vmatpush1.bf16.msra.mxu0 0
    %487 = vmatprep.subr.bf16.mxu0 0
    %488 = vmatpush1.bf16.msra.mxu0 0
    %489 = vmatprep.subr.bf16.mxu0 0
    %490 = vmatpush1.bf16.msra.mxu0 0
    %491 = vmatprep.subr.bf16.mxu0 0
    %492 = vmatpush1.bf16.msra.mxu0 0
    %493 = vmatprep.subr.bf16.mxu0 0
    %494 = vmatpush1.bf16.msra.mxu0 0
    %495 = vmatprep.mubr.bf16.mxu0 0
    %496 = vmatmul.mubr.bf16.gmra.mrb[0].mxu0 %v458
    %v497 = vpop.f32.mrb[0].mxu0
    %v498 = vadd.f32 %v430, %v497
    %v499 = vpop.f32.mrb[0].mxu0
    %v500 = vpop.f32.mrb[0].mxu0
    %v501 = vadd.f32 %v435, %v500
    %v502 = vpop.f32.mrb[0].mxu0
    %503 = vmatprep.mubr.bf16.mxu0 0
    %504 = vmatmul.mubr.bf16.gmra.mrb[0].mxu0 %v461
    %v505 = vpop.f32.mrb[0].mxu0
    %v506 = vadd.f32 %v440, %v505
    %v507 = vpop.f32.mrb[0].mxu0
    %v508 = vpop.f32.mrb[0].mxu0
    %v509 = vadd.f32 %v445, %v508
    %v510 = vpop.f32.mrb[0].mxu0
    %511 = vdwg.mxu0
    %v512 = vld [vmem:[%s6] sm:$0xf]
    %v513 = vld [vmem:[%s6 + $0x4] sm:$0xf]
    %v514 = vld [vmem:[%s6 + $0x8] sm:$0xf]
    %v515 = vld [vmem:[%s6 + $0xc] sm:$0xf]
    %v516 = vld [vmem:[%s7] sm:$0xff]
    %v517 = vld [vmem:[%s7 + $0x8] sm:$0xff]
    %v518 = vld [vmem:[%s7 + $0x10] sm:$0xff]
    %v519 = vld [vmem:[%s7 + $0x18] sm:$0xff]
    %521 = vset.pattern.permute.xlu0 0
    %522 = vperm.xlu0 %521, %v516
    %v523 = vpop.permute.xlu0 %522
    %526 = vset.pattern.permute.xlu0 0
    %527 = vperm.xlu0 %526, %v517
    %v528 = vpop.permute.xlu0 %527
    %531 = vset.pattern.permute.xlu0 0
    %532 = vperm.xlu0 %531, %v518
    %v533 = vpop.permute.xlu0 %532
    %536 = vset.pattern.permute.xlu0 0
    %537 = vperm.xlu0 %536, %v519
    %v538 = vpop.permute.xlu0 %537
    %v544 = vunpack.c.l.b16 %v512
    %v545 = vunpack.c.l.b16 %v513
    %v546 = vunpack.c.l.b16 %v514
    %v547 = vunpack.c.l.b16 %v515
    %v548 = vpack.c.b16 %v545, %v544
    %v549 = vpack.c.b16 %v547, %v546
    %v551 = vsel %vm81, %v548, 0
    %v554 = vsel %vm81, %v549, 0
    %556 = vmatprep.subr.bf16.mxu0 0
    %557 = vmatpush1.bf16.msra.mxu0 %v417
    %558 = vmatprep.subr.bf16.mxu0 0
    %559 = vmatpush1.bf16.msra.mxu0 %v418
    %560 = vmatprep.subr.bf16.mxu0 0
    %561 = vmatpush1.bf16.msra.mxu0 0
    %562 = vmatprep.subr.bf16.mxu0 0
    %563 = vmatpush1.bf16.msra.mxu0 0
    %564 = vmatprep.subr.bf16.mxu0 0
    %565 = vmatpush1.bf16.msra.mxu0 0
    %566 = vmatprep.subr.bf16.mxu0 0
    %567 = vmatpush1.bf16.msra.mxu0 0
    %568 = vmatprep.subr.bf16.mxu0 0
    %569 = vmatpush1.bf16.msra.mxu0 0
    %570 = vmatprep.subr.bf16.mxu0 0
    %571 = vmatpush1.bf16.msra.mxu0 0
    %572 = vmatprep.subr.bf16.mxu0 0
    %573 = vmatpush1.bf16.msra.mxu0 0
    %574 = vmatprep.subr.bf16.mxu0 0
    %575 = vmatpush1.bf16.msra.mxu0 0
    %576 = vmatprep.subr.bf16.mxu0 0
    %577 = vmatpush1.bf16.msra.mxu0 0
    %578 = vmatprep.subr.bf16.mxu0 0
    %579 = vmatpush1.bf16.msra.mxu0 0
    %580 = vmatprep.subr.bf16.mxu0 0
    %581 = vmatpush1.bf16.msra.mxu0 0
    %582 = vmatprep.subr.bf16.mxu0 0
    %583 = vmatpush1.bf16.msra.mxu0 0
    %584 = vmatprep.subr.bf16.mxu0 0
    %585 = vmatpush1.bf16.msra.mxu0 0
    %586 = vmatprep.subr.bf16.mxu0 0
    %587 = vmatpush1.bf16.msra.mxu0 0
    %588 = vmatprep.mubr.bf16.mxu0 0
    %589 = vmatmul.mubr.bf16.gmra.mrb[0].mxu0 %v551
    %v590 = vpop.f32.mrb[0].mxu0
    %v591 = vadd.f32 %v523, %v590
    %v592 = vpop.f32.mrb[0].mxu0
    %v593 = vpop.f32.mrb[0].mxu0
    %v594 = vadd.f32 %v528, %v593
    %v595 = vpop.f32.mrb[0].mxu0
    %596 = vmatprep.mubr.bf16.mxu0 0
    %597 = vmatmul.mubr.bf16.gmra.mrb[0].mxu0 %v554
    %v598 = vpop.f32.mrb[0].mxu0
    %v599 = vadd.f32 %v533, %v598
    %v600 = vpop.f32.mrb[0].mxu0
    %v601 = vpop.f32.mrb[0].mxu0
    %v602 = vadd.f32 %v538, %v601
    %v603 = vpop.f32.mrb[0].mxu0
    %604 = vdwg.mxu0
    %v605 = vmax.f32 %v591, 0.0
    %v606 = vmax.f32 %v594, 0.0
    %v607 = vmax.f32 %v599, 0.0
    %v608 = vmax.f32 %v602, 0.0
    %v609 = vld [vmem:[%s8] sm:$0xf]
    %v610 = vld [vmem:[%s8 + $0x4] sm:$0xf]
    %v611 = vld [vmem:[%s8 + $0x8] sm:$0xf]
    %v612 = vld [vmem:[%s8 + $0xc] sm:$0xf]
    %v613 = vpack.c.bf16 %v606, %v605
    %v614 = vpack.c.bf16 %v608, %v607
    %v615 = vld [vmem:[%s9] sm:$0xff]
    %v616 = vld [vmem:[%s9 + $0x8] sm:$0xff]
    %v617 = vld [vmem:[%s9 + $0x10] sm:$0xff]
    %v618 = vld [vmem:[%s9 + $0x18] sm:$0xff]
    %620 = vset.pattern.permute.xlu0 0
    %621 = vperm.xlu0 %620, %v615
    %v622 = vpop.permute.xlu0 %621
    %625 = vset.pattern.permute.xlu0 0
    %626 = vperm.xlu0 %625, %v616
    %v627 = vpop.permute.xlu0 %626
    %630 = vset.pattern.permute.xlu0 0
    %631 = vperm.xlu0 %630, %v617
    %v632 = vpop.permute.xlu0 %631
    %635 = vset.pattern.permute.xlu0 0
    %636 = vperm.xlu0 %635, %v618
    %v637 = vpop.permute.xlu0 %636
    %v643 = vunpack.c.l.b16 %v609
    %v644 = vunpack.c.l.b16 %v610
    %v645 = vunpack.c.l.b16 %v611
    %v646 = vunpack.c.l.b16 %v612
    %v647 = vpack.c.b16 %v644, %v643
    %v648 = vpack.c.b16 %v646, %v645
    %v650 = vsel %vm81, %v647, 0
    %v653 = vsel %vm81, %v648, 0
    %655 = vmatprep.subr.bf16.mxu0 0
    %656 = vmatpush1.bf16.msra.mxu0 %v613
    %657 = vmatprep.subr.bf16.mxu0 0
    %658 = vmatpush1.bf16.msra.mxu0 %v614
    %659 = vmatprep.subr.bf16.mxu0 0
    %660 = vmatpush1.bf16.msra.mxu0 0
    %661 = vmatprep.subr.bf16.mxu0 0
    %662 = vmatpush1.bf16.msra.mxu0 0
    %663 = vmatprep.subr.bf16.mxu0 0
    %664 = vmatpush1.bf16.msra.mxu0 0
    %665 = vmatprep.subr.bf16.mxu0 0
    %666 = vmatpush1.bf16.msra.mxu0 0
    %667 = vmatprep.subr.bf16.mxu0 0
    %668 = vmatpush1.bf16.msra.mxu0 0
    %669 = vmatprep.subr.bf16.mxu0 0
    %670 = vmatpush1.bf16.msra.mxu0 0
    %671 = vmatprep.subr.bf16.mxu0 0
    %672 = vmatpush1.bf16.msra.mxu0 0
    %673 = vmatprep.subr.bf16.mxu0 0
    %674 = vmatpush1.bf16.msra.mxu0 0
    %675 = vmatprep.subr.bf16.mxu0 0
    %676 = vmatpush1.bf16.msra.mxu0 0
    %677 = vmatprep.subr.bf16.mxu0 0
    %678 = vmatpush1.bf16.msra.mxu0 0
    %679 = vmatprep.subr.bf16.mxu0 0
    %680 = vmatpush1.bf16.msra.mxu0 0
    %681 = vmatprep.subr.bf16.mxu0 0
    %682 = vmatpush1.bf16.msra.mxu0 0
    %683 = vmatprep.subr.bf16.mxu0 0
    %684 = vmatpush1.bf16.msra.mxu0 0
    %685 = vmatprep.subr.bf16.mxu0 0
    %686 = vmatpush1.bf16.msra.mxu0 0
    %687 = vmatprep.mubr.bf16.mxu0 0
    %688 = vmatmul.mubr.bf16.gmra.mrb[0].mxu0 %v650
    %v689 = vpop.f32.mrb[0].mxu0
    %v690 = vadd.f32 %v622, %v689
    %v691 = vpop.f32.mrb[0].mxu0
    %v692 = vpop.f32.mrb[0].mxu0
    %v693 = vadd.f32 %v627, %v692
    %v694 = vpop.f32.mrb[0].mxu0
    %695 = vmatprep.mubr.bf16.mxu0 0
    %696 = vmatmul.mubr.bf16.gmra.mrb[0].mxu0 %v653
    %v697 = vpop.f32.mrb[0].mxu0
    %v698 = vadd.f32 %v632, %v697
    %v699 = vpop.f32.mrb[0].mxu0
    %v700 = vpop.f32.mrb[0].mxu0
    %v701 = vadd.f32 %v637, %v700
    %v702 = vpop.f32.mrb[0].mxu0
    %703 = vdwg.mxu0
    %v704 = vmax.f32 %v690, 0.0
    %v705 = vmax.f32 %v693, 0.0
    %v706 = vmax.f32 %v698, 0.0
    %v707 = vmax.f32 %v701, 0.0
    %v708 = vadd.f32 %v498, %v704
    %v709 = vadd.f32 %v501, %v705
    %v710 = vadd.f32 %v506, %v706
    %v711 = vadd.f32 %v509, %v707
    %v712 = vpack.c.bf16 %v709, %v708
    %v713 = vpack.c.bf16 %v711, %v710
    %s714 = scalar_lea.vmem %s2, 32
    %v715 = vld [vmem:[%s714] sm:$0xf]
    %v716 = vld [vmem:[%s714 + $0x4] sm:$0xf]
    %v717 = vld [vmem:[%s714 + $0x8] sm:$0xf]
    %v718 = vld [vmem:[%s714 + $0xc] sm:$0xf]
    %s719 = scalar_lea.vmem %s3, 64
    %v720 = vld [vmem:[%s719] sm:$0xff]
    %v721 = vld [vmem:[%s719 + $0x8] sm:$0xff]
    %v722 = vld [vmem:[%s719 + $0x10] sm:$0xff]
    %v723 = vld [vmem:[%s719 + $0x18] sm:$0xff]
    %725 = vset.pattern.permute.xlu0 0
    %726 = vperm.xlu0 %725, %v720
    %v727 = vpop.permute.xlu0 %726
    %730 = vset.pattern.permute.xlu0 0
    %731 = vperm.xlu0 %730, %v721
    %v732 = vpop.permute.xlu0 %731
    %735 = vset.pattern.permute.xlu0 0
    %736 = vperm.xlu0 %735, %v722
    %v737 = vpop.permute.xlu0 %736
    %740 = vset.pattern.permute.xlu0 0
    %741 = vperm.xlu0 %740, %v723
    %v742 = vpop.permute.xlu0 %741
    %v748 = vunpack.c.l.b16 %v715
    %v749 = vunpack.c.l.b16 %v716
    %v750 = vunpack.c.l.b16 %v717
    %v751 = vunpack.c.l.b16 %v718
    %v752 = vpack.c.b16 %v749, %v748
    %v753 = vpack.c.b16 %v751, %v750
    %v755 = vsel %vm81, %v752, 0
    %v758 = vsel %vm81, %v753, 0
    %760 = vmatprep.subr.bf16.mxu0 0
    %761 = vmatpush1.bf16.msra.mxu0 %v712
    %762 = vmatprep.subr.bf16.mxu0 0
    %763 = vmatpush1.bf16.msra.mxu0 %v713
    %764 = vmatprep.subr.bf16.mxu0 0
    %765 = vmatpush1.bf16.msra.mxu0 0
    %766 = vmatprep.subr.bf16.mxu0 0
    %767 = vmatpush1.bf16.msra.mxu0 0
    %768 = vmatprep.subr.bf16.mxu0 0
    %769 = vmatpush1.bf16.msra.mxu0 0
    %770 = vmatprep.subr.bf16.mxu0 0
    %771 = vmatpush1.bf16.msra.mxu0 0
    %772 = vmatprep.subr.bf16.mxu0 0
    %773 = vmatpush1.bf16.msra.mxu0 0
    %774 = vmatprep.subr.bf16.mxu0 0
    %775 = vmatpush1.bf16.msra.mxu0 0
    %776 = vmatprep.subr.bf16.mxu0 0
    %777 = vmatpush1.bf16.msra.mxu0 0
    %778 = vmatprep.subr.bf16.mxu0 0
    %779 = vmatpush1.bf16.msra.mxu0 0
    %780 = vmatprep.subr.bf16.mxu0 0
    %781 = vmatpush1.bf16.msra.mxu0 0
    %782 = vmatprep.subr.bf16.mxu0 0
    %783 = vmatpush1.bf16.msra.mxu0 0
    %784 = vmatprep.subr.bf16.mxu0 0
    %785 = vmatpush1.bf16.msra.mxu0 0
    %786 = vmatprep.subr.bf16.mxu0 0
    %787 = vmatpush1.bf16.msra.mxu0 0
    %788 = vmatprep.subr.bf16.mxu0 0
    %789 = vmatpush1.bf16.msra.mxu0 0
    %790 = vmatprep.subr.bf16.mxu0 0
    %791 = vmatpush1.bf16.msra.mxu0 0
    %792 = vmatprep.mubr.bf16.mxu0 0
    %793 = vmatmul.mubr.bf16.gmra.mrb[0].mxu0 %v755
    %v794 = vpop.f32.mrb[0].mxu0
    %v795 = vadd.f32 %v727, %v794
    %v796 = vpop.f32.mrb[0].mxu0
    %v797 = vpop.f32.mrb[0].mxu0
    %v798 = vadd.f32 %v732, %v797
    %v799 = vpop.f32.mrb[0].mxu0
    %800 = vmatprep.mubr.bf16.mxu0 0
    %801 = vmatmul.mubr.bf16.gmra.mrb[0].mxu0 %v758
    %v802 = vpop.f32.mrb[0].mxu0
    %v803 = vadd.f32 %v737, %v802
    %v804 = vpop.f32.mrb[0].mxu0
    %v805 = vpop.f32.mrb[0].mxu0
    %v806 = vadd.f32 %v742, %v805
    %v807 = vpop.f32.mrb[0].mxu0
    %808 = vdwg.mxu0
    %v809 = vpack.c.bf16 %v798, %v795
    %v810 = vpack.c.bf16 %v806, %v803
    %s811 = scalar_lea.vmem %s2, 48
    %v812 = vld [vmem:[%s811] sm:$0xf]
    %v813 = vld [vmem:[%s811 + $0x4] sm:$0xf]
    %v814 = vld [vmem:[%s811 + $0x8] sm:$0xf]
    %v815 = vld [vmem:[%s811 + $0xc] sm:$0xf]
    %s816 = scalar_lea.vmem %s3, 96
    %v817 = vld [vmem:[%s816] sm:$0xff]
    %v818 = vld [vmem:[%s816 + $0x8] sm:$0xff]
    %v819 = vld [vmem:[%s816 + $0x10] sm:$0xff]
    %v820 = vld [vmem:[%s816 + $0x18] sm:$0xff]
    %822 = vset.pattern.permute.xlu0 0
    %823 = vperm.xlu0 %822, %v817
    %v824 = vpop.permute.xlu0 %823
    %827 = vset.pattern.permute.xlu0 0
    %828 = vperm.xlu0 %827, %v818
    %v829 = vpop.permute.xlu0 %828
    %832 = vset.pattern.permute.xlu0 0
    %833 = vperm.xlu0 %832, %v819
    %v834 = vpop.permute.xlu0 %833
    %837 = vset.pattern.permute.xlu0 0
    %838 = vperm.xlu0 %837, %v820
    %v839 = vpop.permute.xlu0 %838
    %v845 = vunpack.c.l.b16 %v812
    %v846 = vunpack.c.l.b16 %v813
    %v847 = vunpack.c.l.b16 %v814
    %v848 = vunpack.c.l.b16 %v815
    %v849 = vpack.c.b16 %v846, %v845
    %v850 = vpack.c.b16 %v848, %v847
    %v852 = vsel %vm81, %v849, 0
    %v855 = vsel %vm81, %v850, 0
    %857 = vmatprep.subr.bf16.mxu0 0
    %858 = vmatpush1.bf16.msra.mxu0 %v712
    %859 = vmatprep.subr.bf16.mxu0 0
    %860 = vmatpush1.bf16.msra.mxu0 %v713
    %861 = vmatprep.subr.bf16.mxu0 0
    %862 = vmatpush1.bf16.msra.mxu0 0
    %863 = vmatprep.subr.bf16.mxu0 0
    %864 = vmatpush1.bf16.msra.mxu0 0
    %865 = vmatprep.subr.bf16.mxu0 0
    %866 = vmatpush1.bf16.msra.mxu0 0
    %867 = vmatprep.subr.bf16.mxu0 0
    %868 = vmatpush1.bf16.msra.mxu0 0
    %869 = vmatprep.subr.bf16.mxu0 0
    %870 = vmatpush1.bf16.msra.mxu0 0
    %871 = vmatprep.subr.bf16.mxu0 0
    %872 = vmatpush1.bf16.msra.mxu0 0
    %873 = vmatprep.subr.bf16.mxu0 0
    %874 = vmatpush1.bf16.msra.mxu0 0
    %875 = vmatprep.subr.bf16.mxu0 0
    %876 = vmatpush1.bf16.msra.mxu0 0
    %877 = vmatprep.subr.bf16.mxu0 0
    %878 = vmatpush1.bf16.msra.mxu0 0
    %879 = vmatprep.subr.bf16.mxu0 0
    %880 = vmatpush1.bf16.msra.mxu0 0
    %881 = vmatprep.subr.bf16.mxu0 0
    %882 = vmatpush1.bf16.msra.mxu0 0
    %883 = vmatprep.subr.bf16.mxu0 0
    %884 = vmatpush1.bf16.msra.mxu0 0
    %885 = vmatprep.subr.bf16.mxu0 0
    %886 = vmatpush1.bf16.msra.mxu0 0
    %887 = vmatprep.subr.bf16.mxu0 0
    %888 = vmatpush1.bf16.msra.mxu0 0
    %889 = vmatprep.mubr.bf16.mxu0 0
    %890 = vmatmul.mubr.bf16.gmra.mrb[0].mxu0 %v852
    %v891 = vpop.f32.mrb[0].mxu0
    %v892 = vadd.f32 %v824, %v891
    %v893 = vpop.f32.mrb[0].mxu0
    %v894 = vpop.f32.mrb[0].mxu0
    %v895 = vadd.f32 %v829, %v894
    %v896 = vpop.f32.mrb[0].mxu0
    %897 = vmatprep.mubr.bf16.mxu0 0
    %898 = vmatmul.mubr.bf16.gmra.mrb[0].mxu0 %v855
    %v899 = vpop.f32.mrb[0].mxu0
    %v900 = vadd.f32 %v834, %v899
    %v901 = vpop.f32.mrb[0].mxu0
    %v902 = vpop.f32.mrb[0].mxu0
    %v903 = vadd.f32 %v839, %v902
    %v904 = vpop.f32.mrb[0].mxu0
    %905 = vdwg.mxu0
    %v906 = vpack.c.bf16 %v895, %v892
    %v907 = vpack.c.bf16 %v903, %v900
    %908 = vmatprep.subr.bf16.mxu0 0
    %909 = vmatpush1.bf16.msra.mxu0 %v332
    %910 = vmatprep.subr.bf16.mxu0 0
    %911 = vmatpush1.bf16.msra.mxu0 %v333
    %912 = vmatprep.subr.bf16.mxu0 0
    %913 = vmatpush1.bf16.msra.mxu0 %v334
    %914 = vmatprep.subr.bf16.mxu0 0
    %915 = vmatpush1.bf16.msra.mxu0 %v335
    %916 = vmatprep.subr.bf16.mxu0 0
    %917 = vmatpush1.bf16.msra.mxu0 %v336
    %918 = vmatprep.subr.bf16.mxu0 0
    %919 = vmatpush1.bf16.msra.mxu0 %v337
    %920 = vmatprep.subr.bf16.mxu0 0
    %921 = vmatpush1.bf16.msra.mxu0 %v338
    %922 = vmatprep.subr.bf16.mxu0 0
    %923 = vmatpush1.bf16.msra.mxu0 %v339
    %924 = vmatprep.subr.bf16.mxu0 0
    %925 = vmatpush1.bf16.msra.mxu0 %v340
    %926 = vmatprep.subr.bf16.mxu0 0
    %927 = vmatpush1.bf16.msra.mxu0 %v341
    %928 = vmatprep.subr.bf16.mxu0 0
    %929 = vmatpush1.bf16.msra.mxu0 %v342
    %930 = vmatprep.subr.bf16.mxu0 0
    %931 = vmatpush1.bf16.msra.mxu0 %v343
    %932 = vmatprep.subr.bf16.mxu0 0
    %933 = vmatpush1.bf16.msra.mxu0 %v344
    %934 = vmatprep.subr.bf16.mxu0 0
    %935 = vmatpush1.bf16.msra.mxu0 %v345
    %936 = vmatprep.subr.bf16.mxu0 0
    %937 = vmatpush1.bf16.msra.mxu0 %v346
    %938 = vmatprep.subr.bf16.mxu0 0
    %939 = vmatpush1.bf16.msra.mxu0 %v347
    %940 = vmatprep.mubr.bf16.mxu0 %v906
    %941 = vmatmul.mubr.bf16.gmra.mrb[0].mxu0 %v809
    %v942 = vpop.f32.mrb[0].mxu0
    %v943 = vadd.f32 0.0, %v942
    %v944 = vpop.f32.mrb[0].mxu0
    %v945 = vpop.f32.mrb[0].mxu0
    %v946 = vadd.f32 0.0, %v945
    %v947 = vpop.f32.mrb[0].mxu0
    %948 = vmatprep.mubr.bf16.mxu0 %v907
    %949 = vmatmul.mubr.bf16.gmra.mrb[0].mxu0 %v810
    %v950 = vpop.f32.mrb[0].mxu0
    %v951 = vadd.f32 0.0, %v950
    %v952 = vpop.f32.mrb[0].mxu0
    %v953 = vpop.f32.mrb[0].mxu0
    %v954 = vadd.f32 0.0, %v953
    %v955 = vpop.f32.mrb[0].mxu0
    %956 = vdwg.mxu0
    %v957 = vadd.f32 %v708, %v943
    %v958 = vadd.f32 %v709, %v946
    %v959 = vadd.f32 %v710, %v951
    %v960 = vadd.f32 %v711, %v954
    %v961 = vpack.c.bf16 %v958, %v957
    %v962 = vpack.c.bf16 %v960, %v959
    %s963 = scalar_lea.vmem %s4, 16
    %v964 = vld [vmem:[%s963] sm:$0xf]
    %v965 = vld [vmem:[%s963 + $0x4] sm:$0xf]
    %v966 = vld [vmem:[%s963 + $0x8] sm:$0xf]
    %v967 = vld [vmem:[%s963 + $0xc] sm:$0xf]
    %s968 = scalar_lea.vmem %s5, 32
    %v969 = vld [vmem:[%s968] sm:$0xff]
    %v970 = vld [vmem:[%s968 + $0x8] sm:$0xff]
    %v971 = vld [vmem:[%s968 + $0x10] sm:$0xff]
    %v972 = vld [vmem:[%s968 + $0x18] sm:$0xff]
    %974 = vset.pattern.permute.xlu0 0
    %975 = vperm.xlu0 %974, %v969
    %v976 = vpop.permute.xlu0 %975
    %979 = vset.pattern.permute.xlu0 0
    %980 = vperm.xlu0 %979, %v970
    %v981 = vpop.permute.xlu0 %980
    %984 = vset.pattern.permute.xlu0 0
    %985 = vperm.xlu0 %984, %v971
    %v986 = vpop.permute.xlu0 %985
    %989 = vset.pattern.permute.xlu0 0
    %990 = vperm.xlu0 %989, %v972
    %v991 = vpop.permute.xlu0 %990
    %v997 = vunpack.c.l.b16 %v964
    %v998 = vunpack.c.l.b16 %v965
    %v999 = vunpack.c.l.b16 %v966
    %v1000 = vunpack.c.l.b16 %v967
    %v1001 = vpack.c.b16 %v998, %v997
    %v1002 = vpack.c.b16 %v1000, %v999
    %v1004 = vsel %vm81, %v1001, 0
    %v1007 = vsel %vm81, %v1002, 0
    %1009 = vmatprep.subr.bf16.mxu0 0
    %1010 = vmatpush1.bf16.msra.mxu0 %v961
    %1011 = vmatprep.subr.bf16.mxu0 0
    %1012 = vmatpush1.bf16.msra.mxu0 %v962
    %1013 = vmatprep.subr.bf16.mxu0 0
    %1014 = vmatpush1.bf16.msra.mxu0 0
    %1015 = vmatprep.subr.bf16.mxu0 0
    %1016 = vmatpush1.bf16.msra.mxu0 0
    %1017 = vmatprep.subr.bf16.mxu0 0
    %1018 = vmatpush1.bf16.msra.mxu0 0
    %1019 = vmatprep.subr.bf16.mxu0 0
    %1020 = vmatpush1.bf16.msra.mxu0 0
    %1021 = vmatprep.subr.bf16.mxu0 0
    %1022 = vmatpush1.bf16.msra.mxu0 0
    %1023 = vmatprep.subr.bf16.mxu0 0
    %1024 = vmatpush1.bf16.msra.mxu0 0
    %1025 = vmatprep.subr.bf16.mxu0 0
    %1026 = vmatpush1.bf16.msra.mxu0 0
    %1027 = vmatprep.subr.bf16.mxu0 0
    %1028 = vmatpush1.bf16.msra.mxu0 0
    %1029 = vmatprep.subr.bf16.mxu0 0
    %1030 = vmatpush1.bf16.msra.mxu0 0
    %1031 = vmatprep.subr.bf16.mxu0 0
    %1032 = vmatpush1.bf16.msra.mxu0 0
    %1033 = vmatprep.subr.bf16.mxu0 0
    %1034 = vmatpush1.bf16.msra.mxu0 0
    %1035 = vmatprep.subr.bf16.mxu0 0
    %1036 = vmatpush1.bf16.msra.mxu0 0
    %1037 = vmatprep.subr.bf16.mxu0 0
    %1038 = vmatpush1.bf16.msra.mxu0 0
    %1039 = vmatprep.subr.bf16.mxu0 0
    %1040 = vmatpush1.bf16.msra.mxu0 0
    %1041 = vmatprep.mubr.bf16.mxu0 0
    %1042 = vmatmul.mubr.bf16.gmra.mrb[0].mxu0 %v1004
    %v1043 = vpop.f32.mrb[0].mxu0
    %v1044 = vadd.f32 %v976, %v1043
    %v1045 = vpop.f32.mrb[0].mxu0
    %v1046 = vpop.f32.mrb[0].mxu0
    %v1047 = vadd.f32 %v981, %v1046
    %v1048 = vpop.f32.mrb[0].mxu0
    %1049 = vmatprep.mubr.bf16.mxu0 0
    %1050 = vmatmul.mubr.bf16.gmra.mrb[0].mxu0 %v1007
    %v1051 = vpop.f32.mrb[0].mxu0
    %v1052 = vadd.f32 %v986, %v1051
    %v1053 = vpop.f32.mrb[0].mxu0
    %v1054 = vpop.f32.mrb[0].mxu0
    %v1055 = vadd.f32 %v991, %v1054
    %v1056 = vpop.f32.mrb[0].mxu0
    %1057 = vdwg.mxu0
    %s1058 = scalar_lea.vmem %s6, 16
    %v1059 = vld [vmem:[%s1058] sm:$0xf]
    %v1060 = vld [vmem:[%s1058 + $0x4] sm:$0xf]
    %v1061 = vld [vmem:[%s1058 + $0x8] sm:$0xf]
    %v1062 = vld [vmem:[%s1058 + $0xc] sm:$0xf]
    %s1063 = scalar_lea.vmem %s7, 32
    %v1064 = vld [vmem:[%s1063] sm:$0xff]
    %v1065 = vld [vmem:[%s1063 + $0x8] sm:$0xff]
    %v1066 = vld [vmem:[%s1063 + $0x10] sm:$0xff]
    %v1067 = vld [vmem:[%s1063 + $0x18] sm:$0xff]
    %1069 = vset.pattern.permute.xlu0 0
    %1070 = vperm.xlu0 %1069, %v1064
    %v1071 = vpop.permute.xlu0 %1070
    %1074 = vset.pattern.permute.xlu0 0
    %1075 = vperm.xlu0 %1074, %v1065
    %v1076 = vpop.permute.xlu0 %1075
    %1079 = vset.pattern.permute.xlu0 0
    %1080 = vperm.xlu0 %1079, %v1066
    %v1081 = vpop.permute.xlu0 %1080
    %1084 = vset.pattern.permute.xlu0 0
    %1085 = vperm.xlu0 %1084, %v1067
    %v1086 = vpop.permute.xlu0 %1085
    %v1092 = vunpack.c.l.b16 %v1059
    %v1093 = vunpack.c.l.b16 %v1060
    %v1094 = vunpack.c.l.b16 %v1061
    %v1095 = vunpack.c.l.b16 %v1062
    %v1096 = vpack.c.b16 %v1093, %v1092
    %v1097 = vpack.c.b16 %v1095, %v1094
    %v1099 = vsel %vm81, %v1096, 0
    %v1102 = vsel %vm81, %v1097, 0
    %1104 = vmatprep.subr.bf16.mxu0 0
    %1105 = vmatpush1.bf16.msra.mxu0 %v961
    %1106 = vmatprep.subr.bf16.mxu0 0
    %1107 = vmatpush1.bf16.msra.mxu0 %v962
    %1108 = vmatprep.subr.bf16.mxu0 0
    %1109 = vmatpush1.bf16.msra.mxu0 0
    %1110 = vmatprep.subr.bf16.mxu0 0
    %1111 = vmatpush1.bf16.msra.mxu0 0
    %1112 = vmatprep.subr.bf16.mxu0 0
    %1113 = vmatpush1.bf16.msra.mxu0 0
    %1114 = vmatprep.subr.bf16.mxu0 0
    %1115 = vmatpush1.bf16.msra.mxu0 0
    %1116 = vmatprep.subr.bf16.mxu0 0
    %1117 = vmatpush1.bf16.msra.mxu0 0
    %1118 = vmatprep.subr.bf16.mxu0 0
    %1119 = vmatpush1.bf16.msra.mxu0 0
    %1120 = vmatprep.subr.bf16.mxu0 0
    %1121 = vmatpush1.bf16.msra.mxu0 0
    %1122 = vmatprep.subr.bf16.mxu0 0
    %1123 = vmatpush1.bf16.msra.mxu0 0
    %1124 = vmatprep.subr.bf16.mxu0 0
    %1125 = vmatpush1.bf16.msra.mxu0 0
    %1126 = vmatprep.subr.bf16.mxu0 0
    %1127 = vmatpush1.bf16.msra.mxu0 0
    %1128 = vmatprep.subr.bf16.mxu0 0
    %1129 = vmatpush1.bf16.msra.mxu0 0
    %1130 = vmatprep.subr.bf16.mxu0 0
    %1131 = vmatpush1.bf16.msra.mxu0 0
    %1132 = vmatprep.subr.bf16.mxu0 0
    %1133 = vmatpush1.bf16.msra.mxu0 0
    %1134 = vmatprep.subr.bf16.mxu0 0
    %1135 = vmatpush1.bf16.msra.mxu0 0
    %1136 = vmatprep.mubr.bf16.mxu0 0
    %1137 = vmatmul.mubr.bf16.gmra.mrb[0].mxu0 %v1099
    %v1138 = vpop.f32.mrb[0].mxu0
    %v1139 = vadd.f32 %v1071, %v1138
    %v1140 = vpop.f32.mrb[0].mxu0
    %v1141 = vpop.f32.mrb[0].mxu0
    %v1142 = vadd.f32 %v1076, %v1141
    %v1143 = vpop.f32.mrb[0].mxu0
    %1144 = vmatprep.mubr.bf16.mxu0 0
    %1145 = vmatmul.mubr.bf16.gmra.mrb[0].mxu0 %v1102
    %v1146 = vpop.f32.mrb[0].mxu0
    %v1147 = vadd.f32 %v1081, %v1146
    %v1148 = vpop.f32.mrb[0].mxu0
    %v1149 = vpop.f32.mrb[0].mxu0
    %v1150 = vadd.f32 %v1086, %v1149
    %v1151 = vpop.f32.mrb[0].mxu0
    %1152 = vdwg.mxu0
    %v1153 = vmax.f32 %v1139, 0.0
    %v1154 = vmax.f32 %v1142, 0.0
    %v1155 = vmax.f32 %v1147, 0.0
    %v1156 = vmax.f32 %v1150, 0.0
    %s1157 = scalar_lea.vmem %s8, 16
    %v1158 = vld [vmem:[%s1157] sm:$0xf]
    %v1159 = vld [vmem:[%s1157 + $0x4] sm:$0xf]
    %v1160 = vld [vmem:[%s1157 + $0x8] sm:$0xf]
    %v1161 = vld [vmem:[%s1157 + $0xc] sm:$0xf]
    %v1162 = vpack.c.bf16 %v1154, %v1153
    %v1163 = vpack.c.bf16 %v1156, %v1155
    %s1164 = scalar_lea.vmem %s9, 32
    %v1165 = vld [vmem:[%s1164] sm:$0xff]
    %v1166 = vld [vmem:[%s1164 + $0x8] sm:$0xff]
    %v1167 = vld [vmem:[%s1164 + $0x10] sm:$0xff]
    %v1168 = vld [vmem:[%s1164 + $0x18] sm:$0xff]
    %1170 = vset.pattern.permute.xlu0 0
    %1171 = vperm.xlu0 %1170, %v1165
    %v1172 = vpop.permute.xlu0 %1171
    %1175 = vset.pattern.permute.xlu0 0
    %1176 = vperm.xlu0 %1175, %v1166
    %v1177 = vpop.permute.xlu0 %1176
    %1180 = vset.pattern.permute.xlu0 0
    %1181 = vperm.xlu0 %1180, %v1167
    %v1182 = vpop.permute.xlu0 %1181
    %1185 = vset.pattern.permute.xlu0 0
    %1186 = vperm.xlu0 %1185, %v1168
    %v1187 = vpop.permute.xlu0 %1186
    %v1193 = vunpack.c.l.b16 %v1158
    %v1194 = vunpack.c.l.b16 %v1159
    %v1195 = vunpack.c.l.b16 %v1160
    %v1196 = vunpack.c.l.b16 %v1161
    %v1197 = vpack.c.b16 %v1194, %v1193
    %v1198 = vpack.c.b16 %v1196, %v1195
    %v1200 = vsel %vm81, %v1197, 0
    %v1203 = vsel %vm81, %v1198, 0
    %1205 = vmatprep.subr.bf16.mxu0 0
    %1206 = vmatpush1.bf16.msra.mxu0 %v1162
    %1207 = vmatprep.subr.bf16.mxu0 0
    %1208 = vmatpush1.bf16.msra.mxu0 %v1163
    %1209 = vmatprep.subr.bf16.mxu0 0
    %1210 = vmatpush1.bf16.msra.mxu0 0
    %1211 = vmatprep.subr.bf16.mxu0 0
    %1212 = vmatpush1.bf16.msra.mxu0 0
    %1213 = vmatprep.subr.bf16.mxu0 0
    %1214 = vmatpush1.bf16.msra.mxu0 0
    %1215 = vmatprep.subr.bf16.mxu0 0
    %1216 = vmatpush1.bf16.msra.mxu0 0
    %1217 = vmatprep.subr.bf16.mxu0 0
    %1218 = vmatpush1.bf16.msra.mxu0 0
    %1219 = vmatprep.subr.bf16.mxu0 0
    %1220 = vmatpush1.bf16.msra.mxu0 0
    %1221 = vmatprep.subr.bf16.mxu0 0
    %1222 = vmatpush1.bf16.msra.mxu0 0
    %1223 = vmatprep.subr.bf16.mxu0 0
    %1224 = vmatpush1.bf16.msra.mxu0 0
    %1225 = vmatprep.subr.bf16.mxu0 0
    %1226 = vmatpush1.bf16.msra.mxu0 0
    %1227 = vmatprep.subr.bf16.mxu0 0
    %1228 = vmatpush1.bf16.msra.mxu0 0
    %1229 = vmatprep.subr.bf16.mxu0 0
    %1230 = vmatpush1.bf16.msra.mxu0 0
    %1231 = vmatprep.subr.bf16.mxu0 0
    %1232 = vmatpush1.bf16.msra.mxu0 0
    %1233 = vmatprep.subr.bf16.mxu0 0
    %1234 = vmatpush1.bf16.msra.mxu0 0
    %1235 = vmatprep.subr.bf16.mxu0 0
    %1236 = vmatpush1.bf16.msra.mxu0 0
    %1237 = vmatprep.mubr.bf16.mxu0 0
    %1238 = vmatmul.mubr.bf16.gmra.mrb[0].mxu0 %v1200
    %v1239 = vpop.f32.mrb[0].mxu0
    %v1240 = vadd.f32 %v1172, %v1239
    %v1241 = vpop.f32.mrb[0].mxu0
    %v1242 = vpop.f32.mrb[0].mxu0
    %v1243 = vadd.f32 %v1177, %v1242
    %v1244 = vpop.f32.mrb[0].mxu0
    %1245 = vmatprep.mubr.bf16.mxu0 0
    %1246 = vmatmul.mubr.bf16.gmra.mrb[0].mxu0 %v1203
    %v1247 = vpop.f32.mrb[0].mxu0
    %v1248 = vadd.f32 %v1182, %v1247
    %v1249 = vpop.f32.mrb[0].mxu0
    %v1250 = vpop.f32.mrb[0].mxu0
    %v1251 = vadd.f32 %v1187, %v1250
    %v1252 = vpop.f32.mrb[0].mxu0
    %1253 = vdwg.mxu0
    %v1254 = vmax.f32 %v1240, 0.0
    %v1255 = vmax.f32 %v1243, 0.0
    %v1256 = vmax.f32 %v1248, 0.0
    %v1257 = vmax.f32 %v1251, 0.0
    %v1258 = vadd.f32 %v1044, %v1254
    %v1259 = vadd.f32 %v1047, %v1255
    %v1260 = vadd.f32 %v1052, %v1256
    %v1261 = vadd.f32 %v1055, %v1257
    %v1262 = vpack.c.bf16 %v1259, %v1258
    %v1263 = vpack.c.bf16 %v1261, %v1260
    %s1264 = scalar_lea.vmem %s2, 64
    %v1265 = vld [vmem:[%s1264] sm:$0xf]
    %v1266 = vld [vmem:[%s1264 + $0x4] sm:$0xf]
    %v1267 = vld [vmem:[%s1264 + $0x8] sm:$0xf]
    %v1268 = vld [vmem:[%s1264 + $0xc] sm:$0xf]
    %s1269 = scalar_lea.vmem %s3, 128
    %v1270 = vld [vmem:[%s1269] sm:$0xff]
    %v1271 = vld [vmem:[%s1269 + $0x8] sm:$0xff]
    %v1272 = vld [vmem:[%s1269 + $0x10] sm:$0xff]
    %v1273 = vld [vmem:[%s1269 + $0x18] sm:$0xff]
    %1275 = vset.pattern.permute.xlu0 0
    %1276 = vperm.xlu0 %1275, %v1270
    %v1277 = vpop.permute.xlu0 %1276
    %1280 = vset.pattern.permute.xlu0 0
    %1281 = vperm.xlu0 %1280, %v1271
    %v1282 = vpop.permute.xlu0 %1281
    %1285 = vset.pattern.permute.xlu0 0
    %1286 = vperm.xlu0 %1285, %v1272
    %v1287 = vpop.permute.xlu0 %1286
    %1290 = vset.pattern.permute.xlu0 0
    %1291 = vperm.xlu0 %1290, %v1273
    %v1292 = vpop.permute.xlu0 %1291
    %v1298 = vunpack.c.l.b16 %v1265
    %v1299 = vunpack.c.l.b16 %v1266
    %v1300 = vunpack.c.l.b16 %v1267
    %v1301 = vunpack.c.l.b16 %v1268
    %v1302 = vpack.c.b16 %v1299, %v1298
    %v1303 = vpack.c.b16 %v1301, %v1300
    %v1305 = vsel %vm81, %v1302, 0
    %v1308 = vsel %vm81, %v1303, 0
    %1310 = vmatprep.subr.bf16.mxu0 0
    %1311 = vmatpush1.bf16.msra.mxu0 %v1262
    %1312 = vmatprep.subr.bf16.mxu0 0
    %1313 = vmatpush1.bf16.msra.mxu0 %v1263
    %1314 = vmatprep.subr.bf16.mxu0 0
    %1315 = vmatpush1.bf16.msra.mxu0 0
    %1316 = vmatprep.subr.bf16.mxu0 0
    %1317 = vmatpush1.bf16.msra.mxu0 0
    %1318 = vmatprep.subr.bf16.mxu0 0
    %1319 = vmatpush1.bf16.msra.mxu0 0
    %1320 = vmatprep.subr.bf16.mxu0 0
    %1321 = vmatpush1.bf16.msra.mxu0 0
    %1322 = vmatprep.subr.bf16.mxu0 0
    %1323 = vmatpush1.bf16.msra.mxu0 0
    %1324 = vmatprep.subr.bf16.mxu0 0
    %1325 = vmatpush1.bf16.msra.mxu0 0
    %1326 = vmatprep.subr.bf16.mxu0 0
    %1327 = vmatpush1.bf16.msra.mxu0 0
    %1328 = vmatprep.subr.bf16.mxu0 0
    %1329 = vmatpush1.bf16.msra.mxu0 0
    %1330 = vmatprep.subr.bf16.mxu0 0
    %1331 = vmatpush1.bf16.msra.mxu0 0
    %1332 = vmatprep.subr.bf16.mxu0 0
    %1333 = vmatpush1.bf16.msra.mxu0 0
    %1334 = vmatprep.subr.bf16.mxu0 0
    %1335 = vmatpush1.bf16.msra.mxu0 0
    %1336 = vmatprep.subr.bf16.mxu0 0
    %1337 = vmatpush1.bf16.msra.mxu0 0
    %1338 = vmatprep.subr.bf16.mxu0 0
    %1339 = vmatpush1.bf16.msra.mxu0 0
    %1340 = vmatprep.subr.bf16.mxu0 0
    %1341 = vmatpush1.bf16.msra.mxu0 0
    %1342 = vmatprep.mubr.bf16.mxu0 0
    %1343 = vmatmul.mubr.bf16.gmra.mrb[0].mxu0 %v1305
    %v1344 = vpop.f32.mrb[0].mxu0
    %v1345 = vadd.f32 %v1277, %v1344
    %v1346 = vpop.f32.mrb[0].mxu0
    %v1347 = vpop.f32.mrb[0].mxu0
    %v1348 = vadd.f32 %v1282, %v1347
    %v1349 = vpop.f32.mrb[0].mxu0
    %1350 = vmatprep.mubr.bf16.mxu0 0
    %1351 = vmatmul.mubr.bf16.gmra.mrb[0].mxu0 %v1308
    %v1352 = vpop.f32.mrb[0].mxu0
    %v1353 = vadd.f32 %v1287, %v1352
    %v1354 = vpop.f32.mrb[0].mxu0
    %v1355 = vpop.f32.mrb[0].mxu0
    %v1356 = vadd.f32 %v1292, %v1355
    %v1357 = vpop.f32.mrb[0].mxu0
    %1358 = vdwg.mxu0
    %v1359 = vpack.c.bf16 %v1348, %v1345
    %v1360 = vpack.c.bf16 %v1356, %v1353
    %s1361 = scalar_lea.vmem %s2, 80
    %v1362 = vld [vmem:[%s1361] sm:$0xf]
    %v1363 = vld [vmem:[%s1361 + $0x4] sm:$0xf]
    %v1364 = vld [vmem:[%s1361 + $0x8] sm:$0xf]
    %v1365 = vld [vmem:[%s1361 + $0xc] sm:$0xf]
    %s1366 = scalar_lea.vmem %s3, 160
    %v1367 = vld [vmem:[%s1366] sm:$0xff]
    %v1368 = vld [vmem:[%s1366 + $0x8] sm:$0xff]
    %v1369 = vld [vmem:[%s1366 + $0x10] sm:$0xff]
    %v1370 = vld [vmem:[%s1366 + $0x18] sm:$0xff]
    %1372 = vset.pattern.permute.xlu0 0
    %1373 = vperm.xlu0 %1372, %v1367
    %v1374 = vpop.permute.xlu0 %1373
    %1377 = vset.pattern.permute.xlu0 0
    %1378 = vperm.xlu0 %1377, %v1368
    %v1379 = vpop.permute.xlu0 %1378
    %1382 = vset.pattern.permute.xlu0 0
    %1383 = vperm.xlu0 %1382, %v1369
    %v1384 = vpop.permute.xlu0 %1383
    %1387 = vset.pattern.permute.xlu0 0
    %1388 = vperm.xlu0 %1387, %v1370
    %v1389 = vpop.permute.xlu0 %1388
    %v1395 = vunpack.c.l.b16 %v1362
    %v1396 = vunpack.c.l.b16 %v1363
    %v1397 = vunpack.c.l.b16 %v1364
    %v1398 = vunpack.c.l.b16 %v1365
    %v1399 = vpack.c.b16 %v1396, %v1395
    %v1400 = vpack.c.b16 %v1398, %v1397
    %v1402 = vsel %vm81, %v1399, 0
    %v1405 = vsel %vm81, %v1400, 0
    %1407 = vmatprep.subr.bf16.mxu0 0
    %1408 = vmatpush1.bf16.msra.mxu0 %v1262
    %1409 = vmatprep.subr.bf16.mxu0 0
    %1410 = vmatpush1.bf16.msra.mxu0 %v1263
    %1411 = vmatprep.subr.bf16.mxu0 0
    %1412 = vmatpush1.bf16.msra.mxu0 0
    %1413 = vmatprep.subr.bf16.mxu0 0
    %1414 = vmatpush1.bf16.msra.mxu0 0
    %1415 = vmatprep.subr.bf16.mxu0 0
    %1416 = vmatpush1.bf16.msra.mxu0 0
    %1417 = vmatprep.subr.bf16.mxu0 0
    %1418 = vmatpush1.bf16.msra.mxu0 0
    %1419 = vmatprep.subr.bf16.mxu0 0
    %1420 = vmatpush1.bf16.msra.mxu0 0
    %1421 = vmatprep.subr.bf16.mxu0 0
    %1422 = vmatpush1.bf16.msra.mxu0 0
    %1423 = vmatprep.subr.bf16.mxu0 0
    %1424 = vmatpush1.bf16.msra.mxu0 0
    %1425 = vmatprep.subr.bf16.mxu0 0
    %1426 = vmatpush1.bf16.msra.mxu0 0
    %1427 = vmatprep.subr.bf16.mxu0 0
    %1428 = vmatpush1.bf16.msra.mxu0 0
    %1429 = vmatprep.subr.bf16.mxu0 0
    %1430 = vmatpush1.bf16.msra.mxu0 0
    %1431 = vmatprep.subr.bf16.mxu0 0
    %1432 = vmatpush1.bf16.msra.mxu0 0
    %1433 = vmatprep.subr.bf16.mxu0 0
    %1434 = vmatpush1.bf16.msra.mxu0 0
    %1435 = vmatprep.subr.bf16.mxu0 0
    %1436 = vmatpush1.bf16.msra.mxu0 0
    %1437 = vmatprep.subr.bf16.mxu0 0
    %1438 = vmatpush1.bf16.msra.mxu0 0
    %1439 = vmatprep.mubr.bf16.mxu0 0
    %1440 = vmatmul.mubr.bf16.gmra.mrb[0].mxu0 %v1402
    %v1441 = vpop.f32.mrb[0].mxu0
    %v1442 = vadd.f32 %v1374, %v1441
    %v1443 = vpop.f32.mrb[0].mxu0
    %v1444 = vpop.f32.mrb[0].mxu0
    %v1445 = vadd.f32 %v1379, %v1444
    %v1446 = vpop.f32.mrb[0].mxu0
    %1447 = vmatprep.mubr.bf16.mxu0 0
    %1448 = vmatmul.mubr.bf16.gmra.mrb[0].mxu0 %v1405
    %v1449 = vpop.f32.mrb[0].mxu0
    %v1450 = vadd.f32 %v1384, %v1449
    %v1451 = vpop.f32.mrb[0].mxu0
    %v1452 = vpop.f32.mrb[0].mxu0
    %v1453 = vadd.f32 %v1389, %v1452
    %v1454 = vpop.f32.mrb[0].mxu0
    %1455 = vdwg.mxu0
    %v1456 = vpack.c.bf16 %v1445, %v1442
    %v1457 = vpack.c.bf16 %v1453, %v1450
    %1458 = vmatprep.subr.bf16.mxu0 0
    %1459 = vmatpush1.bf16.msra.mxu0 %v332
    %1460 = vmatprep.subr.bf16.mxu0 0
    %1461 = vmatpush1.bf16.msra.mxu0 %v333
    %1462 = vmatprep.subr.bf16.mxu0 0
    %1463 = vmatpush1.bf16.msra.mxu0 %v334
    %1464 = vmatprep.subr.bf16.mxu0 0
    %1465 = vmatpush1.bf16.msra.mxu0 %v335
    %1466 = vmatprep.subr.bf16.mxu0 0
    %1467 = vmatpush1.bf16.msra.mxu0 %v336
    %1468 = vmatprep.subr.bf16.mxu0 0
    %1469 = vmatpush1.bf16.msra.mxu0 %v337
    %1470 = vmatprep.subr.bf16.mxu0 0
    %1471 = vmatpush1.bf16.msra.mxu0 %v338
    %1472 = vmatprep.subr.bf16.mxu0 0
    %1473 = vmatpush1.bf16.msra.mxu0 %v339
    %1474 = vmatprep.subr.bf16.mxu0 0
    %1475 = vmatpush1.bf16.msra.mxu0 %v340
    %1476 = vmatprep.subr.bf16.mxu0 0
    %1477 = vmatpush1.bf16.msra.mxu0 %v341
    %1478 = vmatprep.subr.bf16.mxu0 0
    %1479 = vmatpush1.bf16.msra.mxu0 %v342
    %1480 = vmatprep.subr.bf16.mxu0 0
    %1481 = vmatpush1.bf16.msra.mxu0 %v343
    %1482 = vmatprep.subr.bf16.mxu0 0
    %1483 = vmatpush1.bf16.msra.mxu0 %v344
    %1484 = vmatprep.subr.bf16.mxu0 0
    %1485 = vmatpush1.bf16.msra.mxu0 %v345
    %1486 = vmatprep.subr.bf16.mxu0 0
    %1487 = vmatpush1.bf16.msra.mxu0 %v346
    %1488 = vmatprep.subr.bf16.mxu0 0
    %1489 = vmatpush1.bf16.msra.mxu0 %v347
    %1490 = vmatprep.mubr.bf16.mxu0 %v1456
    %1491 = vmatmul.mubr.bf16.gmra.mrb[0].mxu0 %v1359
    %v1492 = vpop.f32.mrb[0].mxu0
    %v1493 = vadd.f32 0.0, %v1492
    %v1494 = vpop.f32.mrb[0].mxu0
    %v1495 = vpop.f32.mrb[0].mxu0
    %v1496 = vadd.f32 0.0, %v1495
    %v1497 = vpop.f32.mrb[0].mxu0
    %1498 = vmatprep.mubr.bf16.mxu0 %v1457
    %1499 = vmatmul.mubr.bf16.gmra.mrb[0].mxu0 %v1360
    %v1500 = vpop.f32.mrb[0].mxu0
    %v1501 = vadd.f32 0.0, %v1500
    %v1502 = vpop.f32.mrb[0].mxu0
    %v1503 = vpop.f32.mrb[0].mxu0
    %v1504 = vadd.f32 0.0, %v1503
    %v1505 = vpop.f32.mrb[0].mxu0
    %1506 = vdwg.mxu0
    %v1507 = vadd.f32 %v1258, %v1493
    %v1508 = vadd.f32 %v1259, %v1496
    %v1509 = vadd.f32 %v1260, %v1501
    %v1510 = vadd.f32 %v1261, %v1504
    %v1511 = vpack.c.bf16 %v1508, %v1507
    %v1512 = vpack.c.bf16 %v1510, %v1509
    %s1513 = scalar_lea.vmem %s4, 32
    %v1514 = vld [vmem:[%s1513] sm:$0xf]
    %v1515 = vld [vmem:[%s1513 + $0x4] sm:$0xf]
    %v1516 = vld [vmem:[%s1513 + $0x8] sm:$0xf]
    %v1517 = vld [vmem:[%s1513 + $0xc] sm:$0xf]
    %s1518 = scalar_lea.vmem %s5, 64
    %v1519 = vld [vmem:[%s1518] sm:$0xff]
    %v1520 = vld [vmem:[%s1518 + $0x8] sm:$0xff]
    %v1521 = vld [vmem:[%s1518 + $0x10] sm:$0xff]
    %v1522 = vld [vmem:[%s1518 + $0x18] sm:$0xff]
    %1524 = vset.pattern.permute.xlu0 0
    %1525 = vperm.xlu0 %1524, %v1519
    %v1526 = vpop.permute.xlu0 %1525
    %1529 = vset.pattern.permute.xlu0 0
    %1530 = vperm.xlu0 %1529, %v1520
    %v1531 = vpop.permute.xlu0 %1530
    %1534 = vset.pattern.permute.xlu0 0
    %1535 = vperm.xlu0 %1534, %v1521
    %v1536 = vpop.permute.xlu0 %1535
    %1539 = vset.pattern.permute.xlu0 0
    %1540 = vperm.xlu0 %1539, %v1522
    %v1541 = vpop.permute.xlu0 %1540
    %v1547 = vunpack.c.l.b16 %v1514
    %v1548 = vunpack.c.l.b16 %v1515
    %v1549 = vunpack.c.l.b16 %v1516
    %v1550 = vunpack.c.l.b16 %v1517
    %v1551 = vpack.c.b16 %v1548, %v1547
    %v1552 = vpack.c.b16 %v1550, %v1549
    %v1554 = vsel %vm81, %v1551, 0
    %v1557 = vsel %vm81, %v1552, 0
    %1559 = vmatprep.subr.bf16.mxu0 0
    %1560 = vmatpush1.bf16.msra.mxu0 %v1511
    %1561 = vmatprep.subr.bf16.mxu0 0
    %1562 = vmatpush1.bf16.msra.mxu0 %v1512
    %1563 = vmatprep.subr.bf16.mxu0 0
    %1564 = vmatpush1.bf16.msra.mxu0 0
    %1565 = vmatprep.subr.bf16.mxu0 0
    %1566 = vmatpush1.bf16.msra.mxu0 0
    %1567 = vmatprep.subr.bf16.mxu0 0
    %1568 = vmatpush1.bf16.msra.mxu0 0
    %1569 = vmatprep.subr.bf16.mxu0 0
    %1570 = vmatpush1.bf16.msra.mxu0 0
    %1571 = vmatprep.subr.bf16.mxu0 0
    %1572 = vmatpush1.bf16.msra.mxu0 0
    %1573 = vmatprep.subr.bf16.mxu0 0
    %1574 = vmatpush1.bf16.msra.mxu0 0
    %1575 = vmatprep.subr.bf16.mxu0 0
    %1576 = vmatpush1.bf16.msra.mxu0 0
    %1577 = vmatprep.subr.bf16.mxu0 0
    %1578 = vmatpush1.bf16.msra.mxu0 0
    %1579 = vmatprep.subr.bf16.mxu0 0
    %1580 = vmatpush1.bf16.msra.mxu0 0
    %1581 = vmatprep.subr.bf16.mxu0 0
    %1582 = vmatpush1.bf16.msra.mxu0 0
    %1583 = vmatprep.subr.bf16.mxu0 0
    %1584 = vmatpush1.bf16.msra.mxu0 0
    %1585 = vmatprep.subr.bf16.mxu0 0
    %1586 = vmatpush1.bf16.msra.mxu0 0
    %1587 = vmatprep.subr.bf16.mxu0 0
    %1588 = vmatpush1.bf16.msra.mxu0 0
    %1589 = vmatprep.subr.bf16.mxu0 0
    %1590 = vmatpush1.bf16.msra.mxu0 0
    %1591 = vmatprep.mubr.bf16.mxu0 0
    %1592 = vmatmul.mubr.bf16.gmra.mrb[0].mxu0 %v1554
    %v1593 = vpop.f32.mrb[0].mxu0
    %v1594 = vadd.f32 %v1526, %v1593
    %v1595 = vpop.f32.mrb[0].mxu0
    %v1596 = vpop.f32.mrb[0].mxu0
    %v1597 = vadd.f32 %v1531, %v1596
    %v1598 = vpop.f32.mrb[0].mxu0
    %1599 = vmatprep.mubr.bf16.mxu0 0
    %1600 = vmatmul.mubr.bf16.gmra.mrb[0].mxu0 %v1557
    %v1601 = vpop.f32.mrb[0].mxu0
    %v1602 = vadd.f32 %v1536, %v1601
    %v1603 = vpop.f32.mrb[0].mxu0
    %v1604 = vpop.f32.mrb[0].mxu0
    %v1605 = vadd.f32 %v1541, %v1604
    %v1606 = vpop.f32.mrb[0].mxu0
    %1607 = vdwg.mxu0
    %s1608 = scalar_lea.vmem %s6, 32
    %v1609 = vld [vmem:[%s1608] sm:$0xf]
    %v1610 = vld [vmem:[%s1608 + $0x4] sm:$0xf]
    %v1611 = vld [vmem:[%s1608 + $0x8] sm:$0xf]
    %v1612 = vld [vmem:[%s1608 + $0xc] sm:$0xf]
    %s1613 = scalar_lea.vmem %s7, 64
    %v1614 = vld [vmem:[%s1613] sm:$0xff]
    %v1615 = vld [vmem:[%s1613 + $0x8] sm:$0xff]
    %v1616 = vld [vmem:[%s1613 + $0x10] sm:$0xff]
    %v1617 = vld [vmem:[%s1613 + $0x18] sm:$0xff]
    %1619 = vset.pattern.permute.xlu0 0
    %1620 = vperm.xlu0 %1619, %v1614
    %v1621 = vpop.permute.xlu0 %1620
    %1624 = vset.pattern.permute.xlu0 0
    %1625 = vperm.xlu0 %1624, %v1615
    %v1626 = vpop.permute.xlu0 %1625
    %1629 = vset.pattern.permute.xlu0 0
    %1630 = vperm.xlu0 %1629, %v1616
    %v1631 = vpop.permute.xlu0 %1630
    %1634 = vset.pattern.permute.xlu0 0
    %1635 = vperm.xlu0 %1634, %v1617
    %v1636 = vpop.permute.xlu0 %1635
    %v1642 = vunpack.c.l.b16 %v1609
    %v1643 = vunpack.c.l.b16 %v1610
    %v1644 = vunpack.c.l.b16 %v1611
    %v1645 = vunpack.c.l.b16 %v1612
    %v1646 = vpack.c.b16 %v1643, %v1642
    %v1647 = vpack.c.b16 %v1645, %v1644
    %v1649 = vsel %vm81, %v1646, 0
    %v1652 = vsel %vm81, %v1647, 0
    %1654 = vmatprep.subr.bf16.mxu0 0
    %1655 = vmatpush1.bf16.msra.mxu0 %v1511
    %1656 = vmatprep.subr.bf16.mxu0 0
    %1657 = vmatpush1.bf16.msra.mxu0 %v1512
    %1658 = vmatprep.subr.bf16.mxu0 0
    %1659 = vmatpush1.bf16.msra.mxu0 0
    %1660 = vmatprep.subr.bf16.mxu0 0
    %1661 = vmatpush1.bf16.msra.mxu0 0
    %1662 = vmatprep.subr.bf16.mxu0 0
    %1663 = vmatpush1.bf16.msra.mxu0 0
    %1664 = vmatprep.subr.bf16.mxu0 0
    %1665 = vmatpush1.bf16.msra.mxu0 0
    %1666 = vmatprep.subr.bf16.mxu0 0
    %1667 = vmatpush1.bf16.msra.mxu0 0
    %1668 = vmatprep.subr.bf16.mxu0 0
    %1669 = vmatpush1.bf16.msra.mxu0 0
    %1670 = vmatprep.subr.bf16.mxu0 0
    %1671 = vmatpush1.bf16.msra.mxu0 0
    %1672 = vmatprep.subr.bf16.mxu0 0
    %1673 = vmatpush1.bf16.msra.mxu0 0
    %1674 = vmatprep.subr.bf16.mxu0 0
    %1675 = vmatpush1.bf16.msra.mxu0 0
    %1676 = vmatprep.subr.bf16.mxu0 0
    %1677 = vmatpush1.bf16.msra.mxu0 0
    %1678 = vmatprep.subr.bf16.mxu0 0
    %1679 = vmatpush1.bf16.msra.mxu0 0
    %1680 = vmatprep.subr.bf16.mxu0 0
    %1681 = vmatpush1.bf16.msra.mxu0 0
    %1682 = vmatprep.subr.bf16.mxu0 0
    %1683 = vmatpush1.bf16.msra.mxu0 0
    %1684 = vmatprep.subr.bf16.mxu0 0
    %1685 = vmatpush1.bf16.msra.mxu0 0
    %1686 = vmatprep.mubr.bf16.mxu0 0
    %1687 = vmatmul.mubr.bf16.gmra.mrb[0].mxu0 %v1649
    %v1688 = vpop.f32.mrb[0].mxu0
    %v1689 = vadd.f32 %v1621, %v1688
    %v1690 = vpop.f32.mrb[0].mxu0
    %v1691 = vpop.f32.mrb[0].mxu0
    %v1692 = vadd.f32 %v1626, %v1691
    %v1693 = vpop.f32.mrb[0].mxu0
    %1694 = vmatprep.mubr.bf16.mxu0 0
    %1695 = vmatmul.mubr.bf16.gmra.mrb[0].mxu0 %v1652
    %v1696 = vpop.f32.mrb[0].mxu0
    %v1697 = vadd.f32 %v1631, %v1696
    %v1698 = vpop.f32.mrb[0].mxu0
    %v1699 = vpop.f32.mrb[0].mxu0
    %v1700 = vadd.f32 %v1636, %v1699
    %v1701 = vpop.f32.mrb[0].mxu0
    %1702 = vdwg.mxu0
    %v1703 = vmax.f32 %v1689, 0.0
    %v1704 = vmax.f32 %v1692, 0.0
    %v1705 = vmax.f32 %v1697, 0.0
    %v1706 = vmax.f32 %v1700, 0.0
    %s1707 = scalar_lea.vmem %s8, 32
    %v1708 = vld [vmem:[%s1707] sm:$0xf]
    %v1709 = vld [vmem:[%s1707 + $0x4] sm:$0xf]
    %v1710 = vld [vmem:[%s1707 + $0x8] sm:$0xf]
    %v1711 = vld [vmem:[%s1707 + $0xc] sm:$0xf]
    %v1712 = vpack.c.bf16 %v1704, %v1703
    %v1713 = vpack.c.bf16 %v1706, %v1705
    %s1714 = scalar_lea.vmem %s9, 64
    %v1715 = vld [vmem:[%s1714] sm:$0xff]
    %v1716 = vld [vmem:[%s1714 + $0x8] sm:$0xff]
    %v1717 = vld [vmem:[%s1714 + $0x10] sm:$0xff]
    %v1718 = vld [vmem:[%s1714 + $0x18] sm:$0xff]
    %1720 = vset.pattern.permute.xlu0 0
    %1721 = vperm.xlu0 %1720, %v1715
    %v1722 = vpop.permute.xlu0 %1721
    %1725 = vset.pattern.permute.xlu0 0
    %1726 = vperm.xlu0 %1725, %v1716
    %v1727 = vpop.permute.xlu0 %1726
    %1730 = vset.pattern.permute.xlu0 0
    %1731 = vperm.xlu0 %1730, %v1717
    %v1732 = vpop.permute.xlu0 %1731
    %1735 = vset.pattern.permute.xlu0 0
    %1736 = vperm.xlu0 %1735, %v1718
    %v1737 = vpop.permute.xlu0 %1736
    %v1743 = vunpack.c.l.b16 %v1708
    %v1744 = vunpack.c.l.b16 %v1709
    %v1745 = vunpack.c.l.b16 %v1710
    %v1746 = vunpack.c.l.b16 %v1711
    %v1747 = vpack.c.b16 %v1744, %v1743
    %v1748 = vpack.c.b16 %v1746, %v1745
    %v1750 = vsel %vm81, %v1747, 0
    %v1753 = vsel %vm81, %v1748, 0
    %1755 = vmatprep.subr.bf16.mxu0 0
    %1756 = vmatpush1.bf16.msra.mxu0 %v1712
    %1757 = vmatprep.subr.bf16.mxu0 0
    %1758 = vmatpush1.bf16.msra.mxu0 %v1713
    %1759 = vmatprep.subr.bf16.mxu0 0
    %1760 = vmatpush1.bf16.msra.mxu0 0
    %1761 = vmatprep.subr.bf16.mxu0 0
    %1762 = vmatpush1.bf16.msra.mxu0 0
    %1763 = vmatprep.subr.bf16.mxu0 0
    %1764 = vmatpush1.bf16.msra.mxu0 0
    %1765 = vmatprep.subr.bf16.mxu0 0
    %1766 = vmatpush1.bf16.msra.mxu0 0
    %1767 = vmatprep.subr.bf16.mxu0 0
    %1768 = vmatpush1.bf16.msra.mxu0 0
    %1769 = vmatprep.subr.bf16.mxu0 0
    %1770 = vmatpush1.bf16.msra.mxu0 0
    %1771 = vmatprep.subr.bf16.mxu0 0
    %1772 = vmatpush1.bf16.msra.mxu0 0
    %1773 = vmatprep.subr.bf16.mxu0 0
    %1774 = vmatpush1.bf16.msra.mxu0 0
    %1775 = vmatprep.subr.bf16.mxu0 0
    %1776 = vmatpush1.bf16.msra.mxu0 0
    %1777 = vmatprep.subr.bf16.mxu0 0
    %1778 = vmatpush1.bf16.msra.mxu0 0
    %1779 = vmatprep.subr.bf16.mxu0 0
    %1780 = vmatpush1.bf16.msra.mxu0 0
    %1781 = vmatprep.subr.bf16.mxu0 0
    %1782 = vmatpush1.bf16.msra.mxu0 0
    %1783 = vmatprep.subr.bf16.mxu0 0
    %1784 = vmatpush1.bf16.msra.mxu0 0
    %1785 = vmatprep.subr.bf16.mxu0 0
    %1786 = vmatpush1.bf16.msra.mxu0 0
    %1787 = vmatprep.mubr.bf16.mxu0 0
    %1788 = vmatmul.mubr.bf16.gmra.mrb[0].mxu0 %v1750
    %v1789 = vpop.f32.mrb[0].mxu0
    %v1790 = vadd.f32 %v1722, %v1789
    %v1791 = vpop.f32.mrb[0].mxu0
    %v1792 = vpop.f32.mrb[0].mxu0
    %v1793 = vadd.f32 %v1727, %v1792
    %v1794 = vpop.f32.mrb[0].mxu0
    %1795 = vmatprep.mubr.bf16.mxu0 0
    %1796 = vmatmul.mubr.bf16.gmra.mrb[0].mxu0 %v1753
    %v1797 = vpop.f32.mrb[0].mxu0
    %v1798 = vadd.f32 %v1732, %v1797
    %v1799 = vpop.f32.mrb[0].mxu0
    %v1800 = vpop.f32.mrb[0].mxu0
    %v1801 = vadd.f32 %v1737, %v1800
    %v1802 = vpop.f32.mrb[0].mxu0
    %1803 = vdwg.mxu0
    %v1804 = vmax.f32 %v1790, 0.0
    %v1805 = vmax.f32 %v1793, 0.0
    %v1806 = vmax.f32 %v1798, 0.0
    %v1807 = vmax.f32 %v1801, 0.0
    %v1808 = vadd.f32 %v1594, %v1804
    %v1809 = vadd.f32 %v1597, %v1805
    %v1810 = vadd.f32 %v1602, %v1806
    %v1811 = vadd.f32 %v1605, %v1807
    %v1812 = vpack.c.bf16 %v1809, %v1808
    %v1813 = vpack.c.bf16 %v1811, %v1810
    %s1814 = scalar_lea.vmem %s2, 96
    %v1815 = vld [vmem:[%s1814] sm:$0xf]
    %v1816 = vld [vmem:[%s1814 + $0x4] sm:$0xf]
    %v1817 = vld [vmem:[%s1814 + $0x8] sm:$0xf]
    %v1818 = vld [vmem:[%s1814 + $0xc] sm:$0xf]
    %s1819 = scalar_lea.vmem %s3, 192
    %v1820 = vld [vmem:[%s1819] sm:$0xff]
    %v1821 = vld [vmem:[%s1819 + $0x8] sm:$0xff]
    %v1822 = vld [vmem:[%s1819 + $0x10] sm:$0xff]
    %v1823 = vld [vmem:[%s1819 + $0x18] sm:$0xff]
    %1825 = vset.pattern.permute.xlu0 0
    %1826 = vperm.xlu0 %1825, %v1820
    %v1827 = vpop.permute.xlu0 %1826
    %1830 = vset.pattern.permute.xlu0 0
    %1831 = vperm.xlu0 %1830, %v1821
    %v1832 = vpop.permute.xlu0 %1831
    %1835 = vset.pattern.permute.xlu0 0
    %1836 = vperm.xlu0 %1835, %v1822
    %v1837 = vpop.permute.xlu0 %1836
    %1840 = vset.pattern.permute.xlu0 0
    %1841 = vperm.xlu0 %1840, %v1823
    %v1842 = vpop.permute.xlu0 %1841
    %v1848 = vunpack.c.l.b16 %v1815
    %v1849 = vunpack.c.l.b16 %v1816
    %v1850 = vunpack.c.l.b16 %v1817
    %v1851 = vunpack.c.l.b16 %v1818
    %v1852 = vpack.c.b16 %v1849, %v1848
    %v1853 = vpack.c.b16 %v1851, %v1850
    %v1855 = vsel %vm81, %v1852, 0
    %v1858 = vsel %vm81, %v1853, 0
    %1860 = vmatprep.subr.bf16.mxu0 0
    %1861 = vmatpush1.bf16.msra.mxu0 %v1812
    %1862 = vmatprep.subr.bf16.mxu0 0
    %1863 = vmatpush1.bf16.msra.mxu0 %v1813
    %1864 = vmatprep.subr.bf16.mxu0 0
    %1865 = vmatpush1.bf16.msra.mxu0 0
    %1866 = vmatprep.subr.bf16.mxu0 0
    %1867 = vmatpush1.bf16.msra.mxu0 0
    %1868 = vmatprep.subr.bf16.mxu0 0
    %1869 = vmatpush1.bf16.msra.mxu0 0
    %1870 = vmatprep.subr.bf16.mxu0 0
    %1871 = vmatpush1.bf16.msra.mxu0 0
    %1872 = vmatprep.subr.bf16.mxu0 0
    %1873 = vmatpush1.bf16.msra.mxu0 0
    %1874 = vmatprep.subr.bf16.mxu0 0
    %1875 = vmatpush1.bf16.msra.mxu0 0
    %1876 = vmatprep.subr.bf16.mxu0 0
    %1877 = vmatpush1.bf16.msra.mxu0 0
    %1878 = vmatprep.subr.bf16.mxu0 0
    %1879 = vmatpush1.bf16.msra.mxu0 0
    %1880 = vmatprep.subr.bf16.mxu0 0
    %1881 = vmatpush1.bf16.msra.mxu0 0
    %1882 = vmatprep.subr.bf16.mxu0 0
    %1883 = vmatpush1.bf16.msra.mxu0 0
    %1884 = vmatprep.subr.bf16.mxu0 0
    %1885 = vmatpush1.bf16.msra.mxu0 0
    %1886 = vmatprep.subr.bf16.mxu0 0
    %1887 = vmatpush1.bf16.msra.mxu0 0
    %1888 = vmatprep.subr.bf16.mxu0 0
    %1889 = vmatpush1.bf16.msra.mxu0 0
    %1890 = vmatprep.subr.bf16.mxu0 0
    %1891 = vmatpush1.bf16.msra.mxu0 0
    %1892 = vmatprep.mubr.bf16.mxu0 0
    %1893 = vmatmul.mubr.bf16.gmra.mrb[0].mxu0 %v1855
    %v1894 = vpop.f32.mrb[0].mxu0
    %v1895 = vadd.f32 %v1827, %v1894
    %v1896 = vpop.f32.mrb[0].mxu0
    %v1897 = vpop.f32.mrb[0].mxu0
    %v1898 = vadd.f32 %v1832, %v1897
    %v1899 = vpop.f32.mrb[0].mxu0
    %1900 = vmatprep.mubr.bf16.mxu0 0
    %1901 = vmatmul.mubr.bf16.gmra.mrb[0].mxu0 %v1858
    %v1902 = vpop.f32.mrb[0].mxu0
    %v1903 = vadd.f32 %v1837, %v1902
    %v1904 = vpop.f32.mrb[0].mxu0
    %v1905 = vpop.f32.mrb[0].mxu0
    %v1906 = vadd.f32 %v1842, %v1905
    %v1907 = vpop.f32.mrb[0].mxu0
    %1908 = vdwg.mxu0
    %v1909 = vpack.c.bf16 %v1898, %v1895
    %v1910 = vpack.c.bf16 %v1906, %v1903
    %s1911 = scalar_lea.vmem %s2, 112
    %v1912 = vld [vmem:[%s1911] sm:$0xf]
    %v1913 = vld [vmem:[%s1911 + $0x4] sm:$0xf]
    %v1914 = vld [vmem:[%s1911 + $0x8] sm:$0xf]
    %v1915 = vld [vmem:[%s1911 + $0xc] sm:$0xf]
    %s1916 = scalar_lea.vmem %s3, 224
    %v1917 = vld [vmem:[%s1916] sm:$0xff]
    %v1918 = vld [vmem:[%s1916 + $0x8] sm:$0xff]
    %v1919 = vld [vmem:[%s1916 + $0x10] sm:$0xff]
    %v1920 = vld [vmem:[%s1916 + $0x18] sm:$0xff]
    %1922 = vset.pattern.permute.xlu0 0
    %1923 = vperm.xlu0 %1922, %v1917
    %v1924 = vpop.permute.xlu0 %1923
    %1927 = vset.pattern.permute.xlu0 0
    %1928 = vperm.xlu0 %1927, %v1918
    %v1929 = vpop.permute.xlu0 %1928
    %1932 = vset.pattern.permute.xlu0 0
    %1933 = vperm.xlu0 %1932, %v1919
    %v1934 = vpop.permute.xlu0 %1933
    %1937 = vset.pattern.permute.xlu0 0
    %1938 = vperm.xlu0 %1937, %v1920
    %v1939 = vpop.permute.xlu0 %1938
    %v1945 = vunpack.c.l.b16 %v1912
    %v1946 = vunpack.c.l.b16 %v1913
    %v1947 = vunpack.c.l.b16 %v1914
    %v1948 = vunpack.c.l.b16 %v1915
    %v1949 = vpack.c.b16 %v1946, %v1945
    %v1950 = vpack.c.b16 %v1948, %v1947
    %v1952 = vsel %vm81, %v1949, 0
    %v1955 = vsel %vm81, %v1950, 0
    %1957 = vmatprep.subr.bf16.mxu0 0
    %1958 = vmatpush1.bf16.msra.mxu0 %v1812
    %1959 = vmatprep.subr.bf16.mxu0 0
    %1960 = vmatpush1.bf16.msra.mxu0 %v1813
    %1961 = vmatprep.subr.bf16.mxu0 0
    %1962 = vmatpush1.bf16.msra.mxu0 0
    %1963 = vmatprep.subr.bf16.mxu0 0
    %1964 = vmatpush1.bf16.msra.mxu0 0
    %1965 = vmatprep.subr.bf16.mxu0 0
    %1966 = vmatpush1.bf16.msra.mxu0 0
    %1967 = vmatprep.subr.bf16.mxu0 0
    %1968 = vmatpush1.bf16.msra.mxu0 0
    %1969 = vmatprep.subr.bf16.mxu0 0
    %1970 = vmatpush1.bf16.msra.mxu0 0
    %1971 = vmatprep.subr.bf16.mxu0 0
    %1972 = vmatpush1.bf16.msra.mxu0 0
    %1973 = vmatprep.subr.bf16.mxu0 0
    %1974 = vmatpush1.bf16.msra.mxu0 0
    %1975 = vmatprep.subr.bf16.mxu0 0
    %1976 = vmatpush1.bf16.msra.mxu0 0
    %1977 = vmatprep.subr.bf16.mxu0 0
    %1978 = vmatpush1.bf16.msra.mxu0 0
    %1979 = vmatprep.subr.bf16.mxu0 0
    %1980 = vmatpush1.bf16.msra.mxu0 0
    %1981 = vmatprep.subr.bf16.mxu0 0
    %1982 = vmatpush1.bf16.msra.mxu0 0
    %1983 = vmatprep.subr.bf16.mxu0 0
    %1984 = vmatpush1.bf16.msra.mxu0 0
    %1985 = vmatprep.subr.bf16.mxu0 0
    %1986 = vmatpush1.bf16.msra.mxu0 0
    %1987 = vmatprep.subr.bf16.mxu0 0
    %1988 = vmatpush1.bf16.msra.mxu0 0
    %1989 = vmatprep.mubr.bf16.mxu0 0
    %1990 = vmatmul.mubr.bf16.gmra.mrb[0].mxu0 %v1952
    %v1991 = vpop.f32.mrb[0].mxu0
    %v1992 = vadd.f32 %v1924, %v1991
    %v1993 = vpop.f32.mrb[0].mxu0
    %v1994 = vpop.f32.mrb[0].mxu0
    %v1995 = vadd.f32 %v1929, %v1994
    %v1996 = vpop.f32.mrb[0].mxu0
    %1997 = vmatprep.mubr.bf16.mxu0 0
    %1998 = vmatmul.mubr.bf16.gmra.mrb[0].mxu0 %v1955
    %v1999 = vpop.f32.mrb[0].mxu0
    %v2000 = vadd.f32 %v1934, %v1999
    %v2001 = vpop.f32.mrb[0].mxu0
    %v2002 = vpop.f32.mrb[0].mxu0
    %v2003 = vadd.f32 %v1939, %v2002
    %v2004 = vpop.f32.mrb[0].mxu0
    %2005 = vdwg.mxu0
    %v2006 = vpack.c.bf16 %v1995, %v1992
    %v2007 = vpack.c.bf16 %v2003, %v2000
    %2008 = vmatprep.subr.bf16.mxu0 0
    %2009 = vmatpush1.bf16.msra.mxu0 %v332
    %2010 = vmatprep.subr.bf16.mxu0 0
    %2011 = vmatpush1.bf16.msra.mxu0 %v333
    %2012 = vmatprep.subr.bf16.mxu0 0
    %2013 = vmatpush1.bf16.msra.mxu0 %v334
    %2014 = vmatprep.subr.bf16.mxu0 0
    %2015 = vmatpush1.bf16.msra.mxu0 %v335
    %2016 = vmatprep.subr.bf16.mxu0 0
    %2017 = vmatpush1.bf16.msra.mxu0 %v336
    %2018 = vmatprep.subr.bf16.mxu0 0
    %2019 = vmatpush1.bf16.msra.mxu0 %v337
    %2020 = vmatprep.subr.bf16.mxu0 0
    %2021 = vmatpush1.bf16.msra.mxu0 %v338
    %2022 = vmatprep.subr.bf16.mxu0 0
    %2023 = vmatpush1.bf16.msra.mxu0 %v339
    %2024 = vmatprep.subr.bf16.mxu0 0
    %2025 = vmatpush1.bf16.msra.mxu0 %v340
    %2026 = vmatprep.subr.bf16.mxu0 0
    %2027 = vmatpush1.bf16.msra.mxu0 %v341
    %2028 = vmatprep.subr.bf16.mxu0 0
    %2029 = vmatpush1.bf16.msra.mxu0 %v342
    %2030 = vmatprep.subr.bf16.mxu0 0
    %2031 = vmatpush1.bf16.msra.mxu0 %v343
    %2032 = vmatprep.subr.bf16.mxu0 0
    %2033 = vmatpush1.bf16.msra.mxu0 %v344
    %2034 = vmatprep.subr.bf16.mxu0 0
    %2035 = vmatpush1.bf16.msra.mxu0 %v345
    %2036 = vmatprep.subr.bf16.mxu0 0
    %2037 = vmatpush1.bf16.msra.mxu0 %v346
    %2038 = vmatprep.subr.bf16.mxu0 0
    %2039 = vmatpush1.bf16.msra.mxu0 %v347
    %2040 = vmatprep.mubr.bf16.mxu0 %v2006
    %2041 = vmatmul.mubr.bf16.gmra.mrb[0].mxu0 %v1909
    %v2042 = vpop.f32.mrb[0].mxu0
    %v2043 = vadd.f32 0.0, %v2042
    %v2044 = vpop.f32.mrb[0].mxu0
    %v2045 = vpop.f32.mrb[0].mxu0
    %v2046 = vadd.f32 0.0, %v2045
    %v2047 = vpop.f32.mrb[0].mxu0
    %2048 = vmatprep.mubr.bf16.mxu0 %v2007
    %2049 = vmatmul.mubr.bf16.gmra.mrb[0].mxu0 %v1910
    %v2050 = vpop.f32.mrb[0].mxu0
    %v2051 = vadd.f32 0.0, %v2050
    %v2052 = vpop.f32.mrb[0].mxu0
    %v2053 = vpop.f32.mrb[0].mxu0
    %v2054 = vadd.f32 0.0, %v2053
    %v2055 = vpop.f32.mrb[0].mxu0
    %2056 = vdwg.mxu0
    %v2057 = vadd.f32 %v1808, %v2043
    %v2058 = vadd.f32 %v1809, %v2046
    %v2059 = vadd.f32 %v1810, %v2051
    %v2060 = vadd.f32 %v1811, %v2054
    %v2061 = vpack.c.bf16 %v2058, %v2057
    %v2062 = vpack.c.bf16 %v2060, %v2059
    %s2063 = scalar_lea.vmem %s4, 48
    %v2064 = vld [vmem:[%s2063] sm:$0xf]
    %v2065 = vld [vmem:[%s2063 + $0x4] sm:$0xf]
    %v2066 = vld [vmem:[%s2063 + $0x8] sm:$0xf]
    %v2067 = vld [vmem:[%s2063 + $0xc] sm:$0xf]
    %s2068 = scalar_lea.vmem %s5, 96
    %v2069 = vld [vmem:[%s2068] sm:$0xff]
    %v2070 = vld [vmem:[%s2068 + $0x8] sm:$0xff]
    %v2071 = vld [vmem:[%s2068 + $0x10] sm:$0xff]
    %v2072 = vld [vmem:[%s2068 + $0x18] sm:$0xff]
    %2074 = vset.pattern.permute.xlu0 0
    %2075 = vperm.xlu0 %2074, %v2069
    %v2076 = vpop.permute.xlu0 %2075
    %2079 = vset.pattern.permute.xlu0 0
    %2080 = vperm.xlu0 %2079, %v2070
    %v2081 = vpop.permute.xlu0 %2080
    %2084 = vset.pattern.permute.xlu0 0
    %2085 = vperm.xlu0 %2084, %v2071
    %v2086 = vpop.permute.xlu0 %2085
    %2089 = vset.pattern.permute.xlu0 0
    %2090 = vperm.xlu0 %2089, %v2072
    %v2091 = vpop.permute.xlu0 %2090
    %v2097 = vunpack.c.l.b16 %v2064
    %v2098 = vunpack.c.l.b16 %v2065
    %v2099 = vunpack.c.l.b16 %v2066
    %v2100 = vunpack.c.l.b16 %v2067
    %v2101 = vpack.c.b16 %v2098, %v2097
    %v2102 = vpack.c.b16 %v2100, %v2099
    %v2104 = vsel %vm81, %v2101, 0
    %v2107 = vsel %vm81, %v2102, 0
    %2109 = vmatprep.subr.bf16.mxu0 0
    %2110 = vmatpush1.bf16.msra.mxu0 %v2061
    %2111 = vmatprep.subr.bf16.mxu0 0
    %2112 = vmatpush1.bf16.msra.mxu0 %v2062
    %2113 = vmatprep.subr.bf16.mxu0 0
    %2114 = vmatpush1.bf16.msra.mxu0 0
    %2115 = vmatprep.subr.bf16.mxu0 0
    %2116 = vmatpush1.bf16.msra.mxu0 0
    %2117 = vmatprep.subr.bf16.mxu0 0
    %2118 = vmatpush1.bf16.msra.mxu0 0
    %2119 = vmatprep.subr.bf16.mxu0 0
    %2120 = vmatpush1.bf16.msra.mxu0 0
    %2121 = vmatprep.subr.bf16.mxu0 0
    %2122 = vmatpush1.bf16.msra.mxu0 0
    %2123 = vmatprep.subr.bf16.mxu0 0
    %2124 = vmatpush1.bf16.msra.mxu0 0
    %2125 = vmatprep.subr.bf16.mxu0 0
    %2126 = vmatpush1.bf16.msra.mxu0 0
    %2127 = vmatprep.subr.bf16.mxu0 0
    %2128 = vmatpush1.bf16.msra.mxu0 0
    %2129 = vmatprep.subr.bf16.mxu0 0
    %2130 = vmatpush1.bf16.msra.mxu0 0
    %2131 = vmatprep.subr.bf16.mxu0 0
    %2132 = vmatpush1.bf16.msra.mxu0 0
    %2133 = vmatprep.subr.bf16.mxu0 0
    %2134 = vmatpush1.bf16.msra.mxu0 0
    %2135 = vmatprep.subr.bf16.mxu0 0
    %2136 = vmatpush1.bf16.msra.mxu0 0
    %2137 = vmatprep.subr.bf16.mxu0 0
    %2138 = vmatpush1.bf16.msra.mxu0 0
    %2139 = vmatprep.subr.bf16.mxu0 0
    %2140 = vmatpush1.bf16.msra.mxu0 0
    %2141 = vmatprep.mubr.bf16.mxu0 0
    %2142 = vmatmul.mubr.bf16.gmra.mrb[0].mxu0 %v2104
    %v2143 = vpop.f32.mrb[0].mxu0
    %v2144 = vadd.f32 %v2076, %v2143
    %v2145 = vpop.f32.mrb[0].mxu0
    %v2146 = vpop.f32.mrb[0].mxu0
    %v2147 = vadd.f32 %v2081, %v2146
    %v2148 = vpop.f32.mrb[0].mxu0
    %2149 = vmatprep.mubr.bf16.mxu0 0
    %2150 = vmatmul.mubr.bf16.gmra.mrb[0].mxu0 %v2107
    %v2151 = vpop.f32.mrb[0].mxu0
    %v2152 = vadd.f32 %v2086, %v2151
    %v2153 = vpop.f32.mrb[0].mxu0
    %v2154 = vpop.f32.mrb[0].mxu0
    %v2155 = vadd.f32 %v2091, %v2154
    %v2156 = vpop.f32.mrb[0].mxu0
    %2157 = vdwg.mxu0
    %s2158 = scalar_lea.vmem %s6, 48
    %v2159 = vld [vmem:[%s2158] sm:$0xf]
    %v2160 = vld [vmem:[%s2158 + $0x4] sm:$0xf]
    %v2161 = vld [vmem:[%s2158 + $0x8] sm:$0xf]
    %v2162 = vld [vmem:[%s2158 + $0xc] sm:$0xf]
    %s2163 = scalar_lea.vmem %s7, 96
    %v2164 = vld [vmem:[%s2163] sm:$0xff]
    %v2165 = vld [vmem:[%s2163 + $0x8] sm:$0xff]
    %v2166 = vld [vmem:[%s2163 + $0x10] sm:$0xff]
    %v2167 = vld [vmem:[%s2163 + $0x18] sm:$0xff]
    %2169 = vset.pattern.permute.xlu0 0
    %2170 = vperm.xlu0 %2169, %v2164
    %v2171 = vpop.permute.xlu0 %2170
    %2174 = vset.pattern.permute.xlu0 0
    %2175 = vperm.xlu0 %2174, %v2165
    %v2176 = vpop.permute.xlu0 %2175
    %2179 = vset.pattern.permute.xlu0 0
    %2180 = vperm.xlu0 %2179, %v2166
    %v2181 = vpop.permute.xlu0 %2180
    %2184 = vset.pattern.permute.xlu0 0
    %2185 = vperm.xlu0 %2184, %v2167
    %v2186 = vpop.permute.xlu0 %2185
    %v2192 = vunpack.c.l.b16 %v2159
    %v2193 = vunpack.c.l.b16 %v2160
    %v2194 = vunpack.c.l.b16 %v2161
    %v2195 = vunpack.c.l.b16 %v2162
    %v2196 = vpack.c.b16 %v2193, %v2192
    %v2197 = vpack.c.b16 %v2195, %v2194
    %v2199 = vsel %vm81, %v2196, 0
    %v2202 = vsel %vm81, %v2197, 0
    %2204 = vmatprep.subr.bf16.mxu0 0
    %2205 = vmatpush1.bf16.msra.mxu0 %v2061
    %2206 = vmatprep.subr.bf16.mxu0 0
    %2207 = vmatpush1.bf16.msra.mxu0 %v2062
    %2208 = vmatprep.subr.bf16.mxu0 0
    %2209 = vmatpush1.bf16.msra.mxu0 0
    %2210 = vmatprep.subr.bf16.mxu0 0
    %2211 = vmatpush1.bf16.msra.mxu0 0
    %2212 = vmatprep.subr.bf16.mxu0 0
    %2213 = vmatpush1.bf16.msra.mxu0 0
    %2214 = vmatprep.subr.bf16.mxu0 0
    %2215 = vmatpush1.bf16.msra.mxu0 0
    %2216 = vmatprep.subr.bf16.mxu0 0
    %2217 = vmatpush1.bf16.msra.mxu0 0
    %2218 = vmatprep.subr.bf16.mxu0 0
    %2219 = vmatpush1.bf16.msra.mxu0 0
    %2220 = vmatprep.subr.bf16.mxu0 0
    %2221 = vmatpush1.bf16.msra.mxu0 0
    %2222 = vmatprep.subr.bf16.mxu0 0
    %2223 = vmatpush1.bf16.msra.mxu0 0
    %2224 = vmatprep.subr.bf16.mxu0 0
    %2225 = vmatpush1.bf16.msra.mxu0 0
    %2226 = vmatprep.subr.bf16.mxu0 0
    %2227 = vmatpush1.bf16.msra.mxu0 0
    %2228 = vmatprep.subr.bf16.mxu0 0
    %2229 = vmatpush1.bf16.msra.mxu0 0
    %2230 = vmatprep.subr.bf16.mxu0 0
    %2231 = vmatpush1.bf16.msra.mxu0 0
    %2232 = vmatprep.subr.bf16.mxu0 0
    %2233 = vmatpush1.bf16.msra.mxu0 0
    %2234 = vmatprep.subr.bf16.mxu0 0
    %2235 = vmatpush1.bf16.msra.mxu0 0
    %2236 = vmatprep.mubr.bf16.mxu0 0
    %2237 = vmatmul.mubr.bf16.gmra.mrb[0].mxu0 %v2199
    %v2238 = vpop.f32.mrb[0].mxu0
    %v2239 = vadd.f32 %v2171, %v2238
    %v2240 = vpop.f32.mrb[0].mxu0
    %v2241 = vpop.f32.mrb[0].mxu0
    %v2242 = vadd.f32 %v2176, %v2241
    %v2243 = vpop.f32.mrb[0].mxu0
    %2244 = vmatprep.mubr.bf16.mxu0 0
    %2245 = vmatmul.mubr.bf16.gmra.mrb[0].mxu0 %v2202
    %v2246 = vpop.f32.mrb[0].mxu0
    %v2247 = vadd.f32 %v2181, %v2246
    %v2248 = vpop.f32.mrb[0].mxu0
    %v2249 = vpop.f32.mrb[0].mxu0
    %v2250 = vadd.f32 %v2186, %v2249
    %v2251 = vpop.f32.mrb[0].mxu0
    %2252 = vdwg.mxu0
    %v2253 = vmax.f32 %v2239, 0.0
    %v2254 = vmax.f32 %v2242, 0.0
    %v2255 = vmax.f32 %v2247, 0.0
    %v2256 = vmax.f32 %v2250, 0.0
    %s2257 = scalar_lea.vmem %s8, 48
    %v2258 = vld [vmem:[%s2257] sm:$0xf]
    %v2259 = vld [vmem:[%s2257 + $0x4] sm:$0xf]
    %v2260 = vld [vmem:[%s2257 + $0x8] sm:$0xf]
    %v2261 = vld [vmem:[%s2257 + $0xc] sm:$0xf]
    %v2262 = vpack.c.bf16 %v2254, %v2253
    %v2263 = vpack.c.bf16 %v2256, %v2255
    %s2264 = scalar_lea.vmem %s9, 96
    %v2265 = vld [vmem:[%s2264] sm:$0xff]
    %v2266 = vld [vmem:[%s2264 + $0x8] sm:$0xff]
    %v2267 = vld [vmem:[%s2264 + $0x10] sm:$0xff]
    %v2268 = vld [vmem:[%s2264 + $0x18] sm:$0xff]
    %2270 = vset.pattern.permute.xlu0 0
    %2271 = vperm.xlu0 %2270, %v2265
    %v2272 = vpop.permute.xlu0 %2271
    %2275 = vset.pattern.permute.xlu0 0
    %2276 = vperm.xlu0 %2275, %v2266
    %v2277 = vpop.permute.xlu0 %2276
    %2280 = vset.pattern.permute.xlu0 0
    %2281 = vperm.xlu0 %2280, %v2267
    %v2282 = vpop.permute.xlu0 %2281
    %2285 = vset.pattern.permute.xlu0 0
    %2286 = vperm.xlu0 %2285, %v2268
    %v2287 = vpop.permute.xlu0 %2286
    %v2293 = vunpack.c.l.b16 %v2258
    %v2294 = vunpack.c.l.b16 %v2259
    %v2295 = vunpack.c.l.b16 %v2260
    %v2296 = vunpack.c.l.b16 %v2261
    %v2297 = vpack.c.b16 %v2294, %v2293
    %v2298 = vpack.c.b16 %v2296, %v2295
    %v2300 = vsel %vm81, %v2297, 0
    %v2303 = vsel %vm81, %v2298, 0
    %2305 = vmatprep.subr.bf16.mxu0 0
    %2306 = vmatpush1.bf16.msra.mxu0 %v2262
    %2307 = vmatprep.subr.bf16.mxu0 0
    %2308 = vmatpush1.bf16.msra.mxu0 %v2263
    %2309 = vmatprep.subr.bf16.mxu0 0
    %2310 = vmatpush1.bf16.msra.mxu0 0
    %2311 = vmatprep.subr.bf16.mxu0 0
    %2312 = vmatpush1.bf16.msra.mxu0 0
    %2313 = vmatprep.subr.bf16.mxu0 0
    %2314 = vmatpush1.bf16.msra.mxu0 0
    %2315 = vmatprep.subr.bf16.mxu0 0
    %2316 = vmatpush1.bf16.msra.mxu0 0
    %2317 = vmatprep.subr.bf16.mxu0 0
    %2318 = vmatpush1.bf16.msra.mxu0 0
    %2319 = vmatprep.subr.bf16.mxu0 0
    %2320 = vmatpush1.bf16.msra.mxu0 0
    %2321 = vmatprep.subr.bf16.mxu0 0
    %2322 = vmatpush1.bf16.msra.mxu0 0
    %2323 = vmatprep.subr.bf16.mxu0 0
    %2324 = vmatpush1.bf16.msra.mxu0 0
    %2325 = vmatprep.subr.bf16.mxu0 0
    %2326 = vmatpush1.bf16.msra.mxu0 0
    %2327 = vmatprep.subr.bf16.mxu0 0
    %2328 = vmatpush1.bf16.msra.mxu0 0
    %2329 = vmatprep.subr.bf16.mxu0 0
    %2330 = vmatpush1.bf16.msra.mxu0 0
    %2331 = vmatprep.subr.bf16.mxu0 0
    %2332 = vmatpush1.bf16.msra.mxu0 0
    %2333 = vmatprep.subr.bf16.mxu0 0
    %2334 = vmatpush1.bf16.msra.mxu0 0
    %2335 = vmatprep.subr.bf16.mxu0 0
    %2336 = vmatpush1.bf16.msra.mxu0 0
    %2337 = vmatprep.mubr.bf16.mxu0 0
    %2338 = vmatmul.mubr.bf16.gmra.mrb[0].mxu0 %v2300
    %v2339 = vpop.f32.mrb[0].mxu0
    %v2340 = vadd.f32 %v2272, %v2339
    %v2341 = vpop.f32.mrb[0].mxu0
    %v2342 = vpop.f32.mrb[0].mxu0
    %v2343 = vadd.f32 %v2277, %v2342
    %v2344 = vpop.f32.mrb[0].mxu0
    %2345 = vmatprep.mubr.bf16.mxu0 0
    %2346 = vmatmul.mubr.bf16.gmra.mrb[0].mxu0 %v2303
    %v2347 = vpop.f32.mrb[0].mxu0
    %v2348 = vadd.f32 %v2282, %v2347
    %v2349 = vpop.f32.mrb[0].mxu0
    %v2350 = vpop.f32.mrb[0].mxu0
    %v2351 = vadd.f32 %v2287, %v2350
    %v2352 = vpop.f32.mrb[0].mxu0
    %2353 = vdwg.mxu0
    %v2354 = vmax.f32 %v2340, 0.0
    %v2355 = vmax.f32 %v2343, 0.0
    %v2356 = vmax.f32 %v2348, 0.0
    %v2357 = vmax.f32 %v2351, 0.0
    %v2358 = vadd.f32 %v2144, %v2354
    %v2359 = vadd.f32 %v2147, %v2355
    %v2360 = vadd.f32 %v2152, %v2356
    %v2361 = vadd.f32 %v2155, %v2357
    %v2362 = vpack.c.bf16 %v2359, %v2358
    %v2363 = vpack.c.bf16 %v2361, %v2360
    %s2364 = scalar_lea.vmem %s2, 128
    %v2365 = vld [vmem:[%s2364] sm:$0xf]
    %v2366 = vld [vmem:[%s2364 + $0x4] sm:$0xf]
    %v2367 = vld [vmem:[%s2364 + $0x8] sm:$0xf]
    %v2368 = vld [vmem:[%s2364 + $0xc] sm:$0xf]
    %s2369 = scalar_lea.vmem %s3, 256
    %v2370 = vld [vmem:[%s2369] sm:$0xff]
    %v2371 = vld [vmem:[%s2369 + $0x8] sm:$0xff]
    %v2372 = vld [vmem:[%s2369 + $0x10] sm:$0xff]
    %v2373 = vld [vmem:[%s2369 + $0x18] sm:$0xff]
    %2375 = vset.pattern.permute.xlu0 0
    %2376 = vperm.xlu0 %2375, %v2370
    %v2377 = vpop.permute.xlu0 %2376
    %2380 = vset.pattern.permute.xlu0 0
    %2381 = vperm.xlu0 %2380, %v2371
    %v2382 = vpop.permute.xlu0 %2381
    %2385 = vset.pattern.permute.xlu0 0
    %2386 = vperm.xlu0 %2385, %v2372
    %v2387 = vpop.permute.xlu0 %2386
    %2390 = vset.pattern.permute.xlu0 0
    %2391 = vperm.xlu0 %2390, %v2373
    %v2392 = vpop.permute.xlu0 %2391
    %v2398 = vunpack.c.l.b16 %v2365
    %v2399 = vunpack.c.l.b16 %v2366
    %v2400 = vunpack.c.l.b16 %v2367
    %v2401 = vunpack.c.l.b16 %v2368
    %v2402 = vpack.c.b16 %v2399, %v2398
    %v2403 = vpack.c.b16 %v2401, %v2400
    %v2405 = vsel %vm81, %v2402, 0
    %v2408 = vsel %vm81, %v2403, 0
    %2410 = vmatprep.subr.bf16.mxu0 0
    %2411 = vmatpush1.bf16.msra.mxu0 %v2362
    %2412 = vmatprep.subr.bf16.mxu0 0
    %2413 = vmatpush1.bf16.msra.mxu0 %v2363
    %2414 = vmatprep.subr.bf16.mxu0 0
    %2415 = vmatpush1.bf16.msra.mxu0 0
    %2416 = vmatprep.subr.bf16.mxu0 0
    %2417 = vmatpush1.bf16.msra.mxu0 0
    %2418 = vmatprep.subr.bf16.mxu0 0
    %2419 = vmatpush1.bf16.msra.mxu0 0
    %2420 = vmatprep.subr.bf16.mxu0 0
    %2421 = vmatpush1.bf16.msra.mxu0 0
    %2422 = vmatprep.subr.bf16.mxu0 0
    %2423 = vmatpush1.bf16.msra.mxu0 0
    %2424 = vmatprep.subr.bf16.mxu0 0
    %2425 = vmatpush1.bf16.msra.mxu0 0
    %2426 = vmatprep.subr.bf16.mxu0 0
    %2427 = vmatpush1.bf16.msra.mxu0 0
    %2428 = vmatprep.subr.bf16.mxu0 0
    %2429 = vmatpush1.bf16.msra.mxu0 0
    %2430 = vmatprep.subr.bf16.mxu0 0
    %2431 = vmatpush1.bf16.msra.mxu0 0
    %2432 = vmatprep.subr.bf16.mxu0 0
    %2433 = vmatpush1.bf16.msra.mxu0 0
    %2434 = vmatprep.subr.bf16.mxu0 0
    %2435 = vmatpush1.bf16.msra.mxu0 0
    %2436 = vmatprep.subr.bf16.mxu0 0
    %2437 = vmatpush1.bf16.msra.mxu0 0
    %2438 = vmatprep.subr.bf16.mxu0 0
    %2439 = vmatpush1.bf16.msra.mxu0 0
    %2440 = vmatprep.subr.bf16.mxu0 0
    %2441 = vmatpush1.bf16.msra.mxu0 0
    %2442 = vmatprep.mubr.bf16.mxu0 0
    %2443 = vmatmul.mubr.bf16.gmra.mrb[0].mxu0 %v2405
    %v2444 = vpop.f32.mrb[0].mxu0
    %v2445 = vadd.f32 %v2377, %v2444
    %v2446 = vpop.f32.mrb[0].mxu0
    %v2447 = vpop.f32.mrb[0].mxu0
    %v2448 = vadd.f32 %v2382, %v2447
    %v2449 = vpop.f32.mrb[0].mxu0
    %2450 = vmatprep.mubr.bf16.mxu0 0
    %2451 = vmatmul.mubr.bf16.gmra.mrb[0].mxu0 %v2408
    %v2452 = vpop.f32.mrb[0].mxu0
    %v2453 = vadd.f32 %v2387, %v2452
    %v2454 = vpop.f32.mrb[0].mxu0
    %v2455 = vpop.f32.mrb[0].mxu0
    %v2456 = vadd.f32 %v2392, %v2455
    %v2457 = vpop.f32.mrb[0].mxu0
    %2458 = vdwg.mxu0
    %v2459 = vpack.c.bf16 %v2448, %v2445
    %v2460 = vpack.c.bf16 %v2456, %v2453
    %s2461 = scalar_lea.vmem %s2, 144
    %v2462 = vld [vmem:[%s2461] sm:$0xf]
    %v2463 = vld [vmem:[%s2461 + $0x4] sm:$0xf]
    %v2464 = vld [vmem:[%s2461 + $0x8] sm:$0xf]
    %v2465 = vld [vmem:[%s2461 + $0xc] sm:$0xf]
    %s2466 = scalar_lea.vmem %s3, 288
    %v2467 = vld [vmem:[%s2466] sm:$0xff]
    %v2468 = vld [vmem:[%s2466 + $0x8] sm:$0xff]
    %v2469 = vld [vmem:[%s2466 + $0x10] sm:$0xff]
    %v2470 = vld [vmem:[%s2466 + $0x18] sm:$0xff]
    %2472 = vset.pattern.permute.xlu0 0
    %2473 = vperm.xlu0 %2472, %v2467
    %v2474 = vpop.permute.xlu0 %2473
    %2477 = vset.pattern.permute.xlu0 0
    %2478 = vperm.xlu0 %2477, %v2468
    %v2479 = vpop.permute.xlu0 %2478
    %2482 = vset.pattern.permute.xlu0 0
    %2483 = vperm.xlu0 %2482, %v2469
    %v2484 = vpop.permute.xlu0 %2483
    %2487 = vset.pattern.permute.xlu0 0
    %2488 = vperm.xlu0 %2487, %v2470
    %v2489 = vpop.permute.xlu0 %2488
    %v2495 = vunpack.c.l.b16 %v2462
    %v2496 = vunpack.c.l.b16 %v2463
    %v2497 = vunpack.c.l.b16 %v2464
    %v2498 = vunpack.c.l.b16 %v2465
    %v2499 = vpack.c.b16 %v2496, %v2495
    %v2500 = vpack.c.b16 %v2498, %v2497
    %v2502 = vsel %vm81, %v2499, 0
    %v2505 = vsel %vm81, %v2500, 0
    %2507 = vmatprep.subr.bf16.mxu0 0
    %2508 = vmatpush1.bf16.msra.mxu0 %v2362
    %2509 = vmatprep.subr.bf16.mxu0 0
    %2510 = vmatpush1.bf16.msra.mxu0 %v2363
    %2511 = vmatprep.subr.bf16.mxu0 0
    %2512 = vmatpush1.bf16.msra.mxu0 0
    %2513 = vmatprep.subr.bf16.mxu0 0
    %2514 = vmatpush1.bf16.msra.mxu0 0
    %2515 = vmatprep.subr.bf16.mxu0 0
    %2516 = vmatpush1.bf16.msra.mxu0 0
    %2517 = vmatprep.subr.bf16.mxu0 0
    %2518 = vmatpush1.bf16.msra.mxu0 0
    %2519 = vmatprep.subr.bf16.mxu0 0
    %2520 = vmatpush1.bf16.msra.mxu0 0
    %2521 = vmatprep.subr.bf16.mxu0 0
    %2522 = vmatpush1.bf16.msra.mxu0 0
    %2523 = vmatprep.subr.bf16.mxu0 0
    %2524 = vmatpush1.bf16.msra.mxu0 0
    %2525 = vmatprep.subr.bf16.mxu0 0
    %2526 = vmatpush1.bf16.msra.mxu0 0
    %2527 = vmatprep.subr.bf16.mxu0 0
    %2528 = vmatpush1.bf16.msra.mxu0 0
    %2529 = vmatprep.subr.bf16.mxu0 0
    %2530 = vmatpush1.bf16.msra.mxu0 0
    %2531 = vmatprep.subr.bf16.mxu0 0
    %2532 = vmatpush1.bf16.msra.mxu0 0
    %2533 = vmatprep.subr.bf16.mxu0 0
    %2534 = vmatpush1.bf16.msra.mxu0 0
    %2535 = vmatprep.subr.bf16.mxu0 0
    %2536 = vmatpush1.bf16.msra.mxu0 0
    %2537 = vmatprep.subr.bf16.mxu0 0
    %2538 = vmatpush1.bf16.msra.mxu0 0
    %2539 = vmatprep.mubr.bf16.mxu0 0
    %2540 = vmatmul.mubr.bf16.gmra.mrb[0].mxu0 %v2502
    %v2541 = vpop.f32.mrb[0].mxu0
    %v2542 = vadd.f32 %v2474, %v2541
    %v2543 = vpop.f32.mrb[0].mxu0
    %v2544 = vpop.f32.mrb[0].mxu0
    %v2545 = vadd.f32 %v2479, %v2544
    %v2546 = vpop.f32.mrb[0].mxu0
    %2547 = vmatprep.mubr.bf16.mxu0 0
    %2548 = vmatmul.mubr.bf16.gmra.mrb[0].mxu0 %v2505
    %v2549 = vpop.f32.mrb[0].mxu0
    %v2550 = vadd.f32 %v2484, %v2549
    %v2551 = vpop.f32.mrb[0].mxu0
    %v2552 = vpop.f32.mrb[0].mxu0
    %v2553 = vadd.f32 %v2489, %v2552
    %v2554 = vpop.f32.mrb[0].mxu0
    %2555 = vdwg.mxu0
    %v2556 = vpack.c.bf16 %v2545, %v2542
    %v2557 = vpack.c.bf16 %v2553, %v2550
    %2558 = vmatprep.subr.bf16.mxu0 0
    %2559 = vmatpush1.bf16.msra.mxu0 %v332
    %2560 = vmatprep.subr.bf16.mxu0 0
    %2561 = vmatpush1.bf16.msra.mxu0 %v333
    %2562 = vmatprep.subr.bf16.mxu0 0
    %2563 = vmatpush1.bf16.msra.mxu0 %v334
    %2564 = vmatprep.subr.bf16.mxu0 0
    %2565 = vmatpush1.bf16.msra.mxu0 %v335
    %2566 = vmatprep.subr.bf16.mxu0 0
    %2567 = vmatpush1.bf16.msra.mxu0 %v336
    %2568 = vmatprep.subr.bf16.mxu0 0
    %2569 = vmatpush1.bf16.msra.mxu0 %v337
    %2570 = vmatprep.subr.bf16.mxu0 0
    %2571 = vmatpush1.bf16.msra.mxu0 %v338
    %2572 = vmatprep.subr.bf16.mxu0 0
    %2573 = vmatpush1.bf16.msra.mxu0 %v339
    %2574 = vmatprep.subr.bf16.mxu0 0
    %2575 = vmatpush1.bf16.msra.mxu0 %v340
    %2576 = vmatprep.subr.bf16.mxu0 0
    %2577 = vmatpush1.bf16.msra.mxu0 %v341
    %2578 = vmatprep.subr.bf16.mxu0 0
    %2579 = vmatpush1.bf16.msra.mxu0 %v342
    %2580 = vmatprep.subr.bf16.mxu0 0
    %2581 = vmatpush1.bf16.msra.mxu0 %v343
    %2582 = vmatprep.subr.bf16.mxu0 0
    %2583 = vmatpush1.bf16.msra.mxu0 %v344
    %2584 = vmatprep.subr.bf16.mxu0 0
    %2585 = vmatpush1.bf16.msra.mxu0 %v345
    %2586 = vmatprep.subr.bf16.mxu0 0
    %2587 = vmatpush1.bf16.msra.mxu0 %v346
    %2588 = vmatprep.subr.bf16.mxu0 0
    %2589 = vmatpush1.bf16.msra.mxu0 %v347
    %2590 = vmatprep.mubr.bf16.mxu0 %v2556
    %2591 = vmatmul.mubr.bf16.gmra.mrb[0].mxu0 %v2459
    %v2592 = vpop.f32.mrb[0].mxu0
    %v2593 = vadd.f32 0.0, %v2592
    %v2594 = vpop.f32.mrb[0].mxu0
    %v2595 = vpop.f32.mrb[0].mxu0
    %v2596 = vadd.f32 0.0, %v2595
    %v2597 = vpop.f32.mrb[0].mxu0
    %2598 = vmatprep.mubr.bf16.mxu0 %v2557
    %2599 = vmatmul.mubr.bf16.gmra.mrb[0].mxu0 %v2460
    %v2600 = vpop.f32.mrb[0].mxu0
    %v2601 = vadd.f32 0.0, %v2600
    %v2602 = vpop.f32.mrb[0].mxu0
    %v2603 = vpop.f32.mrb[0].mxu0
    %v2604 = vadd.f32 0.0, %v2603
    %v2605 = vpop.f32.mrb[0].mxu0
    %2606 = vdwg.mxu0
    %v2607 = vadd.f32 %v2358, %v2593
    %v2608 = vadd.f32 %v2359, %v2596
    %v2609 = vadd.f32 %v2360, %v2601
    %v2610 = vadd.f32 %v2361, %v2604
    %v2611 = vpack.c.bf16 %v2608, %v2607
    %v2612 = vpack.c.bf16 %v2610, %v2609
    %s2613 = scalar_lea.vmem %s4, 64
    %v2614 = vld [vmem:[%s2613] sm:$0xf]
    %v2615 = vld [vmem:[%s2613 + $0x4] sm:$0xf]
    %v2616 = vld [vmem:[%s2613 + $0x8] sm:$0xf]
    %v2617 = vld [vmem:[%s2613 + $0xc] sm:$0xf]
    %s2618 = scalar_lea.vmem %s5, 128
    %v2619 = vld [vmem:[%s2618] sm:$0xff]
    %v2620 = vld [vmem:[%s2618 + $0x8] sm:$0xff]
    %v2621 = vld [vmem:[%s2618 + $0x10] sm:$0xff]
    %v2622 = vld [vmem:[%s2618 + $0x18] sm:$0xff]
    %2624 = vset.pattern.permute.xlu0 0
    %2625 = vperm.xlu0 %2624, %v2619
    %v2626 = vpop.permute.xlu0 %2625
    %2629 = vset.pattern.permute.xlu0 0
    %2630 = vperm.xlu0 %2629, %v2620
    %v2631 = vpop.permute.xlu0 %2630
    %2634 = vset.pattern.permute.xlu0 0
    %2635 = vperm.xlu0 %2634, %v2621
    %v2636 = vpop.permute.xlu0 %2635
    %2639 = vset.pattern.permute.xlu0 0
    %2640 = vperm.xlu0 %2639, %v2622
    %v2641 = vpop.permute.xlu0 %2640
    %v2647 = vunpack.c.l.b16 %v2614
    %v2648 = vunpack.c.l.b16 %v2615
    %v2649 = vunpack.c.l.b16 %v2616
    %v2650 = vunpack.c.l.b16 %v2617
    %v2651 = vpack.c.b16 %v2648, %v2647
    %v2652 = vpack.c.b16 %v2650, %v2649
    %v2654 = vsel %vm81, %v2651, 0
    %v2657 = vsel %vm81, %v2652, 0
    %2659 = vmatprep.subr.bf16.mxu0 0
    %2660 = vmatpush1.bf16.msra.mxu0 %v2611
    %2661 = vmatprep.subr.bf16.mxu0 0
    %2662 = vmatpush1.bf16.msra.mxu0 %v2612
    %2663 = vmatprep.subr.bf16.mxu0 0
    %2664 = vmatpush1.bf16.msra.mxu0 0
    %2665 = vmatprep.subr.bf16.mxu0 0
    %2666 = vmatpush1.bf16.msra.mxu0 0
    %2667 = vmatprep.subr.bf16.mxu0 0
    %2668 = vmatpush1.bf16.msra.mxu0 0
    %2669 = vmatprep.subr.bf16.mxu0 0
    %2670 = vmatpush1.bf16.msra.mxu0 0
    %2671 = vmatprep.subr.bf16.mxu0 0
    %2672 = vmatpush1.bf16.msra.mxu0 0
    %2673 = vmatprep.subr.bf16.mxu0 0
    %2674 = vmatpush1.bf16.msra.mxu0 0
    %2675 = vmatprep.subr.bf16.mxu0 0
    %2676 = vmatpush1.bf16.msra.mxu0 0
    %2677 = vmatprep.subr.bf16.mxu0 0
    %2678 = vmatpush1.bf16.msra.mxu0 0
    %2679 = vmatprep.subr.bf16.mxu0 0
    %2680 = vmatpush1.bf16.msra.mxu0 0
    %2681 = vmatprep.subr.bf16.mxu0 0
    %2682 = vmatpush1.bf16.msra.mxu0 0
    %2683 = vmatprep.subr.bf16.mxu0 0
    %2684 = vmatpush1.bf16.msra.mxu0 0
    %2685 = vmatprep.subr.bf16.mxu0 0
    %2686 = vmatpush1.bf16.msra.mxu0 0
    %2687 = vmatprep.subr.bf16.mxu0 0
    %2688 = vmatpush1.bf16.msra.mxu0 0
    %2689 = vmatprep.subr.bf16.mxu0 0
    %2690 = vmatpush1.bf16.msra.mxu0 0
    %2691 = vmatprep.mubr.bf16.mxu0 0
    %2692 = vmatmul.mubr.bf16.gmra.mrb[0].mxu0 %v2654
    %v2693 = vpop.f32.mrb[0].mxu0
    %v2694 = vadd.f32 %v2626, %v2693
    %v2695 = vpop.f32.mrb[0].mxu0
    %v2696 = vpop.f32.mrb[0].mxu0
    %v2697 = vadd.f32 %v2631, %v2696
    %v2698 = vpop.f32.mrb[0].mxu0
    %2699 = vmatprep.mubr.bf16.mxu0 0
    %2700 = vmatmul.mubr.bf16.gmra.mrb[0].mxu0 %v2657
    %v2701 = vpop.f32.mrb[0].mxu0
    %v2702 = vadd.f32 %v2636, %v2701
    %v2703 = vpop.f32.mrb[0].mxu0
    %v2704 = vpop.f32.mrb[0].mxu0
    %v2705 = vadd.f32 %v2641, %v2704
    %v2706 = vpop.f32.mrb[0].mxu0
    %2707 = vdwg.mxu0
    %s2708 = scalar_lea.vmem %s6, 64
    %v2709 = vld [vmem:[%s2708] sm:$0xf]
    %v2710 = vld [vmem:[%s2708 + $0x4] sm:$0xf]
    %v2711 = vld [vmem:[%s2708 + $0x8] sm:$0xf]
    %v2712 = vld [vmem:[%s2708 + $0xc] sm:$0xf]
    %s2713 = scalar_lea.vmem %s7, 128
    %v2714 = vld [vmem:[%s2713] sm:$0xff]
    %v2715 = vld [vmem:[%s2713 + $0x8] sm:$0xff]
    %v2716 = vld [vmem:[%s2713 + $0x10] sm:$0xff]
    %v2717 = vld [vmem:[%s2713 + $0x18] sm:$0xff]
    %2719 = vset.pattern.permute.xlu0 0
    %2720 = vperm.xlu0 %2719, %v2714
    %v2721 = vpop.permute.xlu0 %2720
    %2724 = vset.pattern.permute.xlu0 0
    %2725 = vperm.xlu0 %2724, %v2715
    %v2726 = vpop.permute.xlu0 %2725
    %2729 = vset.pattern.permute.xlu0 0
    %2730 = vperm.xlu0 %2729, %v2716
    %v2731 = vpop.permute.xlu0 %2730
    %2734 = vset.pattern.permute.xlu0 0
    %2735 = vperm.xlu0 %2734, %v2717
    %v2736 = vpop.permute.xlu0 %2735
    %v2742 = vunpack.c.l.b16 %v2709
    %v2743 = vunpack.c.l.b16 %v2710
    %v2744 = vunpack.c.l.b16 %v2711
    %v2745 = vunpack.c.l.b16 %v2712
    %v2746 = vpack.c.b16 %v2743, %v2742
    %v2747 = vpack.c.b16 %v2745, %v2744
    %v2749 = vsel %vm81, %v2746, 0
    %v2752 = vsel %vm81, %v2747, 0
    %2754 = vmatprep.subr.bf16.mxu0 0
    %2755 = vmatpush1.bf16.msra.mxu0 %v2611
    %2756 = vmatprep.subr.bf16.mxu0 0
    %2757 = vmatpush1.bf16.msra.mxu0 %v2612
    %2758 = vmatprep.subr.bf16.mxu0 0
    %2759 = vmatpush1.bf16.msra.mxu0 0
    %2760 = vmatprep.subr.bf16.mxu0 0
    %2761 = vmatpush1.bf16.msra.mxu0 0
    %2762 = vmatprep.subr.bf16.mxu0 0
    %2763 = vmatpush1.bf16.msra.mxu0 0
    %2764 = vmatprep.subr.bf16.mxu0 0
    %2765 = vmatpush1.bf16.msra.mxu0 0
    %2766 = vmatprep.subr.bf16.mxu0 0
    %2767 = vmatpush1.bf16.msra.mxu0 0
    %2768 = vmatprep.subr.bf16.mxu0 0
    %2769 = vmatpush1.bf16.msra.mxu0 0
    %2770 = vmatprep.subr.bf16.mxu0 0
    %2771 = vmatpush1.bf16.msra.mxu0 0
    %2772 = vmatprep.subr.bf16.mxu0 0
    %2773 = vmatpush1.bf16.msra.mxu0 0
    %2774 = vmatprep.subr.bf16.mxu0 0
    %2775 = vmatpush1.bf16.msra.mxu0 0
    %2776 = vmatprep.subr.bf16.mxu0 0
    %2777 = vmatpush1.bf16.msra.mxu0 0
    %2778 = vmatprep.subr.bf16.mxu0 0
    %2779 = vmatpush1.bf16.msra.mxu0 0
    %2780 = vmatprep.subr.bf16.mxu0 0
    %2781 = vmatpush1.bf16.msra.mxu0 0
    %2782 = vmatprep.subr.bf16.mxu0 0
    %2783 = vmatpush1.bf16.msra.mxu0 0
    %2784 = vmatprep.subr.bf16.mxu0 0
    %2785 = vmatpush1.bf16.msra.mxu0 0
    %2786 = vmatprep.mubr.bf16.mxu0 0
    %2787 = vmatmul.mubr.bf16.gmra.mrb[0].mxu0 %v2749
    %v2788 = vpop.f32.mrb[0].mxu0
    %v2789 = vadd.f32 %v2721, %v2788
    %v2790 = vpop.f32.mrb[0].mxu0
    %v2791 = vpop.f32.mrb[0].mxu0
    %v2792 = vadd.f32 %v2726, %v2791
    %v2793 = vpop.f32.mrb[0].mxu0
    %2794 = vmatprep.mubr.bf16.mxu0 0
    %2795 = vmatmul.mubr.bf16.gmra.mrb[0].mxu0 %v2752
    %v2796 = vpop.f32.mrb[0].mxu0
    %v2797 = vadd.f32 %v2731, %v2796
    %v2798 = vpop.f32.mrb[0].mxu0
    %v2799 = vpop.f32.mrb[0].mxu0
    %v2800 = vadd.f32 %v2736, %v2799
    %v2801 = vpop.f32.mrb[0].mxu0
    %2802 = vdwg.mxu0
    %v2803 = vmax.f32 %v2789, 0.0
    %v2804 = vmax.f32 %v2792, 0.0
    %v2805 = vmax.f32 %v2797, 0.0
    %v2806 = vmax.f32 %v2800, 0.0
    %s2807 = scalar_lea.vmem %s8, 64
    %v2808 = vld [vmem:[%s2807] sm:$0xf]
    %v2809 = vld [vmem:[%s2807 + $0x4] sm:$0xf]
    %v2810 = vld [vmem:[%s2807 + $0x8] sm:$0xf]
    %v2811 = vld [vmem:[%s2807 + $0xc] sm:$0xf]
    %v2812 = vpack.c.bf16 %v2804, %v2803
    %v2813 = vpack.c.bf16 %v2806, %v2805
    %s2814 = scalar_lea.vmem %s9, 128
    %v2815 = vld [vmem:[%s2814] sm:$0xff]
    %v2816 = vld [vmem:[%s2814 + $0x8] sm:$0xff]
    %v2817 = vld [vmem:[%s2814 + $0x10] sm:$0xff]
    %v2818 = vld [vmem:[%s2814 + $0x18] sm:$0xff]
    %2820 = vset.pattern.permute.xlu0 0
    %2821 = vperm.xlu0 %2820, %v2815
    %v2822 = vpop.permute.xlu0 %2821
    %2825 = vset.pattern.permute.xlu0 0
    %2826 = vperm.xlu0 %2825, %v2816
    %v2827 = vpop.permute.xlu0 %2826
    %2830 = vset.pattern.permute.xlu0 0
    %2831 = vperm.xlu0 %2830, %v2817
    %v2832 = vpop.permute.xlu0 %2831
    %2835 = vset.pattern.permute.xlu0 0
    %2836 = vperm.xlu0 %2835, %v2818
    %v2837 = vpop.permute.xlu0 %2836
    %v2843 = vunpack.c.l.b16 %v2808
    %v2844 = vunpack.c.l.b16 %v2809
    %v2845 = vunpack.c.l.b16 %v2810
    %v2846 = vunpack.c.l.b16 %v2811
    %v2847 = vpack.c.b16 %v2844, %v2843
    %v2848 = vpack.c.b16 %v2846, %v2845
    %v2850 = vsel %vm81, %v2847, 0
    %v2853 = vsel %vm81, %v2848, 0
    %2855 = vmatprep.subr.bf16.mxu0 0
    %2856 = vmatpush1.bf16.msra.mxu0 %v2812
    %2857 = vmatprep.subr.bf16.mxu0 0
    %2858 = vmatpush1.bf16.msra.mxu0 %v2813
    %2859 = vmatprep.subr.bf16.mxu0 0
    %2860 = vmatpush1.bf16.msra.mxu0 0
    %2861 = vmatprep.subr.bf16.mxu0 0
    %2862 = vmatpush1.bf16.msra.mxu0 0
    %2863 = vmatprep.subr.bf16.mxu0 0
    %2864 = vmatpush1.bf16.msra.mxu0 0
    %2865 = vmatprep.subr.bf16.mxu0 0
    %2866 = vmatpush1.bf16.msra.mxu0 0
    %2867 = vmatprep.subr.bf16.mxu0 0
    %2868 = vmatpush1.bf16.msra.mxu0 0
    %2869 = vmatprep.subr.bf16.mxu0 0
    %2870 = vmatpush1.bf16.msra.mxu0 0
    %2871 = vmatprep.subr.bf16.mxu0 0
    %2872 = vmatpush1.bf16.msra.mxu0 0
    %2873 = vmatprep.subr.bf16.mxu0 0
    %2874 = vmatpush1.bf16.msra.mxu0 0
    %2875 = vmatprep.subr.bf16.mxu0 0
    %2876 = vmatpush1.bf16.msra.mxu0 0
    %2877 = vmatprep.subr.bf16.mxu0 0
    %2878 = vmatpush1.bf16.msra.mxu0 0
    %2879 = vmatprep.subr.bf16.mxu0 0
    %2880 = vmatpush1.bf16.msra.mxu0 0
    %2881 = vmatprep.subr.bf16.mxu0 0
    %2882 = vmatpush1.bf16.msra.mxu0 0
    %2883 = vmatprep.subr.bf16.mxu0 0
    %2884 = vmatpush1.bf16.msra.mxu0 0
    %2885 = vmatprep.subr.bf16.mxu0 0
    %2886 = vmatpush1.bf16.msra.mxu0 0
    %2887 = vmatprep.mubr.bf16.mxu0 0
    %2888 = vmatmul.mubr.bf16.gmra.mrb[0].mxu0 %v2850
    %v2889 = vpop.f32.mrb[0].mxu0
    %v2890 = vadd.f32 %v2822, %v2889
    %v2891 = vpop.f32.mrb[0].mxu0
    %v2892 = vpop.f32.mrb[0].mxu0
    %v2893 = vadd.f32 %v2827, %v2892
    %v2894 = vpop.f32.mrb[0].mxu0
    %2895 = vmatprep.mubr.bf16.mxu0 0
    %2896 = vmatmul.mubr.bf16.gmra.mrb[0].mxu0 %v2853
    %v2897 = vpop.f32.mrb[0].mxu0
    %v2898 = vadd.f32 %v2832, %v2897
    %v2899 = vpop.f32.mrb[0].mxu0
    %v2900 = vpop.f32.mrb[0].mxu0
    %v2901 = vadd.f32 %v2837, %v2900
    %v2902 = vpop.f32.mrb[0].mxu0
    %2903 = vdwg.mxu0
    %v2904 = vmax.f32 %v2890, 0.0
    %v2905 = vmax.f32 %v2893, 0.0
    %v2906 = vmax.f32 %v2898, 0.0
    %v2907 = vmax.f32 %v2901, 0.0
    %v2908 = vadd.f32 %v2694, %v2904
    %v2909 = vadd.f32 %v2697, %v2905
    %v2910 = vadd.f32 %v2702, %v2906
    %v2911 = vadd.f32 %v2705, %v2907
    %v2912 = vpack.c.bf16 %v2909, %v2908
    %v2913 = vpack.c.bf16 %v2911, %v2910
    %s2914 = scalar_lea.vmem %s2, 160
    %v2915 = vld [vmem:[%s2914] sm:$0xf]
    %v2916 = vld [vmem:[%s2914 + $0x4] sm:$0xf]
    %v2917 = vld [vmem:[%s2914 + $0x8] sm:$0xf]
    %v2918 = vld [vmem:[%s2914 + $0xc] sm:$0xf]
    %s2919 = scalar_lea.vmem %s3, 320
    %v2920 = vld [vmem:[%s2919] sm:$0xff]
    %v2921 = vld [vmem:[%s2919 + $0x8] sm:$0xff]
    %v2922 = vld [vmem:[%s2919 + $0x10] sm:$0xff]
    %v2923 = vld [vmem:[%s2919 + $0x18] sm:$0xff]
    %2925 = vset.pattern.permute.xlu0 0
    %2926 = vperm.xlu0 %2925, %v2920
    %v2927 = vpop.permute.xlu0 %2926
    %2930 = vset.pattern.permute.xlu0 0
    %2931 = vperm.xlu0 %2930, %v2921
    %v2932 = vpop.permute.xlu0 %2931
    %2935 = vset.pattern.permute.xlu0 0
    %2936 = vperm.xlu0 %2935, %v2922
    %v2937 = vpop.permute.xlu0 %2936
    %2940 = vset.pattern.permute.xlu0 0
    %2941 = vperm.xlu0 %2940, %v2923
    %v2942 = vpop.permute.xlu0 %2941
    %v2948 = vunpack.c.l.b16 %v2915
    %v2949 = vunpack.c.l.b16 %v2916
    %v2950 = vunpack.c.l.b16 %v2917
    %v2951 = vunpack.c.l.b16 %v2918
    %v2952 = vpack.c.b16 %v2949, %v2948
    %v2953 = vpack.c.b16 %v2951, %v2950
    %v2955 = vsel %vm81, %v2952, 0
    %v2958 = vsel %vm81, %v2953, 0
    %2960 = vmatprep.subr.bf16.mxu0 0
    %2961 = vmatpush1.bf16.msra.mxu0 %v2912
    %2962 = vmatprep.subr.bf16.mxu0 0
    %2963 = vmatpush1.bf16.msra.mxu0 %v2913
    %2964 = vmatprep.subr.bf16.mxu0 0
    %2965 = vmatpush1.bf16.msra.mxu0 0
    %2966 = vmatprep.subr.bf16.mxu0 0
    %2967 = vmatpush1.bf16.msra.mxu0 0
    %2968 = vmatprep.subr.bf16.mxu0 0
    %2969 = vmatpush1.bf16.msra.mxu0 0
    %2970 = vmatprep.subr.bf16.mxu0 0
    %2971 = vmatpush1.bf16.msra.mxu0 0
    %2972 = vmatprep.subr.bf16.mxu0 0
    %2973 = vmatpush1.bf16.msra.mxu0 0
    %2974 = vmatprep.subr.bf16.mxu0 0
    %2975 = vmatpush1.bf16.msra.mxu0 0
    %2976 = vmatprep.subr.bf16.mxu0 0
    %2977 = vmatpush1.bf16.msra.mxu0 0
    %2978 = vmatprep.subr.bf16.mxu0 0
    %2979 = vmatpush1.bf16.msra.mxu0 0
    %2980 = vmatprep.subr.bf16.mxu0 0
    %2981 = vmatpush1.bf16.msra.mxu0 0
    %2982 = vmatprep.subr.bf16.mxu0 0
    %2983 = vmatpush1.bf16.msra.mxu0 0
    %2984 = vmatprep.subr.bf16.mxu0 0
    %2985 = vmatpush1.bf16.msra.mxu0 0
    %2986 = vmatprep.subr.bf16.mxu0 0
    %2987 = vmatpush1.bf16.msra.mxu0 0
    %2988 = vmatprep.subr.bf16.mxu0 0
    %2989 = vmatpush1.bf16.msra.mxu0 0
    %2990 = vmatprep.subr.bf16.mxu0 0
    %2991 = vmatpush1.bf16.msra.mxu0 0
    %2992 = vmatprep.mubr.bf16.mxu0 0
    %2993 = vmatmul.mubr.bf16.gmra.mrb[0].mxu0 %v2955
    %v2994 = vpop.f32.mrb[0].mxu0
    %v2995 = vadd.f32 %v2927, %v2994
    %v2996 = vpop.f32.mrb[0].mxu0
    %v2997 = vpop.f32.mrb[0].mxu0
    %v2998 = vadd.f32 %v2932, %v2997
    %v2999 = vpop.f32.mrb[0].mxu0
    %3000 = vmatprep.mubr.bf16.mxu0 0
    %3001 = vmatmul.mubr.bf16.gmra.mrb[0].mxu0 %v2958
    %v3002 = vpop.f32.mrb[0].mxu0
    %v3003 = vadd.f32 %v2937, %v3002
    %v3004 = vpop.f32.mrb[0].mxu0
    %v3005 = vpop.f32.mrb[0].mxu0
    %v3006 = vadd.f32 %v2942, %v3005
    %v3007 = vpop.f32.mrb[0].mxu0
    %3008 = vdwg.mxu0
    %v3009 = vpack.c.bf16 %v2998, %v2995
    %v3010 = vpack.c.bf16 %v3006, %v3003
    %s3011 = scalar_lea.vmem %s2, 176
    %v3012 = vld [vmem:[%s3011] sm:$0xf]
    %v3013 = vld [vmem:[%s3011 + $0x4] sm:$0xf]
    %v3014 = vld [vmem:[%s3011 + $0x8] sm:$0xf]
    %v3015 = vld [vmem:[%s3011 + $0xc] sm:$0xf]
    %s3016 = scalar_lea.vmem %s3, 352
    %v3017 = vld [vmem:[%s3016] sm:$0xff]
    %v3018 = vld [vmem:[%s3016 + $0x8] sm:$0xff]
    %v3019 = vld [vmem:[%s3016 + $0x10] sm:$0xff]
    %v3020 = vld [vmem:[%s3016 + $0x18] sm:$0xff]
    %3022 = vset.pattern.permute.xlu0 0
    %3023 = vperm.xlu0 %3022, %v3017
    %v3024 = vpop.permute.xlu0 %3023
    %3027 = vset.pattern.permute.xlu0 0
    %3028 = vperm.xlu0 %3027, %v3018
    %v3029 = vpop.permute.xlu0 %3028
    %3032 = vset.pattern.permute.xlu0 0
    %3033 = vperm.xlu0 %3032, %v3019
    %v3034 = vpop.permute.xlu0 %3033
    %3037 = vset.pattern.permute.xlu0 0
    %3038 = vperm.xlu0 %3037, %v3020
    %v3039 = vpop.permute.xlu0 %3038
    %v3045 = vunpack.c.l.b16 %v3012
    %v3046 = vunpack.c.l.b16 %v3013
    %v3047 = vunpack.c.l.b16 %v3014
    %v3048 = vunpack.c.l.b16 %v3015
    %v3049 = vpack.c.b16 %v3046, %v3045
    %v3050 = vpack.c.b16 %v3048, %v3047
    %v3052 = vsel %vm81, %v3049, 0
    %v3055 = vsel %vm81, %v3050, 0
    %3057 = vmatprep.subr.bf16.mxu0 0
    %3058 = vmatpush1.bf16.msra.mxu0 %v2912
    %3059 = vmatprep.subr.bf16.mxu0 0
    %3060 = vmatpush1.bf16.msra.mxu0 %v2913
    %3061 = vmatprep.subr.bf16.mxu0 0
    %3062 = vmatpush1.bf16.msra.mxu0 0
    %3063 = vmatprep.subr.bf16.mxu0 0
    %3064 = vmatpush1.bf16.msra.mxu0 0
    %3065 = vmatprep.subr.bf16.mxu0 0
    %3066 = vmatpush1.bf16.msra.mxu0 0
    %3067 = vmatprep.subr.bf16.mxu0 0
    %3068 = vmatpush1.bf16.msra.mxu0 0
    %3069 = vmatprep.subr.bf16.mxu0 0
    %3070 = vmatpush1.bf16.msra.mxu0 0
    %3071 = vmatprep.subr.bf16.mxu0 0
    %3072 = vmatpush1.bf16.msra.mxu0 0
    %3073 = vmatprep.subr.bf16.mxu0 0
    %3074 = vmatpush1.bf16.msra.mxu0 0
    %3075 = vmatprep.subr.bf16.mxu0 0
    %3076 = vmatpush1.bf16.msra.mxu0 0
    %3077 = vmatprep.subr.bf16.mxu0 0
    %3078 = vmatpush1.bf16.msra.mxu0 0
    %3079 = vmatprep.subr.bf16.mxu0 0
    %3080 = vmatpush1.bf16.msra.mxu0 0
    %3081 = vmatprep.subr.bf16.mxu0 0
    %3082 = vmatpush1.bf16.msra.mxu0 0
    %3083 = vmatprep.subr.bf16.mxu0 0
    %3084 = vmatpush1.bf16.msra.mxu0 0
    %3085 = vmatprep.subr.bf16.mxu0 0
    %3086 = vmatpush1.bf16.msra.mxu0 0
    %3087 = vmatprep.subr.bf16.mxu0 0
    %3088 = vmatpush1.bf16.msra.mxu0 0
    %3089 = vmatprep.mubr.bf16.mxu0 0
    %3090 = vmatmul.mubr.bf16.gmra.mrb[0].mxu0 %v3052
    %v3091 = vpop.f32.mrb[0].mxu0
    %v3092 = vadd.f32 %v3024, %v3091
    %v3093 = vpop.f32.mrb[0].mxu0
    %v3094 = vpop.f32.mrb[0].mxu0
    %v3095 = vadd.f32 %v3029, %v3094
    %v3096 = vpop.f32.mrb[0].mxu0
    %3097 = vmatprep.mubr.bf16.mxu0 0
    %3098 = vmatmul.mubr.bf16.gmra.mrb[0].mxu0 %v3055
    %v3099 = vpop.f32.mrb[0].mxu0
    %v3100 = vadd.f32 %v3034, %v3099
    %v3101 = vpop.f32.mrb[0].mxu0
    %v3102 = vpop.f32.mrb[0].mxu0
    %v3103 = vadd.f32 %v3039, %v3102
    %v3104 = vpop.f32.mrb[0].mxu0
    %3105 = vdwg.mxu0
    %v3106 = vpack.c.bf16 %v3095, %v3092
    %v3107 = vpack.c.bf16 %v3103, %v3100
    %3108 = vmatprep.subr.bf16.mxu0 0
    %3109 = vmatpush1.bf16.msra.mxu0 %v332
    %3110 = vmatprep.subr.bf16.mxu0 0
    %3111 = vmatpush1.bf16.msra.mxu0 %v333
    %3112 = vmatprep.subr.bf16.mxu0 0
    %3113 = vmatpush1.bf16.msra.mxu0 %v334
    %3114 = vmatprep.subr.bf16.mxu0 0
    %3115 = vmatpush1.bf16.msra.mxu0 %v335
    %3116 = vmatprep.subr.bf16.mxu0 0
    %3117 = vmatpush1.bf16.msra.mxu0 %v336
    %3118 = vmatprep.subr.bf16.mxu0 0
    %3119 = vmatpush1.bf16.msra.mxu0 %v337
    %3120 = vmatprep.subr.bf16.mxu0 0
    %3121 = vmatpush1.bf16.msra.mxu0 %v338
    %3122 = vmatprep.subr.bf16.mxu0 0
    %3123 = vmatpush1.bf16.msra.mxu0 %v339
    %3124 = vmatprep.subr.bf16.mxu0 0
    %3125 = vmatpush1.bf16.msra.mxu0 %v340
    %3126 = vmatprep.subr.bf16.mxu0 0
    %3127 = vmatpush1.bf16.msra.mxu0 %v341
    %3128 = vmatprep.subr.bf16.mxu0 0
    %3129 = vmatpush1.bf16.msra.mxu0 %v342
    %3130 = vmatprep.subr.bf16.mxu0 0
    %3131 = vmatpush1.bf16.msra.mxu0 %v343
    %3132 = vmatprep.subr.bf16.mxu0 0
    %3133 = vmatpush1.bf16.msra.mxu0 %v344
    %3134 = vmatprep.subr.bf16.mxu0 0
    %3135 = vmatpush1.bf16.msra.mxu0 %v345
    %3136 = vmatprep.subr.bf16.mxu0 0
    %3137 = vmatpush1.bf16.msra.mxu0 %v346
    %3138 = vmatprep.subr.bf16.mxu0 0
    %3139 = vmatpush1.bf16.msra.mxu0 %v347
    %3140 = vmatprep.mubr.bf16.mxu0 %v3106
    %3141 = vmatmul.mubr.bf16.gmra.mrb[0].mxu0 %v3009
    %v3142 = vpop.f32.mrb[0].mxu0
    %v3143 = vadd.f32 0.0, %v3142
    %v3144 = vpop.f32.mrb[0].mxu0
    %v3145 = vpop.f32.mrb[0].mxu0
    %v3146 = vadd.f32 0.0, %v3145
    %v3147 = vpop.f32.mrb[0].mxu0
    %3148 = vmatprep.mubr.bf16.mxu0 %v3107
    %3149 = vmatmul.mubr.bf16.gmra.mrb[0].mxu0 %v3010
    %v3150 = vpop.f32.mrb[0].mxu0
    %v3151 = vadd.f32 0.0, %v3150
    %v3152 = vpop.f32.mrb[0].mxu0
    %v3153 = vpop.f32.mrb[0].mxu0
    %v3154 = vadd.f32 0.0, %v3153
    %v3155 = vpop.f32.mrb[0].mxu0
    %3156 = vdwg.mxu0
    %v3157 = vadd.f32 %v2908, %v3143
    %v3158 = vadd.f32 %v2909, %v3146
    %v3159 = vadd.f32 %v2910, %v3151
    %v3160 = vadd.f32 %v2911, %v3154
    %v3161 = vpack.c.bf16 %v3158, %v3157
    %v3162 = vpack.c.bf16 %v3160, %v3159
    %s3163 = scalar_lea.vmem %s4, 80
    %v3164 = vld [vmem:[%s3163] sm:$0xf]
    %v3165 = vld [vmem:[%s3163 + $0x4] sm:$0xf]
    %v3166 = vld [vmem:[%s3163 + $0x8] sm:$0xf]
    %v3167 = vld [vmem:[%s3163 + $0xc] sm:$0xf]
    %s3168 = scalar_lea.vmem %s5, 160
    %v3169 = vld [vmem:[%s3168] sm:$0xff]
    %v3170 = vld [vmem:[%s3168 + $0x8] sm:$0xff]
    %v3171 = vld [vmem:[%s3168 + $0x10] sm:$0xff]
    %v3172 = vld [vmem:[%s3168 + $0x18] sm:$0xff]
    %3174 = vset.pattern.permute.xlu0 0
    %3175 = vperm.xlu0 %3174, %v3169
    %v3176 = vpop.permute.xlu0 %3175
    %3179 = vset.pattern.permute.xlu0 0
    %3180 = vperm.xlu0 %3179, %v3170
    %v3181 = vpop.permute.xlu0 %3180
    %3184 = vset.pattern.permute.xlu0 0
    %3185 = vperm.xlu0 %3184, %v3171
    %v3186 = vpop.permute.xlu0 %3185
    %3189 = vset.pattern.permute.xlu0 0
    %3190 = vperm.xlu0 %3189, %v3172
    %v3191 = vpop.permute.xlu0 %3190
    %v3197 = vunpack.c.l.b16 %v3164
    %v3198 = vunpack.c.l.b16 %v3165
    %v3199 = vunpack.c.l.b16 %v3166
    %v3200 = vunpack.c.l.b16 %v3167
    %v3201 = vpack.c.b16 %v3198, %v3197
    %v3202 = vpack.c.b16 %v3200, %v3199
    %v3204 = vsel %vm81, %v3201, 0
    %v3207 = vsel %vm81, %v3202, 0
    %3209 = vmatprep.subr.bf16.mxu0 0
    %3210 = vmatpush1.bf16.msra.mxu0 %v3161
    %3211 = vmatprep.subr.bf16.mxu0 0
    %3212 = vmatpush1.bf16.msra.mxu0 %v3162
    %3213 = vmatprep.subr.bf16.mxu0 0
    %3214 = vmatpush1.bf16.msra.mxu0 0
    %3215 = vmatprep.subr.bf16.mxu0 0
    %3216 = vmatpush1.bf16.msra.mxu0 0
    %3217 = vmatprep.subr.bf16.mxu0 0
    %3218 = vmatpush1.bf16.msra.mxu0 0
    %3219 = vmatprep.subr.bf16.mxu0 0
    %3220 = vmatpush1.bf16.msra.mxu0 0
    %3221 = vmatprep.subr.bf16.mxu0 0
    %3222 = vmatpush1.bf16.msra.mxu0 0
    %3223 = vmatprep.subr.bf16.mxu0 0
    %3224 = vmatpush1.bf16.msra.mxu0 0
    %3225 = vmatprep.subr.bf16.mxu0 0
    %3226 = vmatpush1.bf16.msra.mxu0 0
    %3227 = vmatprep.subr.bf16.mxu0 0
    %3228 = vmatpush1.bf16.msra.mxu0 0
    %3229 = vmatprep.subr.bf16.mxu0 0
    %3230 = vmatpush1.bf16.msra.mxu0 0
    %3231 = vmatprep.subr.bf16.mxu0 0
    %3232 = vmatpush1.bf16.msra.mxu0 0
    %3233 = vmatprep.subr.bf16.mxu0 0
    %3234 = vmatpush1.bf16.msra.mxu0 0
    %3235 = vmatprep.subr.bf16.mxu0 0
    %3236 = vmatpush1.bf16.msra.mxu0 0
    %3237 = vmatprep.subr.bf16.mxu0 0
    %3238 = vmatpush1.bf16.msra.mxu0 0
    %3239 = vmatprep.subr.bf16.mxu0 0
    %3240 = vmatpush1.bf16.msra.mxu0 0
    %3241 = vmatprep.mubr.bf16.mxu0 0
    %3242 = vmatmul.mubr.bf16.gmra.mrb[0].mxu0 %v3204
    %v3243 = vpop.f32.mrb[0].mxu0
    %v3244 = vadd.f32 %v3176, %v3243
    %v3245 = vpop.f32.mrb[0].mxu0
    %v3246 = vpop.f32.mrb[0].mxu0
    %v3247 = vadd.f32 %v3181, %v3246
    %v3248 = vpop.f32.mrb[0].mxu0
    %3249 = vmatprep.mubr.bf16.mxu0 0
    %3250 = vmatmul.mubr.bf16.gmra.mrb[0].mxu0 %v3207
    %v3251 = vpop.f32.mrb[0].mxu0
    %v3252 = vadd.f32 %v3186, %v3251
    %v3253 = vpop.f32.mrb[0].mxu0
    %v3254 = vpop.f32.mrb[0].mxu0
    %v3255 = vadd.f32 %v3191, %v3254
    %v3256 = vpop.f32.mrb[0].mxu0
    %3257 = vdwg.mxu0
    %s3258 = scalar_lea.vmem %s6, 80
    %v3259 = vld [vmem:[%s3258] sm:$0xf]
    %v3260 = vld [vmem:[%s3258 + $0x4] sm:$0xf]
    %v3261 = vld [vmem:[%s3258 + $0x8] sm:$0xf]
    %v3262 = vld [vmem:[%s3258 + $0xc] sm:$0xf]
    %s3263 = scalar_lea.vmem %s7, 160
    %v3264 = vld [vmem:[%s3263] sm:$0xff]
    %v3265 = vld [vmem:[%s3263 + $0x8] sm:$0xff]
    %v3266 = vld [vmem:[%s3263 + $0x10] sm:$0xff]
    %v3267 = vld [vmem:[%s3263 + $0x18] sm:$0xff]
    %3269 = vset.pattern.permute.xlu0 0
    %3270 = vperm.xlu0 %3269, %v3264
    %v3271 = vpop.permute.xlu0 %3270
    %3274 = vset.pattern.permute.xlu0 0
    %3275 = vperm.xlu0 %3274, %v3265
    %v3276 = vpop.permute.xlu0 %3275
    %3279 = vset.pattern.permute.xlu0 0
    %3280 = vperm.xlu0 %3279, %v3266
    %v3281 = vpop.permute.xlu0 %3280
    %3284 = vset.pattern.permute.xlu0 0
    %3285 = vperm.xlu0 %3284, %v3267
    %v3286 = vpop.permute.xlu0 %3285
    %v3292 = vunpack.c.l.b16 %v3259
    %v3293 = vunpack.c.l.b16 %v3260
    %v3294 = vunpack.c.l.b16 %v3261
    %v3295 = vunpack.c.l.b16 %v3262
    %v3296 = vpack.c.b16 %v3293, %v3292
    %v3297 = vpack.c.b16 %v3295, %v3294
    %v3299 = vsel %vm81, %v3296, 0
    %v3302 = vsel %vm81, %v3297, 0
    %3304 = vmatprep.subr.bf16.mxu0 0
    %3305 = vmatpush1.bf16.msra.mxu0 %v3161
    %3306 = vmatprep.subr.bf16.mxu0 0
    %3307 = vmatpush1.bf16.msra.mxu0 %v3162
    %3308 = vmatprep.subr.bf16.mxu0 0
    %3309 = vmatpush1.bf16.msra.mxu0 0
    %3310 = vmatprep.subr.bf16.mxu0 0
    %3311 = vmatpush1.bf16.msra.mxu0 0
    %3312 = vmatprep.subr.bf16.mxu0 0
    %3313 = vmatpush1.bf16.msra.mxu0 0
    %3314 = vmatprep.subr.bf16.mxu0 0
    %3315 = vmatpush1.bf16.msra.mxu0 0
    %3316 = vmatprep.subr.bf16.mxu0 0
    %3317 = vmatpush1.bf16.msra.mxu0 0
    %3318 = vmatprep.subr.bf16.mxu0 0
    %3319 = vmatpush1.bf16.msra.mxu0 0
    %3320 = vmatprep.subr.bf16.mxu0 0
    %3321 = vmatpush1.bf16.msra.mxu0 0
    %3322 = vmatprep.subr.bf16.mxu0 0
    %3323 = vmatpush1.bf16.msra.mxu0 0
    %3324 = vmatprep.subr.bf16.mxu0 0
    %3325 = vmatpush1.bf16.msra.mxu0 0
    %3326 = vmatprep.subr.bf16.mxu0 0
    %3327 = vmatpush1.bf16.msra.mxu0 0
    %3328 = vmatprep.subr.bf16.mxu0 0
    %3329 = vmatpush1.bf16.msra.mxu0 0
    %3330 = vmatprep.subr.bf16.mxu0 0
    %3331 = vmatpush1.bf16.msra.mxu0 0
    %3332 = vmatprep.subr.bf16.mxu0 0
    %3333 = vmatpush1.bf16.msra.mxu0 0
    %3334 = vmatprep.subr.bf16.mxu0 0
    %3335 = vmatpush1.bf16.msra.mxu0 0
    %3336 = vmatprep.mubr.bf16.mxu0 0
    %3337 = vmatmul.mubr.bf16.gmra.mrb[0].mxu0 %v3299
    %v3338 = vpop.f32.mrb[0].mxu0
    %v3339 = vadd.f32 %v3271, %v3338
    %v3340 = vpop.f32.mrb[0].mxu0
    %v3341 = vpop.f32.mrb[0].mxu0
    %v3342 = vadd.f32 %v3276, %v3341
    %v3343 = vpop.f32.mrb[0].mxu0
    %3344 = vmatprep.mubr.bf16.mxu0 0
    %3345 = vmatmul.mubr.bf16.gmra.mrb[0].mxu0 %v3302
    %v3346 = vpop.f32.mrb[0].mxu0
    %v3347 = vadd.f32 %v3281, %v3346
    %v3348 = vpop.f32.mrb[0].mxu0
    %v3349 = vpop.f32.mrb[0].mxu0
    %v3350 = vadd.f32 %v3286, %v3349
    %v3351 = vpop.f32.mrb[0].mxu0
    %3352 = vdwg.mxu0
    %v3353 = vmax.f32 %v3339, 0.0
    %v3354 = vmax.f32 %v3342, 0.0
    %v3355 = vmax.f32 %v3347, 0.0
    %v3356 = vmax.f32 %v3350, 0.0
    %s3357 = scalar_lea.vmem %s8, 80
    %v3358 = vld [vmem:[%s3357] sm:$0xf]
    %v3359 = vld [vmem:[%s3357 + $0x4] sm:$0xf]
    %v3360 = vld [vmem:[%s3357 + $0x8] sm:$0xf]
    %v3361 = vld [vmem:[%s3357 + $0xc] sm:$0xf]
    %v3362 = vpack.c.bf16 %v3354, %v3353
    %v3363 = vpack.c.bf16 %v3356, %v3355
    %s3364 = scalar_lea.vmem %s9, 160
    %v3365 = vld [vmem:[%s3364] sm:$0xff]
    %v3366 = vld [vmem:[%s3364 + $0x8] sm:$0xff]
    %v3367 = vld [vmem:[%s3364 + $0x10] sm:$0xff]
    %v3368 = vld [vmem:[%s3364 + $0x18] sm:$0xff]
    %3370 = vset.pattern.permute.xlu0 0
    %3371 = vperm.xlu0 %3370, %v3365
    %v3372 = vpop.permute.xlu0 %3371
    %3375 = vset.pattern.permute.xlu0 0
    %3376 = vperm.xlu0 %3375, %v3366
    %v3377 = vpop.permute.xlu0 %3376
    %3380 = vset.pattern.permute.xlu0 0
    %3381 = vperm.xlu0 %3380, %v3367
    %v3382 = vpop.permute.xlu0 %3381
    %3385 = vset.pattern.permute.xlu0 0
    %3386 = vperm.xlu0 %3385, %v3368
    %v3387 = vpop.permute.xlu0 %3386
    %v3393 = vunpack.c.l.b16 %v3358
    %v3394 = vunpack.c.l.b16 %v3359
    %v3395 = vunpack.c.l.b16 %v3360
    %v3396 = vunpack.c.l.b16 %v3361
    %v3397 = vpack.c.b16 %v3394, %v3393
    %v3398 = vpack.c.b16 %v3396, %v3395
    %v3400 = vsel %vm81, %v3397, 0
    %v3403 = vsel %vm81, %v3398, 0
    %3405 = vmatprep.subr.bf16.mxu0 0
    %3406 = vmatpush1.bf16.msra.mxu0 %v3362
    %3407 = vmatprep.subr.bf16.mxu0 0
    %3408 = vmatpush1.bf16.msra.mxu0 %v3363
    %3409 = vmatprep.subr.bf16.mxu0 0
    %3410 = vmatpush1.bf16.msra.mxu0 0
    %3411 = vmatprep.subr.bf16.mxu0 0
    %3412 = vmatpush1.bf16.msra.mxu0 0
    %3413 = vmatprep.subr.bf16.mxu0 0
    %3414 = vmatpush1.bf16.msra.mxu0 0
    %3415 = vmatprep.subr.bf16.mxu0 0
    %3416 = vmatpush1.bf16.msra.mxu0 0
    %3417 = vmatprep.subr.bf16.mxu0 0
    %3418 = vmatpush1.bf16.msra.mxu0 0
    %3419 = vmatprep.subr.bf16.mxu0 0
    %3420 = vmatpush1.bf16.msra.mxu0 0
    %3421 = vmatprep.subr.bf16.mxu0 0
    %3422 = vmatpush1.bf16.msra.mxu0 0
    %3423 = vmatprep.subr.bf16.mxu0 0
    %3424 = vmatpush1.bf16.msra.mxu0 0
    %3425 = vmatprep.subr.bf16.mxu0 0
    %3426 = vmatpush1.bf16.msra.mxu0 0
    %3427 = vmatprep.subr.bf16.mxu0 0
    %3428 = vmatpush1.bf16.msra.mxu0 0
    %3429 = vmatprep.subr.bf16.mxu0 0
    %3430 = vmatpush1.bf16.msra.mxu0 0
    %3431 = vmatprep.subr.bf16.mxu0 0
    %3432 = vmatpush1.bf16.msra.mxu0 0
    %3433 = vmatprep.subr.bf16.mxu0 0
    %3434 = vmatpush1.bf16.msra.mxu0 0
    %3435 = vmatprep.subr.bf16.mxu0 0
    %3436 = vmatpush1.bf16.msra.mxu0 0
    %3437 = vmatprep.mubr.bf16.mxu0 0
    %3438 = vmatmul.mubr.bf16.gmra.mrb[0].mxu0 %v3400
    %v3439 = vpop.f32.mrb[0].mxu0
    %v3440 = vadd.f32 %v3372, %v3439
    %v3441 = vpop.f32.mrb[0].mxu0
    %v3442 = vpop.f32.mrb[0].mxu0
    %v3443 = vadd.f32 %v3377, %v3442
    %v3444 = vpop.f32.mrb[0].mxu0
    %3445 = vmatprep.mubr.bf16.mxu0 0
    %3446 = vmatmul.mubr.bf16.gmra.mrb[0].mxu0 %v3403
    %v3447 = vpop.f32.mrb[0].mxu0
    %v3448 = vadd.f32 %v3382, %v3447
    %v3449 = vpop.f32.mrb[0].mxu0
    %v3450 = vpop.f32.mrb[0].mxu0
    %v3451 = vadd.f32 %v3387, %v3450
    %v3452 = vpop.f32.mrb[0].mxu0
    %3453 = vdwg.mxu0
    %v3454 = vmax.f32 %v3440, 0.0
    %v3455 = vmax.f32 %v3443, 0.0
    %v3456 = vmax.f32 %v3448, 0.0
    %v3457 = vmax.f32 %v3451, 0.0
    %v3458 = vadd.f32 %v3244, %v3454
    %v3459 = vadd.f32 %v3247, %v3455
    %v3460 = vadd.f32 %v3252, %v3456
    %v3461 = vadd.f32 %v3255, %v3457
    %3462 = vst [vmem:[#allocation2] sm:$0xff] %v3458
    %3463 = vst [vmem:[#allocation2 + $0x8] sm:$0xff] %v3459
    %3464 = vst [vmem:[#allocation2 + $0x10] sm:$0xff] %v3460
    %3465 = vst [vmem:[#allocation2 + $0x18] sm:$0xff] %v3461
    // Predicated region
    $region42: #{tpu_custom_call.1} parent=1 // pred_check
      _
    $region43: #{tpu_custom_call.1} parent=1 // pred_check_branch
      %3467 = sbr.rel (0) target = $region45
    $region44: #{tpu_custom_call.1} parent=1 // pred_region
      %s3469 = ssub.s32 512, 512
      %3470 = vsyncadd [#allocation3], %s3469
      %s3471 = sshll.u32 [#allocation2], 4
      %s3472 = int_to_ptr.vmem [resolvable:$true] %s3471
      %3477 = dma.vmem_to_hbm [thread:$0]  %s3472, 512, %s10, [#allocation3], 128, 128, 8
    $region45: #{tpu_custom_call.1} parent=1 // pred_fallthru
      _
    // Predicated region
    $region46: #{tpu_custom_call.1} parent=1 // pred_check
      _
    $region47: #{tpu_custom_call.1} parent=1 // pred_check_branch
      %3479 = sbr.rel (0) target = $region49
    $region48: #{tpu_custom_call.1} parent=1 // pred_region
      %3480 = dma.done [#allocation3], 512
    $region49: #{tpu_custom_call.1} parent=1 // pred_fallthru
      _
    %3481 = vsyncpa [#allocation3], 1

</llo_original>
